<compile_context>
chip_gen: v7x
topology: tpu7x:2x2x1
jax: 0.10.0
libtpu: 0.0.40
codegen_flags: <defaults>
</compile_context>

<pallas_src>
import jax
import jax.numpy as jnp
from jax.experimental import pallas as pl
from jax.experimental.pallas import tpu as pltpu


# ------------------------------ fused kernel -------------------------------

def _fused_rnn_stack_kernel(x_ref, emb_ref, w_ref, u_ref, v_ref, cls_ref,
                            h0_ref, o_ref):
    """Entire RNN_stack forward in one kernel (everything VMEM-resident).

    x_ref   : (T*B, I)   sequence-major input, row t*B + b == (t, b)
    emb_ref : (I, E)     pre-transposed embedding weight
    w_ref   : (L, E, H)  pre-transposed per-layer W
    u_ref   : (L, H, H)  pre-transposed per-layer U
    v_ref   : (L, H, E)  pre-transposed per-layer V
    cls_ref : (E, O)     pre-transposed classifier weight
    h0_ref  : (L, B, H)  initial hidden state per layer
    o_ref   : (T*B, O)   softmax over time for each (b, o)
    """
    TB = x_ref.shape[0]
    L, E, H = w_ref.shape
    B = h0_ref.shape[1]
    O = cls_ref.shape[1]
    T = TB // B
    f32 = jnp.float32

    # Embedding for all timesteps at once: (T*B, I) @ (I, E).
    cur = jnp.dot(x_ref[...], emb_ref[...], preferred_element_type=f32)

    # Stack of RNN layers (L and T static -> fully unrolled straight-line code).
    for layer in range(L):
        w = w_ref[layer]                                       # (E, H)
        u = u_ref[layer]                                       # (H, H)
        v = v_ref[layer]                                       # (H, E)

        # Hoisted out of the recurrence: X @ Wᵀ for every timestep.
        xw = jnp.dot(cur, w, preferred_element_type=f32)       # (T*B, H)

        h = h0_ref[layer].astype(f32)                          # (B, H)
        hs = []
        for t in range(T):
            # No nonlinearity — exactly the PyTorch rnn_cell.
            h = xw[t * B:(t + 1) * B, :] + jnp.dot(
                h, u, preferred_element_type=f32)
            hs.append(h)
        hseq = jnp.concatenate(hs, axis=0)                     # (T*B, H)

        # Hoisted out of the recurrence: output projection for all timesteps.
        cur = jnp.dot(hseq, v, preferred_element_type=f32)     # (T*B, E)

    # Classifier + softmax over the time axis
    # (== torch.softmax(..., dim=1) on the (B, T, O) layout).
    logits = jnp.dot(cur, cls_ref[...], preferred_element_type=f32)  # (T*B, O)
    slices = [logits[t * B:(t + 1) * B, :] for t in range(T)]        # (B, O) each
    m = slices[0]
    for t in range(1, T):
        m = jnp.maximum(m, slices[t])
    exps = [jnp.exp(s_ - m) for s_ in slices]
    denom = exps[0]
    for t in range(1, T):
        denom = denom + exps[t]
    inv = pl.reciprocal(denom)                                       # (B, O), exact
    out = jnp.concatenate([e_ * inv for e_ in exps], axis=0)         # (T*B, O)
    o_ref[...] = out.astype(o_ref.dtype)


# ------------------------------- model glue --------------------------------

def init_params(key, input_size, embedding_size, hidden_size, output_size,
                stack_length):
    """Deterministic parameter init mimicking nn.Linear's uniform(-1/sqrt(fan_in))."""
    def lin(k, out_f, in_f):
        bound = 1.0 / jnp.sqrt(in_f)
        return jax.random.uniform(k, (out_f, in_f), jnp.float32, -bound, bound)

    keys = jax.random.split(key, 2 + 3 * stack_length)
    params = {
        "embedding": lin(keys[0], embedding_size, input_size),
        # The PyTorch module constructs this Linear fresh inside forward();
        # here it is just another deterministic parameter.
        "classifier": lin(keys[1], output_size, embedding_size),
        "w": [], "u": [], "v": [],
    }
    for i in range(stack_length):
        params["w"].append(lin(keys[2 + 3 * i + 0], hidden_size, embedding_size))
        params["u"].append(lin(keys[2 + 3 * i + 1], hidden_size, hidden_size))
        params["v"].append(lin(keys[2 + 3 * i + 2], embedding_size, hidden_size))
    return params


def init_hidden(key, stack_length, hidden_size, mini_batch_size):
    # Matches the reference init_hidden: one kaiming-uniform (1, H) row per
    # stack layer, replicated across the mini-batch.
    bound = jnp.sqrt(6.0 / hidden_size)
    rows = jax.random.uniform(key, (stack_length, 1, hidden_size), jnp.float32,
                              -bound, bound)
    return jnp.broadcast_to(rows, (stack_length, mini_batch_size, hidden_size))


def rnn_stack_forward(params, x_bti, hidden_states):
    """x_bti: (B, T, input_size) -> (B, T, output_size). Single pallas_call."""
    B, T, I = x_bti.shape
    O = params["classifier"].shape[0]

    # Sequence-major flatten: row t*B + b  (tiny one-time host-side XLA op).
    x_tb_i = jnp.transpose(x_bti, (1, 0, 2)).reshape(T * B, I)

    # Pre-transpose every weight once so the kernel never emits `.T`.
    emb_t = params["embedding"].T                      # (I, E)
    w_t = jnp.stack([w.T for w in params["w"]])        # (L, E, H)
    u_t = jnp.stack([u.T for u in params["u"]])        # (L, H, H)
    v_t = jnp.stack([v.T for v in params["v"]])        # (L, H, E)
    cls_t = params["classifier"].T                     # (E, O)

    out_tb_o = pl.pallas_call(
        _fused_rnn_stack_kernel,
        out_shape=jax.ShapeDtypeStruct((T * B, O), jnp.float32),
        in_specs=[pl.BlockSpec(memory_space=pltpu.MemorySpace.VMEM)] * 7,
        out_specs=pl.BlockSpec(memory_space=pltpu.MemorySpace.VMEM),
    )(x_tb_i, emb_t, w_t, u_t, v_t, cls_t, hidden_states)

    return jnp.transpose(out_tb_o.reshape(T, B, O), (1, 0, 2))   # (B, T, O)


def reference_forward(params, x_bti, hidden_states, stack_length):
    # Pure-JAX reference mirroring the PyTorch forward, for verification.
    cur = jnp.einsum("bti,ei->bte", x_bti, params["embedding"])
    for i in range(stack_length):
        h = hidden_states[i]
        outs = []
        for t in range(cur.shape[1]):
            h = cur[:, t, :] @ params["w"][i].T + h @ params["u"][i].T
            outs.append(h @ params["v"][i].T)
        cur = jnp.stack(outs, axis=1)
    logits = jnp.einsum("bte,oe->bto", cur, params["classifier"])
    return jax.nn.softmax(logits, axis=1)  # torch.softmax(..., dim=1)


# ----------------------------------- main -----------------------------------

if __name__ == "__main__":
    input_size = 16
    embedding_size = 32
    hidden_size = 32
    output_size = 16
    stack_length = 4
    mini_batch_size = 8   # B
    seq_len = 8           # T

    root = jax.random.PRNGKey(0)
    k_params, k_hidden, k_x = jax.random.split(root, 3)

    params = init_params(k_params, input_size, embedding_size, hidden_size,
                         output_size, stack_length)
    hidden_states = init_hidden(k_hidden, stack_length, hidden_size,
                                mini_batch_size)
    x = jax.random.normal(k_x, (mini_batch_size, seq_len, input_size),
                          jnp.float32)

    out = rnn_stack_forward(params, x, hidden_states)
    out = jax.block_until_ready(out)

    ref = reference_forward(params, x, hidden_states, stack_length)
    assert out.shape == (mini_batch_size, seq_len, output_size)
    assert jnp.allclose(out, ref, atol=1e-4, rtol=1e-4), "mismatch vs reference"

    print("KERNEL_OK")
</pallas_src>

<mosaic_0001>
module attributes {stable_mosaic.version = 11 : i64} {
  func.func @_fused_rnn_stack_kernel(%arg0: memref<64x16xf32, #tpu.memory_space<vmem>>, %arg1: memref<16x32xf32, #tpu.memory_space<vmem>>, %arg2: memref<4x32x32xf32, #tpu.memory_space<vmem>>, %arg3: memref<4x32x32xf32, #tpu.memory_space<vmem>>, %arg4: memref<4x32x32xf32, #tpu.memory_space<vmem>>, %arg5: memref<32x16xf32, #tpu.memory_space<vmem>>, %arg6: memref<4x8x32xf32, #tpu.memory_space<vmem>>, %arg7: memref<64x16xf32, #tpu.memory_space<vmem>>) attributes {dimension_semantics = [], scalar_prefetch = 0 : i64, scratch_operands = 0 : i64, tpu.core_type = #tpu.core_type<tc>} {
    %c0 = arith.constant 0 : index
    %c0_0 = arith.constant 0 : index
    %0 = vector.load %arg0[%c0, %c0_0] : memref<64x16xf32, #tpu.memory_space<vmem>>, vector<64x16xf32>
    %c0_1 = arith.constant 0 : index
    %c0_2 = arith.constant 0 : index
    %1 = vector.load %arg1[%c0_1, %c0_2] : memref<16x32xf32, #tpu.memory_space<vmem>>, vector<16x32xf32>
    %cst = arith.constant dense<0.000000e+00> : vector<64x32xf32>
    %2 = tpu.matmul %0, %1, %cst {dimension_numbers = #tpu.dot_dimension_numbers<[1], [0], [0], [1], [0, 0, 1, 1], [], []>} : vector<64x16xf32>, vector<16x32xf32>, vector<64x32xf32> -> vector<64x32xf32>
    %c0_3 = arith.constant 0 : index
    %c0_4 = arith.constant 0 : index
    %c0_5 = arith.constant 0 : index
    %3 = vector.load %arg2[%c0_3, %c0_4, %c0_5] : memref<4x32x32xf32, #tpu.memory_space<vmem>>, vector<1x32x32xf32>
    %4 = vector.shape_cast %3 : vector<1x32x32xf32> to vector<32x32xf32>
    %c0_6 = arith.constant 0 : index
    %c0_7 = arith.constant 0 : index
    %c0_8 = arith.constant 0 : index
    %5 = vector.load %arg3[%c0_6, %c0_7, %c0_8] : memref<4x32x32xf32, #tpu.memory_space<vmem>>, vector<1x32x32xf32>
    %6 = vector.shape_cast %5 : vector<1x32x32xf32> to vector<32x32xf32>
    %c0_9 = arith.constant 0 : index
    %c0_10 = arith.constant 0 : index
    %c0_11 = arith.constant 0 : index
    %7 = vector.load %arg4[%c0_9, %c0_10, %c0_11] : memref<4x32x32xf32, #tpu.memory_space<vmem>>, vector<1x32x32xf32>
    %8 = vector.shape_cast %7 : vector<1x32x32xf32> to vector<32x32xf32>
    %cst_12 = arith.constant dense<0.000000e+00> : vector<64x32xf32>
    %9 = tpu.matmul %2, %4, %cst_12 {dimension_numbers = #tpu.dot_dimension_numbers<[1], [0], [0], [1], [0, 0, 1, 1], [], []>} : vector<64x32xf32>, vector<32x32xf32>, vector<64x32xf32> -> vector<64x32xf32>
    %c0_13 = arith.constant 0 : index
    %c0_14 = arith.constant 0 : index
    %c0_15 = arith.constant 0 : index
    %10 = vector.load %arg6[%c0_13, %c0_14, %c0_15] : memref<4x8x32xf32, #tpu.memory_space<vmem>>, vector<1x8x32xf32>
    %11 = vector.shape_cast %10 : vector<1x8x32xf32> to vector<8x32xf32>
    %12 = vector.extract_strided_slice %9 {offsets = [0, 0], sizes = [8, 32], strides = [1, 1]} : vector<64x32xf32> to vector<8x32xf32>
    %cst_16 = arith.constant dense<0.000000e+00> : vector<8x32xf32>
    %13 = tpu.matmul %11, %6, %cst_16 {dimension_numbers = #tpu.dot_dimension_numbers<[1], [0], [0], [1], [0, 0, 1, 1], [], []>} : vector<8x32xf32>, vector<32x32xf32>, vector<8x32xf32> -> vector<8x32xf32>
    %14 = arith.addf %12, %13 : vector<8x32xf32>
    %15 = vector.extract_strided_slice %9 {offsets = [8, 0], sizes = [8, 32], strides = [1, 1]} : vector<64x32xf32> to vector<8x32xf32>
    %cst_17 = arith.constant dense<0.000000e+00> : vector<8x32xf32>
    %16 = tpu.matmul %14, %6, %cst_17 {dimension_numbers = #tpu.dot_dimension_numbers<[1], [0], [0], [1], [0, 0, 1, 1], [], []>} : vector<8x32xf32>, vector<32x32xf32>, vector<8x32xf32> -> vector<8x32xf32>
    %17 = arith.addf %15, %16 : vector<8x32xf32>
    %18 = vector.extract_strided_slice %9 {offsets = [16, 0], sizes = [8, 32], strides = [1, 1]} : vector<64x32xf32> to vector<8x32xf32>
    %cst_18 = arith.constant dense<0.000000e+00> : vector<8x32xf32>
    %19 = tpu.matmul %17, %6, %cst_18 {dimension_numbers = #tpu.dot_dimension_numbers<[1], [0], [0], [1], [0, 0, 1, 1], [], []>} : vector<8x32xf32>, vector<32x32xf32>, vector<8x32xf32> -> vector<8x32xf32>
    %20 = arith.addf %18, %19 : vector<8x32xf32>
    %21 = vector.extract_strided_slice %9 {offsets = [24, 0], sizes = [8, 32], strides = [1, 1]} : vector<64x32xf32> to vector<8x32xf32>
    %cst_19 = arith.constant dense<0.000000e+00> : vector<8x32xf32>
    %22 = tpu.matmul %20, %6, %cst_19 {dimension_numbers = #tpu.dot_dimension_numbers<[1], [0], [0], [1], [0, 0, 1, 1], [], []>} : vector<8x32xf32>, vector<32x32xf32>, vector<8x32xf32> -> vector<8x32xf32>
    %23 = arith.addf %21, %22 : vector<8x32xf32>
    %24 = vector.extract_strided_slice %9 {offsets = [32, 0], sizes = [8, 32], strides = [1, 1]} : vector<64x32xf32> to vector<8x32xf32>
    %cst_20 = arith.constant dense<0.000000e+00> : vector<8x32xf32>
    %25 = tpu.matmul %23, %6, %cst_20 {dimension_numbers = #tpu.dot_dimension_numbers<[1], [0], [0], [1], [0, 0, 1, 1], [], []>} : vector<8x32xf32>, vector<32x32xf32>, vector<8x32xf32> -> vector<8x32xf32>
    %26 = arith.addf %24, %25 : vector<8x32xf32>
    %27 = vector.extract_strided_slice %9 {offsets = [40, 0], sizes = [8, 32], strides = [1, 1]} : vector<64x32xf32> to vector<8x32xf32>
    %cst_21 = arith.constant dense<0.000000e+00> : vector<8x32xf32>
    %28 = tpu.matmul %26, %6, %cst_21 {dimension_numbers = #tpu.dot_dimension_numbers<[1], [0], [0], [1], [0, 0, 1, 1], [], []>} : vector<8x32xf32>, vector<32x32xf32>, vector<8x32xf32> -> vector<8x32xf32>
    %29 = arith.addf %27, %28 : vector<8x32xf32>
    %30 = vector.extract_strided_slice %9 {offsets = [48, 0], sizes = [8, 32], strides = [1, 1]} : vector<64x32xf32> to vector<8x32xf32>
    %cst_22 = arith.constant dense<0.000000e+00> : vector<8x32xf32>
    %31 = tpu.matmul %29, %6, %cst_22 {dimension_numbers = #tpu.dot_dimension_numbers<[1], [0], [0], [1], [0, 0, 1, 1], [], []>} : vector<8x32xf32>, vector<32x32xf32>, vector<8x32xf32> -> vector<8x32xf32>
    %32 = arith.addf %30, %31 : vector<8x32xf32>
    %33 = vector.extract_strided_slice %9 {offsets = [56, 0], sizes = [8, 32], strides = [1, 1]} : vector<64x32xf32> to vector<8x32xf32>
    %cst_23 = arith.constant dense<0.000000e+00> : vector<8x32xf32>
    %34 = tpu.matmul %32, %6, %cst_23 {dimension_numbers = #tpu.dot_dimension_numbers<[1], [0], [0], [1], [0, 0, 1, 1], [], []>} : vector<8x32xf32>, vector<32x32xf32>, vector<8x32xf32> -> vector<8x32xf32>
    %35 = arith.addf %33, %34 : vector<8x32xf32>
    %36 = tpu.concatenate %14, %17, %20, %23, %26, %29, %32, %35 in 0 : vector<8x32xf32>, vector<8x32xf32>, vector<8x32xf32>, vector<8x32xf32>, vector<8x32xf32>, vector<8x32xf32>, vector<8x32xf32>, vector<8x32xf32> -> vector<64x32xf32>
    %cst_24 = arith.constant dense<0.000000e+00> : vector<64x32xf32>
    %37 = tpu.matmul %36, %8, %cst_24 {dimension_numbers = #tpu.dot_dimension_numbers<[1], [0], [0], [1], [0, 0, 1, 1], [], []>} : vector<64x32xf32>, vector<32x32xf32>, vector<64x32xf32> -> vector<64x32xf32>
    %c1 = arith.constant 1 : index
    %c0_25 = arith.constant 0 : index
    %c0_26 = arith.constant 0 : index
    %38 = vector.load %arg2[%c1, %c0_25, %c0_26] : memref<4x32x32xf32, #tpu.memory_space<vmem>>, vector<1x32x32xf32>
    %39 = vector.shape_cast %38 : vector<1x32x32xf32> to vector<32x32xf32>
    %c1_27 = arith.constant 1 : index
    %c0_28 = arith.constant 0 : index
    %c0_29 = arith.constant 0 : index
    %40 = vector.load %arg3[%c1_27, %c0_28, %c0_29] : memref<4x32x32xf32, #tpu.memory_space<vmem>>, vector<1x32x32xf32>
    %41 = vector.shape_cast %40 : vector<1x32x32xf32> to vector<32x32xf32>
    %c1_30 = arith.constant 1 : index
    %c0_31 = arith.constant 0 : index
    %c0_32 = arith.constant 0 : index
    %42 = vector.load %arg4[%c1_30, %c0_31, %c0_32] : memref<4x32x32xf32, #tpu.memory_space<vmem>>, vector<1x32x32xf32>
    %43 = vector.shape_cast %42 : vector<1x32x32xf32> to vector<32x32xf32>
    %cst_33 = arith.constant dense<0.000000e+00> : vector<64x32xf32>
    %44 = tpu.matmul %37, %39, %cst_33 {dimension_numbers = #tpu.dot_dimension_numbers<[1], [0], [0], [1], [0, 0, 1, 1], [], []>} : vector<64x32xf32>, vector<32x32xf32>, vector<64x32xf32> -> vector<64x32xf32>
    %c1_34 = arith.constant 1 : index
    %c0_35 = arith.constant 0 : index
    %c0_36 = arith.constant 0 : index
    %45 = vector.load %arg6[%c1_34, %c0_35, %c0_36] : memref<4x8x32xf32, #tpu.memory_space<vmem>>, vector<1x8x32xf32>
    %46 = vector.shape_cast %45 : vector<1x8x32xf32> to vector<8x32xf32>
    %47 = vector.extract_strided_slice %44 {offsets = [0, 0], sizes = [8, 32], strides = [1, 1]} : vector<64x32xf32> to vector<8x32xf32>
    %cst_37 = arith.constant dense<0.000000e+00> : vector<8x32xf32>
    %48 = tpu.matmul %46, %41, %cst_37 {dimension_numbers = #tpu.dot_dimension_numbers<[1], [0], [0], [1], [0, 0, 1, 1], [], []>} : vector<8x32xf32>, vector<32x32xf32>, vector<8x32xf32> -> vector<8x32xf32>
    %49 = arith.addf %47, %48 : vector<8x32xf32>
    %50 = vector.extract_strided_slice %44 {offsets = [8, 0], sizes = [8, 32], strides = [1, 1]} : vector<64x32xf32> to vector<8x32xf32>
    %cst_38 = arith.constant dense<0.000000e+00> : vector<8x32xf32>
    %51 = tpu.matmul %49, %41, %cst_38 {dimension_numbers = #tpu.dot_dimension_numbers<[1], [0], [0], [1], [0, 0, 1, 1], [], []>} : vector<8x32xf32>, vector<32x32xf32>, vector<8x32xf32> -> vector<8x32xf32>
    %52 = arith.addf %50, %51 : vector<8x32xf32>
    %53 = vector.extract_strided_slice %44 {offsets = [16, 0], sizes = [8, 32], strides = [1, 1]} : vector<64x32xf32> to vector<8x32xf32>
    %cst_39 = arith.constant dense<0.000000e+00> : vector<8x32xf32>
    %54 = tpu.matmul %52, %41, %cst_39 {dimension_numbers = #tpu.dot_dimension_numbers<[1], [0], [0], [1], [0, 0, 1, 1], [], []>} : vector<8x32xf32>, vector<32x32xf32>, vector<8x32xf32> -> vector<8x32xf32>
    %55 = arith.addf %53, %54 : vector<8x32xf32>
    %56 = vector.extract_strided_slice %44 {offsets = [24, 0], sizes = [8, 32], strides = [1, 1]} : vector<64x32xf32> to vector<8x32xf32>
    %cst_40 = arith.constant dense<0.000000e+00> : vector<8x32xf32>
    %57 = tpu.matmul %55, %41, %cst_40 {dimension_numbers = #tpu.dot_dimension_numbers<[1], [0], [0], [1], [0, 0, 1, 1], [], []>} : vector<8x32xf32>, vector<32x32xf32>, vector<8x32xf32> -> vector<8x32xf32>
    %58 = arith.addf %56, %57 : vector<8x32xf32>
    %59 = vector.extract_strided_slice %44 {offsets = [32, 0], sizes = [8, 32], strides = [1, 1]} : vector<64x32xf32> to vector<8x32xf32>
    %cst_41 = arith.constant dense<0.000000e+00> : vector<8x32xf32>
    %60 = tpu.matmul %58, %41, %cst_41 {dimension_numbers = #tpu.dot_dimension_numbers<[1], [0], [0], [1], [0, 0, 1, 1], [], []>} : vector<8x32xf32>, vector<32x32xf32>, vector<8x32xf32> -> vector<8x32xf32>
    %61 = arith.addf %59, %60 : vector<8x32xf32>
    %62 = vector.extract_strided_slice %44 {offsets = [40, 0], sizes = [8, 32], strides = [1, 1]} : vector<64x32xf32> to vector<8x32xf32>
    %cst_42 = arith.constant dense<0.000000e+00> : vector<8x32xf32>
    %63 = tpu.matmul %61, %41, %cst_42 {dimension_numbers = #tpu.dot_dimension_numbers<[1], [0], [0], [1], [0, 0, 1, 1], [], []>} : vector<8x32xf32>, vector<32x32xf32>, vector<8x32xf32> -> vector<8x32xf32>
    %64 = arith.addf %62, %63 : vector<8x32xf32>
    %65 = vector.extract_strided_slice %44 {offsets = [48, 0], sizes = [8, 32], strides = [1, 1]} : vector<64x32xf32> to vector<8x32xf32>
    %cst_43 = arith.constant dense<0.000000e+00> : vector<8x32xf32>
    %66 = tpu.matmul %64, %41, %cst_43 {dimension_numbers = #tpu.dot_dimension_numbers<[1], [0], [0], [1], [0, 0, 1, 1], [], []>} : vector<8x32xf32>, vector<32x32xf32>, vector<8x32xf32> -> vector<8x32xf32>
    %67 = arith.addf %65, %66 : vector<8x32xf32>
    %68 = vector.extract_strided_slice %44 {offsets = [56, 0], sizes = [8, 32], strides = [1, 1]} : vector<64x32xf32> to vector<8x32xf32>
    %cst_44 = arith.constant dense<0.000000e+00> : vector<8x32xf32>
    %69 = tpu.matmul %67, %41, %cst_44 {dimension_numbers = #tpu.dot_dimension_numbers<[1], [0], [0], [1], [0, 0, 1, 1], [], []>} : vector<8x32xf32>, vector<32x32xf32>, vector<8x32xf32> -> vector<8x32xf32>
    %70 = arith.addf %68, %69 : vector<8x32xf32>
    %71 = tpu.concatenate %49, %52, %55, %58, %61, %64, %67, %70 in 0 : vector<8x32xf32>, vector<8x32xf32>, vector<8x32xf32>, vector<8x32xf32>, vector<8x32xf32>, vector<8x32xf32>, vector<8x32xf32>, vector<8x32xf32> -> vector<64x32xf32>
    %cst_45 = arith.constant dense<0.000000e+00> : vector<64x32xf32>
    %72 = tpu.matmul %71, %43, %cst_45 {dimension_numbers = #tpu.dot_dimension_numbers<[1], [0], [0], [1], [0, 0, 1, 1], [], []>} : vector<64x32xf32>, vector<32x32xf32>, vector<64x32xf32> -> vector<64x32xf32>
    %c2 = arith.constant 2 : index
    %c0_46 = arith.constant 0 : index
    %c0_47 = arith.constant 0 : index
    %73 = vector.load %arg2[%c2, %c0_46, %c0_47] : memref<4x32x32xf32, #tpu.memory_space<vmem>>, vector<1x32x32xf32>
    %74 = vector.shape_cast %73 : vector<1x32x32xf32> to vector<32x32xf32>
    %c2_48 = arith.constant 2 : index
    %c0_49 = arith.constant 0 : index
    %c0_50 = arith.constant 0 : index
    %75 = vector.load %arg3[%c2_48, %c0_49, %c0_50] : memref<4x32x32xf32, #tpu.memory_space<vmem>>, vector<1x32x32xf32>
    %76 = vector.shape_cast %75 : vector<1x32x32xf32> to vector<32x32xf32>
    %c2_51 = arith.constant 2 : index
    %c0_52 = arith.constant 0 : index
    %c0_53 = arith.constant 0 : index
    %77 = vector.load %arg4[%c2_51, %c0_52, %c0_53] : memref<4x32x32xf32, #tpu.memory_space<vmem>>, vector<1x32x32xf32>
    %78 = vector.shape_cast %77 : vector<1x32x32xf32> to vector<32x32xf32>
    %cst_54 = arith.constant dense<0.000000e+00> : vector<64x32xf32>
    %79 = tpu.matmul %72, %74, %cst_54 {dimension_numbers = #tpu.dot_dimension_numbers<[1], [0], [0], [1], [0, 0, 1, 1], [], []>} : vector<64x32xf32>, vector<32x32xf32>, vector<64x32xf32> -> vector<64x32xf32>
    %c2_55 = arith.constant 2 : index
    %c0_56 = arith.constant 0 : index
    %c0_57 = arith.constant 0 : index
    %80 = vector.load %arg6[%c2_55, %c0_56, %c0_57] : memref<4x8x32xf32, #tpu.memory_space<vmem>>, vector<1x8x32xf32>
    %81 = vector.shape_cast %80 : vector<1x8x32xf32> to vector<8x32xf32>
    %82 = vector.extract_strided_slice %79 {offsets = [0, 0], sizes = [8, 32], strides = [1, 1]} : vector<64x32xf32> to vector<8x32xf32>
    %cst_58 = arith.constant dense<0.000000e+00> : vector<8x32xf32>
    %83 = tpu.matmul %81, %76, %cst_58 {dimension_numbers = #tpu.dot_dimension_numbers<[1], [0], [0], [1], [0, 0, 1, 1], [], []>} : vector<8x32xf32>, vector<32x32xf32>, vector<8x32xf32> -> vector<8x32xf32>
    %84 = arith.addf %82, %83 : vector<8x32xf32>
    %85 = vector.extract_strided_slice %79 {offsets = [8, 0], sizes = [8, 32], strides = [1, 1]} : vector<64x32xf32> to vector<8x32xf32>
    %cst_59 = arith.constant dense<0.000000e+00> : vector<8x32xf32>
    %86 = tpu.matmul %84, %76, %cst_59 {dimension_numbers = #tpu.dot_dimension_numbers<[1], [0], [0], [1], [0, 0, 1, 1], [], []>} : vector<8x32xf32>, vector<32x32xf32>, vector<8x32xf32> -> vector<8x32xf32>
    %87 = arith.addf %85, %86 : vector<8x32xf32>
    %88 = vector.extract_strided_slice %79 {offsets = [16, 0], sizes = [8, 32], strides = [1, 1]} : vector<64x32xf32> to vector<8x32xf32>
    %cst_60 = arith.constant dense<0.000000e+00> : vector<8x32xf32>
    %89 = tpu.matmul %87, %76, %cst_60 {dimension_numbers = #tpu.dot_dimension_numbers<[1], [0], [0], [1], [0, 0, 1, 1], [], []>} : vector<8x32xf32>, vector<32x32xf32>, vector<8x32xf32> -> vector<8x32xf32>
    %90 = arith.addf %88, %89 : vector<8x32xf32>
    %91 = vector.extract_strided_slice %79 {offsets = [24, 0], sizes = [8, 32], strides = [1, 1]} : vector<64x32xf32> to vector<8x32xf32>
    %cst_61 = arith.constant dense<0.000000e+00> : vector<8x32xf32>
    %92 = tpu.matmul %90, %76, %cst_61 {dimension_numbers = #tpu.dot_dimension_numbers<[1], [0], [0], [1], [0, 0, 1, 1], [], []>} : vector<8x32xf32>, vector<32x32xf32>, vector<8x32xf32> -> vector<8x32xf32>
    %93 = arith.addf %91, %92 : vector<8x32xf32>
    %94 = vector.extract_strided_slice %79 {offsets = [32, 0], sizes = [8, 32], strides = [1, 1]} : vector<64x32xf32> to vector<8x32xf32>
    %cst_62 = arith.constant dense<0.000000e+00> : vector<8x32xf32>
    %95 = tpu.matmul %93, %76, %cst_62 {dimension_numbers = #tpu.dot_dimension_numbers<[1], [0], [0], [1], [0, 0, 1, 1], [], []>} : vector<8x32xf32>, vector<32x32xf32>, vector<8x32xf32> -> vector<8x32xf32>
    %96 = arith.addf %94, %95 : vector<8x32xf32>
    %97 = vector.extract_strided_slice %79 {offsets = [40, 0], sizes = [8, 32], strides = [1, 1]} : vector<64x32xf32> to vector<8x32xf32>
    %cst_63 = arith.constant dense<0.000000e+00> : vector<8x32xf32>
    %98 = tpu.matmul %96, %76, %cst_63 {dimension_numbers = #tpu.dot_dimension_numbers<[1], [0], [0], [1], [0, 0, 1, 1], [], []>} : vector<8x32xf32>, vector<32x32xf32>, vector<8x32xf32> -> vector<8x32xf32>
    %99 = arith.addf %97, %98 : vector<8x32xf32>
    %100 = vector.extract_strided_slice %79 {offsets = [48, 0], sizes = [8, 32], strides = [1, 1]} : vector<64x32xf32> to vector<8x32xf32>
    %cst_64 = arith.constant dense<0.000000e+00> : vector<8x32xf32>
    %101 = tpu.matmul %99, %76, %cst_64 {dimension_numbers = #tpu.dot_dimension_numbers<[1], [0], [0], [1], [0, 0, 1, 1], [], []>} : vector<8x32xf32>, vector<32x32xf32>, vector<8x32xf32> -> vector<8x32xf32>
    %102 = arith.addf %100, %101 : vector<8x32xf32>
    %103 = vector.extract_strided_slice %79 {offsets = [56, 0], sizes = [8, 32], strides = [1, 1]} : vector<64x32xf32> to vector<8x32xf32>
    %cst_65 = arith.constant dense<0.000000e+00> : vector<8x32xf32>
    %104 = tpu.matmul %102, %76, %cst_65 {dimension_numbers = #tpu.dot_dimension_numbers<[1], [0], [0], [1], [0, 0, 1, 1], [], []>} : vector<8x32xf32>, vector<32x32xf32>, vector<8x32xf32> -> vector<8x32xf32>
    %105 = arith.addf %103, %104 : vector<8x32xf32>
    %106 = tpu.concatenate %84, %87, %90, %93, %96, %99, %102, %105 in 0 : vector<8x32xf32>, vector<8x32xf32>, vector<8x32xf32>, vector<8x32xf32>, vector<8x32xf32>, vector<8x32xf32>, vector<8x32xf32>, vector<8x32xf32> -> vector<64x32xf32>
    %cst_66 = arith.constant dense<0.000000e+00> : vector<64x32xf32>
    %107 = tpu.matmul %106, %78, %cst_66 {dimension_numbers = #tpu.dot_dimension_numbers<[1], [0], [0], [1], [0, 0, 1, 1], [], []>} : vector<64x32xf32>, vector<32x32xf32>, vector<64x32xf32> -> vector<64x32xf32>
    %c3 = arith.constant 3 : index
    %c0_67 = arith.constant 0 : index
    %c0_68 = arith.constant 0 : index
    %108 = vector.load %arg2[%c3, %c0_67, %c0_68] : memref<4x32x32xf32, #tpu.memory_space<vmem>>, vector<1x32x32xf32>
    %109 = vector.shape_cast %108 : vector<1x32x32xf32> to vector<32x32xf32>
    %c3_69 = arith.constant 3 : index
    %c0_70 = arith.constant 0 : index
    %c0_71 = arith.constant 0 : index
    %110 = vector.load %arg3[%c3_69, %c0_70, %c0_71] : memref<4x32x32xf32, #tpu.memory_space<vmem>>, vector<1x32x32xf32>
    %111 = vector.shape_cast %110 : vector<1x32x32xf32> to vector<32x32xf32>
    %c3_72 = arith.constant 3 : index
    %c0_73 = arith.constant 0 : index
    %c0_74 = arith.constant 0 : index
    %112 = vector.load %arg4[%c3_72, %c0_73, %c0_74] : memref<4x32x32xf32, #tpu.memory_space<vmem>>, vector<1x32x32xf32>
    %113 = vector.shape_cast %112 : vector<1x32x32xf32> to vector<32x32xf32>
    %cst_75 = arith.constant dense<0.000000e+00> : vector<64x32xf32>
    %114 = tpu.matmul %107, %109, %cst_75 {dimension_numbers = #tpu.dot_dimension_numbers<[1], [0], [0], [1], [0, 0, 1, 1], [], []>} : vector<64x32xf32>, vector<32x32xf32>, vector<64x32xf32> -> vector<64x32xf32>
    %c3_76 = arith.constant 3 : index
    %c0_77 = arith.constant 0 : index
    %c0_78 = arith.constant 0 : index
    %115 = vector.load %arg6[%c3_76, %c0_77, %c0_78] : memref<4x8x32xf32, #tpu.memory_space<vmem>>, vector<1x8x32xf32>
    %116 = vector.shape_cast %115 : vector<1x8x32xf32> to vector<8x32xf32>
    %117 = vector.extract_strided_slice %114 {offsets = [0, 0], sizes = [8, 32], strides = [1, 1]} : vector<64x32xf32> to vector<8x32xf32>
    %cst_79 = arith.constant dense<0.000000e+00> : vector<8x32xf32>
    %118 = tpu.matmul %116, %111, %cst_79 {dimension_numbers = #tpu.dot_dimension_numbers<[1], [0], [0], [1], [0, 0, 1, 1], [], []>} : vector<8x32xf32>, vector<32x32xf32>, vector<8x32xf32> -> vector<8x32xf32>
    %119 = arith.addf %117, %118 : vector<8x32xf32>
    %120 = vector.extract_strided_slice %114 {offsets = [8, 0], sizes = [8, 32], strides = [1, 1]} : vector<64x32xf32> to vector<8x32xf32>
    %cst_80 = arith.constant dense<0.000000e+00> : vector<8x32xf32>
    %121 = tpu.matmul %119, %111, %cst_80 {dimension_numbers = #tpu.dot_dimension_numbers<[1], [0], [0], [1], [0, 0, 1, 1], [], []>} : vector<8x32xf32>, vector<32x32xf32>, vector<8x32xf32> -> vector<8x32xf32>
    %122 = arith.addf %120, %121 : vector<8x32xf32>
    %123 = vector.extract_strided_slice %114 {offsets = [16, 0], sizes = [8, 32], strides = [1, 1]} : vector<64x32xf32> to vector<8x32xf32>
    %cst_81 = arith.constant dense<0.000000e+00> : vector<8x32xf32>
    %124 = tpu.matmul %122, %111, %cst_81 {dimension_numbers = #tpu.dot_dimension_numbers<[1], [0], [0], [1], [0, 0, 1, 1], [], []>} : vector<8x32xf32>, vector<32x32xf32>, vector<8x32xf32> -> vector<8x32xf32>
    %125 = arith.addf %123, %124 : vector<8x32xf32>
    %126 = vector.extract_strided_slice %114 {offsets = [24, 0], sizes = [8, 32], strides = [1, 1]} : vector<64x32xf32> to vector<8x32xf32>
    %cst_82 = arith.constant dense<0.000000e+00> : vector<8x32xf32>
    %127 = tpu.matmul %125, %111, %cst_82 {dimension_numbers = #tpu.dot_dimension_numbers<[1], [0], [0], [1], [0, 0, 1, 1], [], []>} : vector<8x32xf32>, vector<32x32xf32>, vector<8x32xf32> -> vector<8x32xf32>
    %128 = arith.addf %126, %127 : vector<8x32xf32>
    %129 = vector.extract_strided_slice %114 {offsets = [32, 0], sizes = [8, 32], strides = [1, 1]} : vector<64x32xf32> to vector<8x32xf32>
    %cst_83 = arith.constant dense<0.000000e+00> : vector<8x32xf32>
    %130 = tpu.matmul %128, %111, %cst_83 {dimension_numbers = #tpu.dot_dimension_numbers<[1], [0], [0], [1], [0, 0, 1, 1], [], []>} : vector<8x32xf32>, vector<32x32xf32>, vector<8x32xf32> -> vector<8x32xf32>
    %131 = arith.addf %129, %130 : vector<8x32xf32>
    %132 = vector.extract_strided_slice %114 {offsets = [40, 0], sizes = [8, 32], strides = [1, 1]} : vector<64x32xf32> to vector<8x32xf32>
    %cst_84 = arith.constant dense<0.000000e+00> : vector<8x32xf32>
    %133 = tpu.matmul %131, %111, %cst_84 {dimension_numbers = #tpu.dot_dimension_numbers<[1], [0], [0], [1], [0, 0, 1, 1], [], []>} : vector<8x32xf32>, vector<32x32xf32>, vector<8x32xf32> -> vector<8x32xf32>
    %134 = arith.addf %132, %133 : vector<8x32xf32>
    %135 = vector.extract_strided_slice %114 {offsets = [48, 0], sizes = [8, 32], strides = [1, 1]} : vector<64x32xf32> to vector<8x32xf32>
    %cst_85 = arith.constant dense<0.000000e+00> : vector<8x32xf32>
    %136 = tpu.matmul %134, %111, %cst_85 {dimension_numbers = #tpu.dot_dimension_numbers<[1], [0], [0], [1], [0, 0, 1, 1], [], []>} : vector<8x32xf32>, vector<32x32xf32>, vector<8x32xf32> -> vector<8x32xf32>
    %137 = arith.addf %135, %136 : vector<8x32xf32>
    %138 = vector.extract_strided_slice %114 {offsets = [56, 0], sizes = [8, 32], strides = [1, 1]} : vector<64x32xf32> to vector<8x32xf32>
    %cst_86 = arith.constant dense<0.000000e+00> : vector<8x32xf32>
    %139 = tpu.matmul %137, %111, %cst_86 {dimension_numbers = #tpu.dot_dimension_numbers<[1], [0], [0], [1], [0, 0, 1, 1], [], []>} : vector<8x32xf32>, vector<32x32xf32>, vector<8x32xf32> -> vector<8x32xf32>
    %140 = arith.addf %138, %139 : vector<8x32xf32>
    %141 = tpu.concatenate %119, %122, %125, %128, %131, %134, %137, %140 in 0 : vector<8x32xf32>, vector<8x32xf32>, vector<8x32xf32>, vector<8x32xf32>, vector<8x32xf32>, vector<8x32xf32>, vector<8x32xf32>, vector<8x32xf32> -> vector<64x32xf32>
    %cst_87 = arith.constant dense<0.000000e+00> : vector<64x32xf32>
    %142 = tpu.matmul %141, %113, %cst_87 {dimension_numbers = #tpu.dot_dimension_numbers<[1], [0], [0], [1], [0, 0, 1, 1], [], []>} : vector<64x32xf32>, vector<32x32xf32>, vector<64x32xf32> -> vector<64x32xf32>
    %c0_88 = arith.constant 0 : index
    %c0_89 = arith.constant 0 : index
    %143 = vector.load %arg5[%c0_88, %c0_89] : memref<32x16xf32, #tpu.memory_space<vmem>>, vector<32x16xf32>
    %cst_90 = arith.constant dense<0.000000e+00> : vector<64x16xf32>
    %144 = tpu.matmul %142, %143, %cst_90 {dimension_numbers = #tpu.dot_dimension_numbers<[1], [0], [0], [1], [0, 0, 1, 1], [], []>} : vector<64x32xf32>, vector<32x16xf32>, vector<64x16xf32> -> vector<64x16xf32>
    %145 = vector.extract_strided_slice %144 {offsets = [0, 0], sizes = [8, 16], strides = [1, 1]} : vector<64x16xf32> to vector<8x16xf32>
    %146 = vector.extract_strided_slice %144 {offsets = [8, 0], sizes = [8, 16], strides = [1, 1]} : vector<64x16xf32> to vector<8x16xf32>
    %147 = vector.extract_strided_slice %144 {offsets = [16, 0], sizes = [8, 16], strides = [1, 1]} : vector<64x16xf32> to vector<8x16xf32>
    %148 = vector.extract_strided_slice %144 {offsets = [24, 0], sizes = [8, 16], strides = [1, 1]} : vector<64x16xf32> to vector<8x16xf32>
    %149 = vector.extract_strided_slice %144 {offsets = [32, 0], sizes = [8, 16], strides = [1, 1]} : vector<64x16xf32> to vector<8x16xf32>
    %150 = vector.extract_strided_slice %144 {offsets = [40, 0], sizes = [8, 16], strides = [1, 1]} : vector<64x16xf32> to vector<8x16xf32>
    %151 = vector.extract_strided_slice %144 {offsets = [48, 0], sizes = [8, 16], strides = [1, 1]} : vector<64x16xf32> to vector<8x16xf32>
    %152 = vector.extract_strided_slice %144 {offsets = [56, 0], sizes = [8, 16], strides = [1, 1]} : vector<64x16xf32> to vector<8x16xf32>
    %153 = arith.maximumf %145, %146 : vector<8x16xf32>
    %154 = arith.maximumf %153, %147 : vector<8x16xf32>
    %155 = arith.maximumf %154, %148 : vector<8x16xf32>
    %156 = arith.maximumf %155, %149 : vector<8x16xf32>
    %157 = arith.maximumf %156, %150 : vector<8x16xf32>
    %158 = arith.maximumf %157, %151 : vector<8x16xf32>
    %159 = arith.maximumf %158, %152 : vector<8x16xf32>
    %160 = arith.subf %145, %159 : vector<8x16xf32>
    %161 = math.exp %160 : vector<8x16xf32>
    %162 = arith.subf %146, %159 : vector<8x16xf32>
    %163 = math.exp %162 : vector<8x16xf32>
    %164 = arith.subf %147, %159 : vector<8x16xf32>
    %165 = math.exp %164 : vector<8x16xf32>
    %166 = arith.subf %148, %159 : vector<8x16xf32>
    %167 = math.exp %166 : vector<8x16xf32>
    %168 = arith.subf %149, %159 : vector<8x16xf32>
    %169 = math.exp %168 : vector<8x16xf32>
    %170 = arith.subf %150, %159 : vector<8x16xf32>
    %171 = math.exp %170 : vector<8x16xf32>
    %172 = arith.subf %151, %159 : vector<8x16xf32>
    %173 = math.exp %172 : vector<8x16xf32>
    %174 = arith.subf %152, %159 : vector<8x16xf32>
    %175 = math.exp %174 : vector<8x16xf32>
    %176 = arith.addf %161, %163 : vector<8x16xf32>
    %177 = arith.addf %176, %165 : vector<8x16xf32>
    %178 = arith.addf %177, %167 : vector<8x16xf32>
    %179 = arith.addf %178, %169 : vector<8x16xf32>
    %180 = arith.addf %179, %171 : vector<8x16xf32>
    %181 = arith.addf %180, %173 : vector<8x16xf32>
    %182 = arith.addf %181, %175 : vector<8x16xf32>
    %183 = tpu.reciprocal %182 : vector<8x16xf32> -> vector<8x16xf32>
    %184 = arith.mulf %161, %183 : vector<8x16xf32>
    %185 = arith.mulf %163, %183 : vector<8x16xf32>
    %186 = arith.mulf %165, %183 : vector<8x16xf32>
    %187 = arith.mulf %167, %183 : vector<8x16xf32>
    %188 = arith.mulf %169, %183 : vector<8x16xf32>
    %189 = arith.mulf %171, %183 : vector<8x16xf32>
    %190 = arith.mulf %173, %183 : vector<8x16xf32>
    %191 = arith.mulf %175, %183 : vector<8x16xf32>
    %192 = tpu.concatenate %184, %185, %186, %187, %188, %189, %190, %191 in 0 : vector<8x16xf32>, vector<8x16xf32>, vector<8x16xf32>, vector<8x16xf32>, vector<8x16xf32>, vector<8x16xf32>, vector<8x16xf32>, vector<8x16xf32> -> vector<64x16xf32>
    %c0_91 = arith.constant 0 : index
    %c0_92 = arith.constant 0 : index
    %193 = vector.load %arg7[%c0_91, %c0_92] : memref<64x16xf32, #tpu.memory_space<vmem>>, vector<64x16xf32>
    tpu.vector_store %arg7[%c0_91, %c0_92], %192 {strides = array<i32>} : memref<64x16xf32, #tpu.memory_space<vmem>>, vector<64x16xf32>,
    return
  }
}

</mosaic_0001>

<llo_original>
// kernel: tpu_custom_call.1
$region0: #{tpu_custom_call.1}
  #allocation0 [shape = 'u32[]', space=smem, size = 0x4, offset = 0x4, fixed_abs, tag = 'smem constant byte address 0x4 - core index']
  #allocation1 [shape = 'u32[144,128]{1,0:T(1,128)}', space=vmem, size = 0x12000, scoped, tag = 'internal scratch']
  %s0 = inlined_call_operand.vmem [shape: f32[64,16], index: 0, kind: input, shape index: {}]
  %s1 = inlined_call_operand.hbm [shape: f32[16,32], index: 1, kind: input, shape index: {}]
  %s2 = inlined_call_operand.vmem [shape: f32[4,32,32], index: 2, kind: input, shape index: {}]
  %s3 = inlined_call_operand.hbm [shape: f32[4,32,32], index: 3, kind: input, shape index: {}]
  %s4 = inlined_call_operand.hbm [shape: f32[4,32,32], index: 4, kind: input, shape index: {}]
  %s5 = inlined_call_operand.vmem [shape: f32[32,16], index: 5, kind: input, shape index: {}]
  %s6 = inlined_call_operand.hbm [shape: f32[4,8,32], index: 6, kind: input, shape index: {}]
  %s7 = inlined_call_operand.vmem [shape: f32[64,16], index: 7, kind: output, shape index: {}]
  %s8 = sld [smem:[#allocation0]]
  $region54: #{tpu_custom_call.1} parent=0
    _
  %s10 = ssub.s32 1, %s8
  %s11 = scalar_select 0, %s10, %s8
  $region1: #{tpu_custom_call.1} parent=0
    #allocation2 [shape = 'u8[8192]{0}', space=vmem, size = 0x2000, scoped, tag = 'input window, operand 1, single buffered']
    #allocation3 [shape = 's32[1]{0}', space=sflag, size = 0x4, scoped, tag = 'scoped memory for tpu_custom_call.1']
    #allocation4 [shape = 'u8[65536]{0}', space=vmem, size = 0x10000, scoped, tag = 'input window, operand 3, single buffered']
    #allocation5 [shape = 's32[1]{0}', space=sflag, size = 0x4, scoped, tag = 'scoped memory for tpu_custom_call.1']
    #allocation6 [shape = 'u8[65536]{0}', space=vmem, size = 0x10000, scoped, tag = 'input window, operand 4, single buffered']
    #allocation7 [shape = 'u8[16384]{0}', space=vmem, size = 0x4000, scoped, tag = 'input window, operand 6, single buffered']
    #allocation8 [shape = 's32[1]{0}', space=sflag, size = 0x4, scoped, tag = 'scoped memory for tpu_custom_call.1']
    %12 = vsyncpa [#allocation3], 0
    %13 = vsyncpa [#allocation5], 0
    %14 = vsyncpa [#allocation8], 0
    // Predicated region
    $region2: #{tpu_custom_call.1} parent=1 // pred_check
      _
    $region3: #{tpu_custom_call.1} parent=1 // pred_check_branch
      %16 = sbr.rel (0) target = $region5
    $region4: #{tpu_custom_call.1} parent=1 // pred_region
      _
    $region5: #{tpu_custom_call.1} parent=1 // pred_fallthru
      _
    // Predicated region
    $region6: #{tpu_custom_call.1} parent=1 // pred_check
      _
    $region7: #{tpu_custom_call.1} parent=1 // pred_check_branch
      %18 = sbr.rel (0) target = $region9
    $region8: #{tpu_custom_call.1} parent=1 // pred_region
      %s20 = ssub.s32 256, 256
      %21 = vsyncadd [#allocation3], %s20
      %s22 = sshll.u32 [#allocation2], 4
      %s23 = int_to_ptr.vmem [resolvable:$true] %s22
      %28 = dma.hbm_to_vmem [thread:$0]  %s1, 256, %s23, [#allocation3], 128, 128, 8
    $region9: #{tpu_custom_call.1} parent=1 // pred_fallthru
      _
    // Predicated region
    $region10: #{tpu_custom_call.1} parent=1 // pred_check
      _
    $region11: #{tpu_custom_call.1} parent=1 // pred_check_branch
      %30 = sbr.rel (0) target = $region13
    $region12: #{tpu_custom_call.1} parent=1 // pred_region
      _
    $region13: #{tpu_custom_call.1} parent=1 // pred_fallthru
      _
    // Predicated region
    $region14: #{tpu_custom_call.1} parent=1 // pred_check
      _
    $region15: #{tpu_custom_call.1} parent=1 // pred_check_branch
      %32 = sbr.rel (0) target = $region17
    $region16: #{tpu_custom_call.1} parent=1 // pred_region
      %s34 = ssub.s32 2048, 2048
      %35 = vsyncadd [#allocation5], %s34
      %s36 = sshll.u32 [#allocation4], 4
      %s37 = int_to_ptr.vmem [resolvable:$true] %s36
      %42 = dma.hbm_to_vmem [thread:$0]  %s3, 2048, %s37, [#allocation5], 128, 128, 8
    $region17: #{tpu_custom_call.1} parent=1 // pred_fallthru
      _
    // Predicated region
    $region18: #{tpu_custom_call.1} parent=1 // pred_check
      _
    $region19: #{tpu_custom_call.1} parent=1 // pred_check_branch
      %44 = sbr.rel (0) target = $region21
    $region20: #{tpu_custom_call.1} parent=1 // pred_region
      %s46 = ssub.s32 2048, 2048
      %47 = vsyncadd [#allocation5], %s46
      %s48 = sshll.u32 [#allocation6], 4
      %s49 = int_to_ptr.vmem [resolvable:$true] %s48
      %54 = dma.hbm_to_vmem [thread:$0]  %s4, 2048, %s49, [#allocation5], 128, 128, 8
    $region21: #{tpu_custom_call.1} parent=1 // pred_fallthru
      _
    // Predicated region
    $region22: #{tpu_custom_call.1} parent=1 // pred_check
      _
    $region23: #{tpu_custom_call.1} parent=1 // pred_check_branch
      %56 = sbr.rel (0) target = $region25
    $region24: #{tpu_custom_call.1} parent=1 // pred_region
      _
    $region25: #{tpu_custom_call.1} parent=1 // pred_fallthru
      _
    // Predicated region
    $region26: #{tpu_custom_call.1} parent=1 // pred_check
      _
    $region27: #{tpu_custom_call.1} parent=1 // pred_check_branch
      %58 = sbr.rel (0) target = $region29
    $region28: #{tpu_custom_call.1} parent=1 // pred_region
      %s60 = ssub.s32 512, 512
      %61 = vsyncadd [#allocation8], %s60
      %s62 = sshll.u32 [#allocation7], 4
      %s63 = int_to_ptr.vmem [resolvable:$true] %s62
      %68 = dma.hbm_to_vmem [thread:$0]  %s6, 512, %s63, [#allocation8], 128, 128, 8
    $region29: #{tpu_custom_call.1} parent=1 // pred_fallthru
      _
    // Predicated region
    $region30: #{tpu_custom_call.1} parent=1 // pred_check
      _
    $region31: #{tpu_custom_call.1} parent=1 // pred_check_branch
      %70 = sbr.rel (0) target = $region33
    $region32: #{tpu_custom_call.1} parent=1 // pred_region
      %71 = dma.done [#allocation3], 256
    $region33: #{tpu_custom_call.1} parent=1 // pred_fallthru
      _
    // Predicated region
    $region34: #{tpu_custom_call.1} parent=1 // pred_check
      _
    $region35: #{tpu_custom_call.1} parent=1 // pred_check_branch
      %73 = sbr.rel (0) target = $region37
    $region36: #{tpu_custom_call.1} parent=1 // pred_region
      %74 = dma.done [#allocation5], 2048
    $region37: #{tpu_custom_call.1} parent=1 // pred_fallthru
      _
    // Predicated region
    $region38: #{tpu_custom_call.1} parent=1 // pred_check
      _
    $region39: #{tpu_custom_call.1} parent=1 // pred_check_branch
      %76 = sbr.rel (0) target = $region41
    $region40: #{tpu_custom_call.1} parent=1 // pred_region
      %77 = dma.done [#allocation5], 2048
    $region41: #{tpu_custom_call.1} parent=1 // pred_fallthru
      _
    // Predicated region
    $region42: #{tpu_custom_call.1} parent=1 // pred_check
      _
    $region43: #{tpu_custom_call.1} parent=1 // pred_check_branch
      %79 = sbr.rel (0) target = $region45
    $region44: #{tpu_custom_call.1} parent=1 // pred_region
      %80 = dma.done [#allocation8], 512
    $region45: #{tpu_custom_call.1} parent=1 // pred_fallthru
      _
    %v81 = vld [vmem:[%s0] sm:$0xff]
    %v82 = vld [vmem:[%s0 + $0x8] sm:$0xff]
    %v83 = vld [vmem:[%s0 + $0x10] sm:$0xff]
    %v84 = vld [vmem:[%s0 + $0x18] sm:$0xff]
    %v85 = vld [vmem:[%s0 + $0x20] sm:$0xff]
    %v86 = vld [vmem:[%s0 + $0x28] sm:$0xff]
    %v87 = vld [vmem:[%s0 + $0x30] sm:$0xff]
    %v88 = vld [vmem:[%s0 + $0x38] sm:$0xff]
    %v89 = vld [vmem:[#allocation2] sm:$0xff]
    %v90 = vld [vmem:[#allocation2 + $0x8] sm:$0xff]
    %vm91 = vcmask 130048
    %v93 = vsel %vm91, %v81, 0
    %v96 = vsel %vm91, %v82, 0
    %v99 = vsel %vm91, %v83, 0
    %v102 = vsel %vm91, %v84, 0
    %v105 = vsel %vm91, %v85, 0
    %v108 = vsel %vm91, %v86, 0
    %v111 = vsel %vm91, %v87, 0
    %v114 = vsel %vm91, %v88, 0
    %116 = vmatprep.subr.mxu0 0.0
    %117 = vmatpush1.msra.mxu0 %v89
    %118 = vmatprep.subr.mxu0 0.0
    %119 = vmatpush1.msra.mxu0 %v90
    %120 = vmatprep.subr.mxu0 0.0
    %121 = vmatpush1.msra.mxu0 0.0
    %122 = vmatprep.subr.mxu0 0.0
    %123 = vmatpush1.msra.mxu0 0.0
    %124 = vmatprep.subr.mxu0 0.0
    %125 = vmatpush1.msra.mxu0 0.0
    %126 = vmatprep.subr.mxu0 0.0
    %127 = vmatpush1.msra.mxu0 0.0
    %128 = vmatprep.subr.mxu0 0.0
    %129 = vmatpush1.msra.mxu0 0.0
    %130 = vmatprep.subr.mxu0 0.0
    %131 = vmatpush1.msra.mxu0 0.0
    %132 = vmatprep.subr.mxu0 0.0
    %133 = vmatpush1.msra.mxu0 0.0
    %134 = vmatprep.subr.mxu0 0.0
    %135 = vmatpush1.msra.mxu0 0.0
    %136 = vmatprep.subr.mxu0 0.0
    %137 = vmatpush1.msra.mxu0 0.0
    %138 = vmatprep.subr.mxu0 0.0
    %139 = vmatpush1.msra.mxu0 0.0
    %140 = vmatprep.subr.mxu0 0.0
    %141 = vmatpush1.msra.mxu0 0.0
    %142 = vmatprep.subr.mxu0 0.0
    %143 = vmatpush1.msra.mxu0 0.0
    %144 = vmatprep.subr.mxu0 0.0
    %145 = vmatpush1.msra.mxu0 0.0
    %146 = vmatprep.subr.mxu0 0.0
    %147 = vmatpush1.msra.mxu0 0.0
    %148 = vmatprep.subr.mxu0 0.0
    %149 = vmatpush1.msra.mxu0 0.0
    %150 = vmatprep.subr.mxu0 0.0
    %151 = vmatpush1.msra.mxu0 0.0
    %152 = vmatprep.subr.mxu0 0.0
    %153 = vmatpush1.msra.mxu0 0.0
    %154 = vmatprep.subr.mxu0 0.0
    %155 = vmatpush1.msra.mxu0 0.0
    %156 = vmatprep.subr.mxu0 0.0
    %157 = vmatpush1.msra.mxu0 0.0
    %158 = vmatprep.subr.mxu0 0.0
    %159 = vmatpush1.msra.mxu0 0.0
    %160 = vmatprep.subr.mxu0 0.0
    %161 = vmatpush1.msra.mxu0 0.0
    %162 = vmatprep.subr.mxu0 0.0
    %163 = vmatpush1.msra.mxu0 0.0
    %164 = vmatprep.subr.mxu0 0.0
    %165 = vmatpush1.msra.mxu0 0.0
    %166 = vmatprep.subr.mxu0 0.0
    %167 = vmatpush1.msra.mxu0 0.0
    %168 = vmatprep.subr.mxu0 0.0
    %169 = vmatpush1.msra.mxu0 0.0
    %170 = vmatprep.subr.mxu0 0.0
    %171 = vmatpush1.msra.mxu0 0.0
    %172 = vmatprep.subr.mxu0 0.0
    %173 = vmatpush1.msra.mxu0 0.0
    %174 = vmatprep.subr.mxu0 0.0
    %175 = vmatpush1.msra.mxu0 0.0
    %176 = vmatprep.subr.mxu0 0.0
    %177 = vmatpush1.msra.mxu0 0.0
    %178 = vmatprep.subr.mxu0 0.0
    %179 = vmatpush1.msra.mxu0 0.0
    %180 = vmatprep.mubr.f32.mxu0 0.0
    %181 = vmatmul.mubr.f32.gmra.mrb[0].mxu0 %v93
    %v182 = vpop.f32.mrb[0].mxu0
    %v183 = vadd.f32 0.0, %v182
    %v184 = vpop.f32.mrb[0].mxu0
    %185 = vmatprep.mubr.f32.mxu0 0.0
    %186 = vmatmul.mubr.f32.gmra.mrb[0].mxu0 %v96
    %v187 = vpop.f32.mrb[0].mxu0
    %v188 = vadd.f32 0.0, %v187
    %v189 = vpop.f32.mrb[0].mxu0
    %190 = vmatprep.mubr.f32.mxu0 0.0
    %191 = vmatmul.mubr.f32.gmra.mrb[0].mxu0 %v99
    %v192 = vpop.f32.mrb[0].mxu0
    %v193 = vadd.f32 0.0, %v192
    %v194 = vpop.f32.mrb[0].mxu0
    %195 = vmatprep.mubr.f32.mxu0 0.0
    %196 = vmatmul.mubr.f32.gmra.mrb[0].mxu0 %v102
    %v197 = vpop.f32.mrb[0].mxu0
    %v198 = vadd.f32 0.0, %v197
    %v199 = vpop.f32.mrb[0].mxu0
    %200 = vmatprep.mubr.f32.mxu0 0.0
    %201 = vmatmul.mubr.f32.gmra.mrb[0].mxu0 %v105
    %v202 = vpop.f32.mrb[0].mxu0
    %v203 = vadd.f32 0.0, %v202
    %v204 = vpop.f32.mrb[0].mxu0
    %205 = vmatprep.mubr.f32.mxu0 0.0
    %206 = vmatmul.mubr.f32.gmra.mrb[0].mxu0 %v108
    %v207 = vpop.f32.mrb[0].mxu0
    %v208 = vadd.f32 0.0, %v207
    %v209 = vpop.f32.mrb[0].mxu0
    %210 = vmatprep.mubr.f32.mxu0 0.0
    %211 = vmatmul.mubr.f32.gmra.mrb[0].mxu0 %v111
    %v212 = vpop.f32.mrb[0].mxu0
    %v213 = vadd.f32 0.0, %v212
    %v214 = vpop.f32.mrb[0].mxu0
    %215 = vmatprep.mubr.f32.mxu0 0.0
    %216 = vmatmul.mubr.f32.gmra.mrb[0].mxu0 %v114
    %v217 = vpop.f32.mrb[0].mxu0
    %v218 = vadd.f32 0.0, %v217
    %v219 = vpop.f32.mrb[0].mxu0
    %220 = vdwg.mxu0
    %v221 = vld [vmem:[%s2] sm:$0xff]
    %v222 = vld [vmem:[%s2 + $0x8] sm:$0xff]
    %v223 = vld [vmem:[%s2 + $0x10] sm:$0xff]
    %v224 = vld [vmem:[%s2 + $0x18] sm:$0xff]
    %v225 = vld [vmem:[#allocation4] sm:$0xff]
    %v226 = vld [vmem:[#allocation4 + $0x8] sm:$0xff]
    %v227 = vld [vmem:[#allocation4 + $0x10] sm:$0xff]
    %v228 = vld [vmem:[#allocation4 + $0x18] sm:$0xff]
    %v229 = vld [vmem:[#allocation6] sm:$0xff]
    %v230 = vld [vmem:[#allocation6 + $0x8] sm:$0xff]
    %v231 = vld [vmem:[#allocation6 + $0x10] sm:$0xff]
    %v232 = vld [vmem:[#allocation6 + $0x18] sm:$0xff]
    %vm233 = vcmask 261120
    %v235 = vsel %vm233, %v183, 0
    %v238 = vsel %vm233, %v188, 0
    %v241 = vsel %vm233, %v193, 0
    %v244 = vsel %vm233, %v198, 0
    %v247 = vsel %vm233, %v203, 0
    %v250 = vsel %vm233, %v208, 0
    %v253 = vsel %vm233, %v213, 0
    %v256 = vsel %vm233, %v218, 0
    %258 = vmatprep.subr.mxu0 0.0
    %259 = vmatpush1.msra.mxu0 %v221
    %260 = vmatprep.subr.mxu0 0.0
    %261 = vmatpush1.msra.mxu0 %v222
    %262 = vmatprep.subr.mxu0 0.0
    %263 = vmatpush1.msra.mxu0 %v223
    %264 = vmatprep.subr.mxu0 0.0
    %265 = vmatpush1.msra.mxu0 %v224
    %266 = vmatprep.subr.mxu0 0.0
    %267 = vmatpush1.msra.mxu0 0.0
    %268 = vmatprep.subr.mxu0 0.0
    %269 = vmatpush1.msra.mxu0 0.0
    %270 = vmatprep.subr.mxu0 0.0
    %271 = vmatpush1.msra.mxu0 0.0
    %272 = vmatprep.subr.mxu0 0.0
    %273 = vmatpush1.msra.mxu0 0.0
    %274 = vmatprep.subr.mxu0 0.0
    %275 = vmatpush1.msra.mxu0 0.0
    %276 = vmatprep.subr.mxu0 0.0
    %277 = vmatpush1.msra.mxu0 0.0
    %278 = vmatprep.subr.mxu0 0.0
    %279 = vmatpush1.msra.mxu0 0.0
    %280 = vmatprep.subr.mxu0 0.0
    %281 = vmatpush1.msra.mxu0 0.0
    %282 = vmatprep.subr.mxu0 0.0
    %283 = vmatpush1.msra.mxu0 0.0
    %284 = vmatprep.subr.mxu0 0.0
    %285 = vmatpush1.msra.mxu0 0.0
    %286 = vmatprep.subr.mxu0 0.0
    %287 = vmatpush1.msra.mxu0 0.0
    %288 = vmatprep.subr.mxu0 0.0
    %289 = vmatpush1.msra.mxu0 0.0
    %290 = vmatprep.subr.mxu0 0.0
    %291 = vmatpush1.msra.mxu0 0.0
    %292 = vmatprep.subr.mxu0 0.0
    %293 = vmatpush1.msra.mxu0 0.0
    %294 = vmatprep.subr.mxu0 0.0
    %295 = vmatpush1.msra.mxu0 0.0
    %296 = vmatprep.subr.mxu0 0.0
    %297 = vmatpush1.msra.mxu0 0.0
    %298 = vmatprep.subr.mxu0 0.0
    %299 = vmatpush1.msra.mxu0 0.0
    %300 = vmatprep.subr.mxu0 0.0
    %301 = vmatpush1.msra.mxu0 0.0
    %302 = vmatprep.subr.mxu0 0.0
    %303 = vmatpush1.msra.mxu0 0.0
    %304 = vmatprep.subr.mxu0 0.0
    %305 = vmatpush1.msra.mxu0 0.0
    %306 = vmatprep.subr.mxu0 0.0
    %307 = vmatpush1.msra.mxu0 0.0
    %308 = vmatprep.subr.mxu0 0.0
    %309 = vmatpush1.msra.mxu0 0.0
    %310 = vmatprep.subr.mxu0 0.0
    %311 = vmatpush1.msra.mxu0 0.0
    %312 = vmatprep.subr.mxu0 0.0
    %313 = vmatpush1.msra.mxu0 0.0
    %314 = vmatprep.subr.mxu0 0.0
    %315 = vmatpush1.msra.mxu0 0.0
    %316 = vmatprep.subr.mxu0 0.0
    %317 = vmatpush1.msra.mxu0 0.0
    %318 = vmatprep.subr.mxu0 0.0
    %319 = vmatpush1.msra.mxu0 0.0
    %320 = vmatprep.subr.mxu0 0.0
    %321 = vmatpush1.msra.mxu0 0.0
    %322 = vmatprep.mubr.f32.mxu0 0.0
    %323 = vmatmul.mubr.f32.gmra.mrb[0].mxu0 %v235
    %v324 = vpop.f32.mrb[0].mxu0
    %v325 = vadd.f32 0.0, %v324
    %v326 = vpop.f32.mrb[0].mxu0
    %327 = vmatprep.mubr.f32.mxu0 0.0
    %328 = vmatmul.mubr.f32.gmra.mrb[0].mxu0 %v238
    %v329 = vpop.f32.mrb[0].mxu0
    %v330 = vadd.f32 0.0, %v329
    %v331 = vpop.f32.mrb[0].mxu0
    %332 = vmatprep.mubr.f32.mxu0 0.0
    %333 = vmatmul.mubr.f32.gmra.mrb[0].mxu0 %v241
    %v334 = vpop.f32.mrb[0].mxu0
    %v335 = vadd.f32 0.0, %v334
    %v336 = vpop.f32.mrb[0].mxu0
    %337 = vmatprep.mubr.f32.mxu0 0.0
    %338 = vmatmul.mubr.f32.gmra.mrb[0].mxu0 %v244
    %v339 = vpop.f32.mrb[0].mxu0
    %v340 = vadd.f32 0.0, %v339
    %v341 = vpop.f32.mrb[0].mxu0
    %342 = vmatprep.mubr.f32.mxu0 0.0
    %343 = vmatmul.mubr.f32.gmra.mrb[0].mxu0 %v247
    %v344 = vpop.f32.mrb[0].mxu0
    %v345 = vadd.f32 0.0, %v344
    %v346 = vpop.f32.mrb[0].mxu0
    %347 = vmatprep.mubr.f32.mxu0 0.0
    %348 = vmatmul.mubr.f32.gmra.mrb[0].mxu0 %v250
    %v349 = vpop.f32.mrb[0].mxu0
    %v350 = vadd.f32 0.0, %v349
    %v351 = vpop.f32.mrb[0].mxu0
    %352 = vmatprep.mubr.f32.mxu0 0.0
    %353 = vmatmul.mubr.f32.gmra.mrb[0].mxu0 %v253
    %v354 = vpop.f32.mrb[0].mxu0
    %v355 = vadd.f32 0.0, %v354
    %v356 = vpop.f32.mrb[0].mxu0
    %357 = vmatprep.mubr.f32.mxu0 0.0
    %358 = vmatmul.mubr.f32.gmra.mrb[0].mxu0 %v256
    %v359 = vpop.f32.mrb[0].mxu0
    %v360 = vadd.f32 0.0, %v359
    %v361 = vpop.f32.mrb[0].mxu0
    %362 = vdwg.mxu0
    %v363 = vld [vmem:[#allocation7] sm:$0xff]
    %v365 = vsel %vm233, %v363, 0
    %367 = vmatprep.subr.mxu0 0.0
    %368 = vmatpush1.msra.mxu0 %v225
    %369 = vmatprep.subr.mxu0 0.0
    %370 = vmatpush1.msra.mxu0 %v226
    %371 = vmatprep.subr.mxu0 0.0
    %372 = vmatpush1.msra.mxu0 %v227
    %373 = vmatprep.subr.mxu0 0.0
    %374 = vmatpush1.msra.mxu0 %v228
    %375 = vmatprep.subr.mxu0 0.0
    %376 = vmatpush1.msra.mxu0 0.0
    %377 = vmatprep.subr.mxu0 0.0
    %378 = vmatpush1.msra.mxu0 0.0
    %379 = vmatprep.subr.mxu0 0.0
    %380 = vmatpush1.msra.mxu0 0.0
    %381 = vmatprep.subr.mxu0 0.0
    %382 = vmatpush1.msra.mxu0 0.0
    %383 = vmatprep.subr.mxu0 0.0
    %384 = vmatpush1.msra.mxu0 0.0
    %385 = vmatprep.subr.mxu0 0.0
    %386 = vmatpush1.msra.mxu0 0.0
    %387 = vmatprep.subr.mxu0 0.0
    %388 = vmatpush1.msra.mxu0 0.0
    %389 = vmatprep.subr.mxu0 0.0
    %390 = vmatpush1.msra.mxu0 0.0
    %391 = vmatprep.subr.mxu0 0.0
    %392 = vmatpush1.msra.mxu0 0.0
    %393 = vmatprep.subr.mxu0 0.0
    %394 = vmatpush1.msra.mxu0 0.0
    %395 = vmatprep.subr.mxu0 0.0
    %396 = vmatpush1.msra.mxu0 0.0
    %397 = vmatprep.subr.mxu0 0.0
    %398 = vmatpush1.msra.mxu0 0.0
    %399 = vmatprep.subr.mxu0 0.0
    %400 = vmatpush1.msra.mxu0 0.0
    %401 = vmatprep.subr.mxu0 0.0
    %402 = vmatpush1.msra.mxu0 0.0
    %403 = vmatprep.subr.mxu0 0.0
    %404 = vmatpush1.msra.mxu0 0.0
    %405 = vmatprep.subr.mxu0 0.0
    %406 = vmatpush1.msra.mxu0 0.0
    %407 = vmatprep.subr.mxu0 0.0
    %408 = vmatpush1.msra.mxu0 0.0
    %409 = vmatprep.subr.mxu0 0.0
    %410 = vmatpush1.msra.mxu0 0.0
    %411 = vmatprep.subr.mxu0 0.0
    %412 = vmatpush1.msra.mxu0 0.0
    %413 = vmatprep.subr.mxu0 0.0
    %414 = vmatpush1.msra.mxu0 0.0
    %415 = vmatprep.subr.mxu0 0.0
    %416 = vmatpush1.msra.mxu0 0.0
    %417 = vmatprep.subr.mxu0 0.0
    %418 = vmatpush1.msra.mxu0 0.0
    %419 = vmatprep.subr.mxu0 0.0
    %420 = vmatpush1.msra.mxu0 0.0
    %421 = vmatprep.subr.mxu0 0.0
    %422 = vmatpush1.msra.mxu0 0.0
    %423 = vmatprep.subr.mxu0 0.0
    %424 = vmatpush1.msra.mxu0 0.0
    %425 = vmatprep.subr.mxu0 0.0
    %426 = vmatpush1.msra.mxu0 0.0
    %427 = vmatprep.subr.mxu0 0.0
    %428 = vmatpush1.msra.mxu0 0.0
    %429 = vmatprep.subr.mxu0 0.0
    %430 = vmatpush1.msra.mxu0 0.0
    %431 = vmatprep.mubr.f32.mxu0 0.0
    %432 = vmatmul.mubr.f32.gmra.mrb[0].mxu0 %v365
    %v433 = vpop.f32.mrb[0].mxu0
    %v434 = vadd.f32 0.0, %v433
    %v435 = vpop.f32.mrb[0].mxu0
    %436 = vdwg.mxu0
    %v437 = vadd.f32 %v325, %v434
    %v439 = vsel %vm233, %v437, 0
    %441 = vmatprep.subr.mxu0 0.0
    %442 = vmatpush1.msra.mxu0 %v225
    %443 = vmatprep.subr.mxu0 0.0
    %444 = vmatpush1.msra.mxu0 %v226
    %445 = vmatprep.subr.mxu0 0.0
    %446 = vmatpush1.msra.mxu0 %v227
    %447 = vmatprep.subr.mxu0 0.0
    %448 = vmatpush1.msra.mxu0 %v228
    %449 = vmatprep.subr.mxu0 0.0
    %450 = vmatpush1.msra.mxu0 0.0
    %451 = vmatprep.subr.mxu0 0.0
    %452 = vmatpush1.msra.mxu0 0.0
    %453 = vmatprep.subr.mxu0 0.0
    %454 = vmatpush1.msra.mxu0 0.0
    %455 = vmatprep.subr.mxu0 0.0
    %456 = vmatpush1.msra.mxu0 0.0
    %457 = vmatprep.subr.mxu0 0.0
    %458 = vmatpush1.msra.mxu0 0.0
    %459 = vmatprep.subr.mxu0 0.0
    %460 = vmatpush1.msra.mxu0 0.0
    %461 = vmatprep.subr.mxu0 0.0
    %462 = vmatpush1.msra.mxu0 0.0
    %463 = vmatprep.subr.mxu0 0.0
    %464 = vmatpush1.msra.mxu0 0.0
    %465 = vmatprep.subr.mxu0 0.0
    %466 = vmatpush1.msra.mxu0 0.0
    %467 = vmatprep.subr.mxu0 0.0
    %468 = vmatpush1.msra.mxu0 0.0
    %469 = vmatprep.subr.mxu0 0.0
    %470 = vmatpush1.msra.mxu0 0.0
    %471 = vmatprep.subr.mxu0 0.0
    %472 = vmatpush1.msra.mxu0 0.0
    %473 = vmatprep.subr.mxu0 0.0
    %474 = vmatpush1.msra.mxu0 0.0
    %475 = vmatprep.subr.mxu0 0.0
    %476 = vmatpush1.msra.mxu0 0.0
    %477 = vmatprep.subr.mxu0 0.0
    %478 = vmatpush1.msra.mxu0 0.0
    %479 = vmatprep.subr.mxu0 0.0
    %480 = vmatpush1.msra.mxu0 0.0
    %481 = vmatprep.subr.mxu0 0.0
    %482 = vmatpush1.msra.mxu0 0.0
    %483 = vmatprep.subr.mxu0 0.0
    %484 = vmatpush1.msra.mxu0 0.0
    %485 = vmatprep.subr.mxu0 0.0
    %486 = vmatpush1.msra.mxu0 0.0
    %487 = vmatprep.subr.mxu0 0.0
    %488 = vmatpush1.msra.mxu0 0.0
    %489 = vmatprep.subr.mxu0 0.0
    %490 = vmatpush1.msra.mxu0 0.0
    %491 = vmatprep.subr.mxu0 0.0
    %492 = vmatpush1.msra.mxu0 0.0
    %493 = vmatprep.subr.mxu0 0.0
    %494 = vmatpush1.msra.mxu0 0.0
    %495 = vmatprep.subr.mxu0 0.0
    %496 = vmatpush1.msra.mxu0 0.0
    %497 = vmatprep.subr.mxu0 0.0
    %498 = vmatpush1.msra.mxu0 0.0
    %499 = vmatprep.subr.mxu0 0.0
    %500 = vmatpush1.msra.mxu0 0.0
    %501 = vmatprep.subr.mxu0 0.0
    %502 = vmatpush1.msra.mxu0 0.0
    %503 = vmatprep.subr.mxu0 0.0
    %504 = vmatpush1.msra.mxu0 0.0
    %505 = vmatprep.mubr.f32.mxu0 0.0
    %506 = vmatmul.mubr.f32.gmra.mrb[0].mxu0 %v439
    %v507 = vpop.f32.mrb[0].mxu0
    %v508 = vadd.f32 0.0, %v507
    %v509 = vpop.f32.mrb[0].mxu0
    %510 = vdwg.mxu0
    %v511 = vadd.f32 %v330, %v508
    %v513 = vsel %vm233, %v511, 0
    %515 = vmatprep.subr.mxu0 0.0
    %516 = vmatpush1.msra.mxu0 %v225
    %517 = vmatprep.subr.mxu0 0.0
    %518 = vmatpush1.msra.mxu0 %v226
    %519 = vmatprep.subr.mxu0 0.0
    %520 = vmatpush1.msra.mxu0 %v227
    %521 = vmatprep.subr.mxu0 0.0
    %522 = vmatpush1.msra.mxu0 %v228
    %523 = vmatprep.subr.mxu0 0.0
    %524 = vmatpush1.msra.mxu0 0.0
    %525 = vmatprep.subr.mxu0 0.0
    %526 = vmatpush1.msra.mxu0 0.0
    %527 = vmatprep.subr.mxu0 0.0
    %528 = vmatpush1.msra.mxu0 0.0
    %529 = vmatprep.subr.mxu0 0.0
    %530 = vmatpush1.msra.mxu0 0.0
    %531 = vmatprep.subr.mxu0 0.0
    %532 = vmatpush1.msra.mxu0 0.0
    %533 = vmatprep.subr.mxu0 0.0
    %534 = vmatpush1.msra.mxu0 0.0
    %535 = vmatprep.subr.mxu0 0.0
    %536 = vmatpush1.msra.mxu0 0.0
    %537 = vmatprep.subr.mxu0 0.0
    %538 = vmatpush1.msra.mxu0 0.0
    %539 = vmatprep.subr.mxu0 0.0
    %540 = vmatpush1.msra.mxu0 0.0
    %541 = vmatprep.subr.mxu0 0.0
    %542 = vmatpush1.msra.mxu0 0.0
    %543 = vmatprep.subr.mxu0 0.0
    %544 = vmatpush1.msra.mxu0 0.0
    %545 = vmatprep.subr.mxu0 0.0
    %546 = vmatpush1.msra.mxu0 0.0
    %547 = vmatprep.subr.mxu0 0.0
    %548 = vmatpush1.msra.mxu0 0.0
    %549 = vmatprep.subr.mxu0 0.0
    %550 = vmatpush1.msra.mxu0 0.0
    %551 = vmatprep.subr.mxu0 0.0
    %552 = vmatpush1.msra.mxu0 0.0
    %553 = vmatprep.subr.mxu0 0.0
    %554 = vmatpush1.msra.mxu0 0.0
    %555 = vmatprep.subr.mxu0 0.0
    %556 = vmatpush1.msra.mxu0 0.0
    %557 = vmatprep.subr.mxu0 0.0
    %558 = vmatpush1.msra.mxu0 0.0
    %559 = vmatprep.subr.mxu0 0.0
    %560 = vmatpush1.msra.mxu0 0.0
    %561 = vmatprep.subr.mxu0 0.0
    %562 = vmatpush1.msra.mxu0 0.0
    %563 = vmatprep.subr.mxu0 0.0
    %564 = vmatpush1.msra.mxu0 0.0
    %565 = vmatprep.subr.mxu0 0.0
    %566 = vmatpush1.msra.mxu0 0.0
    %567 = vmatprep.subr.mxu0 0.0
    %568 = vmatpush1.msra.mxu0 0.0
    %569 = vmatprep.subr.mxu0 0.0
    %570 = vmatpush1.msra.mxu0 0.0
    %571 = vmatprep.subr.mxu0 0.0
    %572 = vmatpush1.msra.mxu0 0.0
    %573 = vmatprep.subr.mxu0 0.0
    %574 = vmatpush1.msra.mxu0 0.0
    %575 = vmatprep.subr.mxu0 0.0
    %576 = vmatpush1.msra.mxu0 0.0
    %577 = vmatprep.subr.mxu0 0.0
    %578 = vmatpush1.msra.mxu0 0.0
    %579 = vmatprep.mubr.f32.mxu0 0.0
    %580 = vmatmul.mubr.f32.gmra.mrb[0].mxu0 %v513
    %v581 = vpop.f32.mrb[0].mxu0
    %v582 = vadd.f32 0.0, %v581
    %v583 = vpop.f32.mrb[0].mxu0
    %584 = vdwg.mxu0
    %v585 = vadd.f32 %v335, %v582
    %v587 = vsel %vm233, %v585, 0
    %589 = vmatprep.subr.mxu0 0.0
    %590 = vmatpush1.msra.mxu0 %v225
    %591 = vmatprep.subr.mxu0 0.0
    %592 = vmatpush1.msra.mxu0 %v226
    %593 = vmatprep.subr.mxu0 0.0
    %594 = vmatpush1.msra.mxu0 %v227
    %595 = vmatprep.subr.mxu0 0.0
    %596 = vmatpush1.msra.mxu0 %v228
    %597 = vmatprep.subr.mxu0 0.0
    %598 = vmatpush1.msra.mxu0 0.0
    %599 = vmatprep.subr.mxu0 0.0
    %600 = vmatpush1.msra.mxu0 0.0
    %601 = vmatprep.subr.mxu0 0.0
    %602 = vmatpush1.msra.mxu0 0.0
    %603 = vmatprep.subr.mxu0 0.0
    %604 = vmatpush1.msra.mxu0 0.0
    %605 = vmatprep.subr.mxu0 0.0
    %606 = vmatpush1.msra.mxu0 0.0
    %607 = vmatprep.subr.mxu0 0.0
    %608 = vmatpush1.msra.mxu0 0.0
    %609 = vmatprep.subr.mxu0 0.0
    %610 = vmatpush1.msra.mxu0 0.0
    %611 = vmatprep.subr.mxu0 0.0
    %612 = vmatpush1.msra.mxu0 0.0
    %613 = vmatprep.subr.mxu0 0.0
    %614 = vmatpush1.msra.mxu0 0.0
    %615 = vmatprep.subr.mxu0 0.0
    %616 = vmatpush1.msra.mxu0 0.0
    %617 = vmatprep.subr.mxu0 0.0
    %618 = vmatpush1.msra.mxu0 0.0
    %619 = vmatprep.subr.mxu0 0.0
    %620 = vmatpush1.msra.mxu0 0.0
    %621 = vmatprep.subr.mxu0 0.0
    %622 = vmatpush1.msra.mxu0 0.0
    %623 = vmatprep.subr.mxu0 0.0
    %624 = vmatpush1.msra.mxu0 0.0
    %625 = vmatprep.subr.mxu0 0.0
    %626 = vmatpush1.msra.mxu0 0.0
    %627 = vmatprep.subr.mxu0 0.0
    %628 = vmatpush1.msra.mxu0 0.0
    %629 = vmatprep.subr.mxu0 0.0
    %630 = vmatpush1.msra.mxu0 0.0
    %631 = vmatprep.subr.mxu0 0.0
    %632 = vmatpush1.msra.mxu0 0.0
    %633 = vmatprep.subr.mxu0 0.0
    %634 = vmatpush1.msra.mxu0 0.0
    %635 = vmatprep.subr.mxu0 0.0
    %636 = vmatpush1.msra.mxu0 0.0
    %637 = vmatprep.subr.mxu0 0.0
    %638 = vmatpush1.msra.mxu0 0.0
    %639 = vmatprep.subr.mxu0 0.0
    %640 = vmatpush1.msra.mxu0 0.0
    %641 = vmatprep.subr.mxu0 0.0
    %642 = vmatpush1.msra.mxu0 0.0
    %643 = vmatprep.subr.mxu0 0.0
    %644 = vmatpush1.msra.mxu0 0.0
    %645 = vmatprep.subr.mxu0 0.0
    %646 = vmatpush1.msra.mxu0 0.0
    %647 = vmatprep.subr.mxu0 0.0
    %648 = vmatpush1.msra.mxu0 0.0
    %649 = vmatprep.subr.mxu0 0.0
    %650 = vmatpush1.msra.mxu0 0.0
    %651 = vmatprep.subr.mxu0 0.0
    %652 = vmatpush1.msra.mxu0 0.0
    %653 = vmatprep.mubr.f32.mxu0 0.0
    %654 = vmatmul.mubr.f32.gmra.mrb[0].mxu0 %v587
    %v655 = vpop.f32.mrb[0].mxu0
    %v656 = vadd.f32 0.0, %v655
    %v657 = vpop.f32.mrb[0].mxu0
    %658 = vdwg.mxu0
    %v659 = vadd.f32 %v340, %v656
    %v661 = vsel %vm233, %v659, 0
    %663 = vmatprep.subr.mxu0 0.0
    %664 = vmatpush1.msra.mxu0 %v225
    %665 = vmatprep.subr.mxu0 0.0
    %666 = vmatpush1.msra.mxu0 %v226
    %667 = vmatprep.subr.mxu0 0.0
    %668 = vmatpush1.msra.mxu0 %v227
    %669 = vmatprep.subr.mxu0 0.0
    %670 = vmatpush1.msra.mxu0 %v228
    %671 = vmatprep.subr.mxu0 0.0
    %672 = vmatpush1.msra.mxu0 0.0
    %673 = vmatprep.subr.mxu0 0.0
    %674 = vmatpush1.msra.mxu0 0.0
    %675 = vmatprep.subr.mxu0 0.0
    %676 = vmatpush1.msra.mxu0 0.0
    %677 = vmatprep.subr.mxu0 0.0
    %678 = vmatpush1.msra.mxu0 0.0
    %679 = vmatprep.subr.mxu0 0.0
    %680 = vmatpush1.msra.mxu0 0.0
    %681 = vmatprep.subr.mxu0 0.0
    %682 = vmatpush1.msra.mxu0 0.0
    %683 = vmatprep.subr.mxu0 0.0
    %684 = vmatpush1.msra.mxu0 0.0
    %685 = vmatprep.subr.mxu0 0.0
    %686 = vmatpush1.msra.mxu0 0.0
    %687 = vmatprep.subr.mxu0 0.0
    %688 = vmatpush1.msra.mxu0 0.0
    %689 = vmatprep.subr.mxu0 0.0
    %690 = vmatpush1.msra.mxu0 0.0
    %691 = vmatprep.subr.mxu0 0.0
    %692 = vmatpush1.msra.mxu0 0.0
    %693 = vmatprep.subr.mxu0 0.0
    %694 = vmatpush1.msra.mxu0 0.0
    %695 = vmatprep.subr.mxu0 0.0
    %696 = vmatpush1.msra.mxu0 0.0
    %697 = vmatprep.subr.mxu0 0.0
    %698 = vmatpush1.msra.mxu0 0.0
    %699 = vmatprep.subr.mxu0 0.0
    %700 = vmatpush1.msra.mxu0 0.0
    %701 = vmatprep.subr.mxu0 0.0
    %702 = vmatpush1.msra.mxu0 0.0
    %703 = vmatprep.subr.mxu0 0.0
    %704 = vmatpush1.msra.mxu0 0.0
    %705 = vmatprep.subr.mxu0 0.0
    %706 = vmatpush1.msra.mxu0 0.0
    %707 = vmatprep.subr.mxu0 0.0
    %708 = vmatpush1.msra.mxu0 0.0
    %709 = vmatprep.subr.mxu0 0.0
    %710 = vmatpush1.msra.mxu0 0.0
    %711 = vmatprep.subr.mxu0 0.0
    %712 = vmatpush1.msra.mxu0 0.0
    %713 = vmatprep.subr.mxu0 0.0
    %714 = vmatpush1.msra.mxu0 0.0
    %715 = vmatprep.subr.mxu0 0.0
    %716 = vmatpush1.msra.mxu0 0.0
    %717 = vmatprep.subr.mxu0 0.0
    %718 = vmatpush1.msra.mxu0 0.0
    %719 = vmatprep.subr.mxu0 0.0
    %720 = vmatpush1.msra.mxu0 0.0
    %721 = vmatprep.subr.mxu0 0.0
    %722 = vmatpush1.msra.mxu0 0.0
    %723 = vmatprep.subr.mxu0 0.0
    %724 = vmatpush1.msra.mxu0 0.0
    %725 = vmatprep.subr.mxu0 0.0
    %726 = vmatpush1.msra.mxu0 0.0
    %727 = vmatprep.mubr.f32.mxu0 0.0
    %728 = vmatmul.mubr.f32.gmra.mrb[0].mxu0 %v661
    %v729 = vpop.f32.mrb[0].mxu0
    %v730 = vadd.f32 0.0, %v729
    %v731 = vpop.f32.mrb[0].mxu0
    %732 = vdwg.mxu0
    %v733 = vadd.f32 %v345, %v730
    %v735 = vsel %vm233, %v733, 0
    %737 = vmatprep.subr.mxu0 0.0
    %738 = vmatpush1.msra.mxu0 %v225
    %739 = vmatprep.subr.mxu0 0.0
    %740 = vmatpush1.msra.mxu0 %v226
    %741 = vmatprep.subr.mxu0 0.0
    %742 = vmatpush1.msra.mxu0 %v227
    %743 = vmatprep.subr.mxu0 0.0
    %744 = vmatpush1.msra.mxu0 %v228
    %745 = vmatprep.subr.mxu0 0.0
    %746 = vmatpush1.msra.mxu0 0.0
    %747 = vmatprep.subr.mxu0 0.0
    %748 = vmatpush1.msra.mxu0 0.0
    %749 = vmatprep.subr.mxu0 0.0
    %750 = vmatpush1.msra.mxu0 0.0
    %751 = vmatprep.subr.mxu0 0.0
    %752 = vmatpush1.msra.mxu0 0.0
    %753 = vmatprep.subr.mxu0 0.0
    %754 = vmatpush1.msra.mxu0 0.0
    %755 = vmatprep.subr.mxu0 0.0
    %756 = vmatpush1.msra.mxu0 0.0
    %757 = vmatprep.subr.mxu0 0.0
    %758 = vmatpush1.msra.mxu0 0.0
    %759 = vmatprep.subr.mxu0 0.0
    %760 = vmatpush1.msra.mxu0 0.0
    %761 = vmatprep.subr.mxu0 0.0
    %762 = vmatpush1.msra.mxu0 0.0
    %763 = vmatprep.subr.mxu0 0.0
    %764 = vmatpush1.msra.mxu0 0.0
    %765 = vmatprep.subr.mxu0 0.0
    %766 = vmatpush1.msra.mxu0 0.0
    %767 = vmatprep.subr.mxu0 0.0
    %768 = vmatpush1.msra.mxu0 0.0
    %769 = vmatprep.subr.mxu0 0.0
    %770 = vmatpush1.msra.mxu0 0.0
    %771 = vmatprep.subr.mxu0 0.0
    %772 = vmatpush1.msra.mxu0 0.0
    %773 = vmatprep.subr.mxu0 0.0
    %774 = vmatpush1.msra.mxu0 0.0
    %775 = vmatprep.subr.mxu0 0.0
    %776 = vmatpush1.msra.mxu0 0.0
    %777 = vmatprep.subr.mxu0 0.0
    %778 = vmatpush1.msra.mxu0 0.0
    %779 = vmatprep.subr.mxu0 0.0
    %780 = vmatpush1.msra.mxu0 0.0
    %781 = vmatprep.subr.mxu0 0.0
    %782 = vmatpush1.msra.mxu0 0.0
    %783 = vmatprep.subr.mxu0 0.0
    %784 = vmatpush1.msra.mxu0 0.0
    %785 = vmatprep.subr.mxu0 0.0
    %786 = vmatpush1.msra.mxu0 0.0
    %787 = vmatprep.subr.mxu0 0.0
    %788 = vmatpush1.msra.mxu0 0.0
    %789 = vmatprep.subr.mxu0 0.0
    %790 = vmatpush1.msra.mxu0 0.0
    %791 = vmatprep.subr.mxu0 0.0
    %792 = vmatpush1.msra.mxu0 0.0
    %793 = vmatprep.subr.mxu0 0.0
    %794 = vmatpush1.msra.mxu0 0.0
    %795 = vmatprep.subr.mxu0 0.0
    %796 = vmatpush1.msra.mxu0 0.0
    %797 = vmatprep.subr.mxu0 0.0
    %798 = vmatpush1.msra.mxu0 0.0
    %799 = vmatprep.subr.mxu0 0.0
    %800 = vmatpush1.msra.mxu0 0.0
    %801 = vmatprep.mubr.f32.mxu0 0.0
    %802 = vmatmul.mubr.f32.gmra.mrb[0].mxu0 %v735
    %v803 = vpop.f32.mrb[0].mxu0
    %v804 = vadd.f32 0.0, %v803
    %v805 = vpop.f32.mrb[0].mxu0
    %806 = vdwg.mxu0
    %v807 = vadd.f32 %v350, %v804
    %v809 = vsel %vm233, %v807, 0
    %811 = vmatprep.subr.mxu0 0.0
    %812 = vmatpush1.msra.mxu0 %v225
    %813 = vmatprep.subr.mxu0 0.0
    %814 = vmatpush1.msra.mxu0 %v226
    %815 = vmatprep.subr.mxu0 0.0
    %816 = vmatpush1.msra.mxu0 %v227
    %817 = vmatprep.subr.mxu0 0.0
    %818 = vmatpush1.msra.mxu0 %v228
    %819 = vmatprep.subr.mxu0 0.0
    %820 = vmatpush1.msra.mxu0 0.0
    %821 = vmatprep.subr.mxu0 0.0
    %822 = vmatpush1.msra.mxu0 0.0
    %823 = vmatprep.subr.mxu0 0.0
    %824 = vmatpush1.msra.mxu0 0.0
    %825 = vmatprep.subr.mxu0 0.0
    %826 = vmatpush1.msra.mxu0 0.0
    %827 = vmatprep.subr.mxu0 0.0
    %828 = vmatpush1.msra.mxu0 0.0
    %829 = vmatprep.subr.mxu0 0.0
    %830 = vmatpush1.msra.mxu0 0.0
    %831 = vmatprep.subr.mxu0 0.0
    %832 = vmatpush1.msra.mxu0 0.0
    %833 = vmatprep.subr.mxu0 0.0
    %834 = vmatpush1.msra.mxu0 0.0
    %835 = vmatprep.subr.mxu0 0.0
    %836 = vmatpush1.msra.mxu0 0.0
    %837 = vmatprep.subr.mxu0 0.0
    %838 = vmatpush1.msra.mxu0 0.0
    %839 = vmatprep.subr.mxu0 0.0
    %840 = vmatpush1.msra.mxu0 0.0
    %841 = vmatprep.subr.mxu0 0.0
    %842 = vmatpush1.msra.mxu0 0.0
    %843 = vmatprep.subr.mxu0 0.0
    %844 = vmatpush1.msra.mxu0 0.0
    %845 = vmatprep.subr.mxu0 0.0
    %846 = vmatpush1.msra.mxu0 0.0
    %847 = vmatprep.subr.mxu0 0.0
    %848 = vmatpush1.msra.mxu0 0.0
    %849 = vmatprep.subr.mxu0 0.0
    %850 = vmatpush1.msra.mxu0 0.0
    %851 = vmatprep.subr.mxu0 0.0
    %852 = vmatpush1.msra.mxu0 0.0
    %853 = vmatprep.subr.mxu0 0.0
    %854 = vmatpush1.msra.mxu0 0.0
    %855 = vmatprep.subr.mxu0 0.0
    %856 = vmatpush1.msra.mxu0 0.0
    %857 = vmatprep.subr.mxu0 0.0
    %858 = vmatpush1.msra.mxu0 0.0
    %859 = vmatprep.subr.mxu0 0.0
    %860 = vmatpush1.msra.mxu0 0.0
    %861 = vmatprep.subr.mxu0 0.0
    %862 = vmatpush1.msra.mxu0 0.0
    %863 = vmatprep.subr.mxu0 0.0
    %864 = vmatpush1.msra.mxu0 0.0
    %865 = vmatprep.subr.mxu0 0.0
    %866 = vmatpush1.msra.mxu0 0.0
    %867 = vmatprep.subr.mxu0 0.0
    %868 = vmatpush1.msra.mxu0 0.0
    %869 = vmatprep.subr.mxu0 0.0
    %870 = vmatpush1.msra.mxu0 0.0
    %871 = vmatprep.subr.mxu0 0.0
    %872 = vmatpush1.msra.mxu0 0.0
    %873 = vmatprep.subr.mxu0 0.0
    %874 = vmatpush1.msra.mxu0 0.0
    %875 = vmatprep.mubr.f32.mxu0 0.0
    %876 = vmatmul.mubr.f32.gmra.mrb[0].mxu0 %v809
    %v877 = vpop.f32.mrb[0].mxu0
    %v878 = vadd.f32 0.0, %v877
    %v879 = vpop.f32.mrb[0].mxu0
    %880 = vdwg.mxu0
    %v881 = vadd.f32 %v355, %v878
    %v883 = vsel %vm233, %v881, 0
    %885 = vmatprep.subr.mxu0 0.0
    %886 = vmatpush1.msra.mxu0 %v225
    %887 = vmatprep.subr.mxu0 0.0
    %888 = vmatpush1.msra.mxu0 %v226
    %889 = vmatprep.subr.mxu0 0.0
    %890 = vmatpush1.msra.mxu0 %v227
    %891 = vmatprep.subr.mxu0 0.0
    %892 = vmatpush1.msra.mxu0 %v228
    %893 = vmatprep.subr.mxu0 0.0
    %894 = vmatpush1.msra.mxu0 0.0
    %895 = vmatprep.subr.mxu0 0.0
    %896 = vmatpush1.msra.mxu0 0.0
    %897 = vmatprep.subr.mxu0 0.0
    %898 = vmatpush1.msra.mxu0 0.0
    %899 = vmatprep.subr.mxu0 0.0
    %900 = vmatpush1.msra.mxu0 0.0
    %901 = vmatprep.subr.mxu0 0.0
    %902 = vmatpush1.msra.mxu0 0.0
    %903 = vmatprep.subr.mxu0 0.0
    %904 = vmatpush1.msra.mxu0 0.0
    %905 = vmatprep.subr.mxu0 0.0
    %906 = vmatpush1.msra.mxu0 0.0
    %907 = vmatprep.subr.mxu0 0.0
    %908 = vmatpush1.msra.mxu0 0.0
    %909 = vmatprep.subr.mxu0 0.0
    %910 = vmatpush1.msra.mxu0 0.0
    %911 = vmatprep.subr.mxu0 0.0
    %912 = vmatpush1.msra.mxu0 0.0
    %913 = vmatprep.subr.mxu0 0.0
    %914 = vmatpush1.msra.mxu0 0.0
    %915 = vmatprep.subr.mxu0 0.0
    %916 = vmatpush1.msra.mxu0 0.0
    %917 = vmatprep.subr.mxu0 0.0
    %918 = vmatpush1.msra.mxu0 0.0
    %919 = vmatprep.subr.mxu0 0.0
    %920 = vmatpush1.msra.mxu0 0.0
    %921 = vmatprep.subr.mxu0 0.0
    %922 = vmatpush1.msra.mxu0 0.0
    %923 = vmatprep.subr.mxu0 0.0
    %924 = vmatpush1.msra.mxu0 0.0
    %925 = vmatprep.subr.mxu0 0.0
    %926 = vmatpush1.msra.mxu0 0.0
    %927 = vmatprep.subr.mxu0 0.0
    %928 = vmatpush1.msra.mxu0 0.0
    %929 = vmatprep.subr.mxu0 0.0
    %930 = vmatpush1.msra.mxu0 0.0
    %931 = vmatprep.subr.mxu0 0.0
    %932 = vmatpush1.msra.mxu0 0.0
    %933 = vmatprep.subr.mxu0 0.0
    %934 = vmatpush1.msra.mxu0 0.0
    %935 = vmatprep.subr.mxu0 0.0
    %936 = vmatpush1.msra.mxu0 0.0
    %937 = vmatprep.subr.mxu0 0.0
    %938 = vmatpush1.msra.mxu0 0.0
    %939 = vmatprep.subr.mxu0 0.0
    %940 = vmatpush1.msra.mxu0 0.0
    %941 = vmatprep.subr.mxu0 0.0
    %942 = vmatpush1.msra.mxu0 0.0
    %943 = vmatprep.subr.mxu0 0.0
    %944 = vmatpush1.msra.mxu0 0.0
    %945 = vmatprep.subr.mxu0 0.0
    %946 = vmatpush1.msra.mxu0 0.0
    %947 = vmatprep.subr.mxu0 0.0
    %948 = vmatpush1.msra.mxu0 0.0
    %949 = vmatprep.mubr.f32.mxu0 0.0
    %950 = vmatmul.mubr.f32.gmra.mrb[0].mxu0 %v883
    %v951 = vpop.f32.mrb[0].mxu0
    %v952 = vadd.f32 0.0, %v951
    %v953 = vpop.f32.mrb[0].mxu0
    %954 = vdwg.mxu0
    %v955 = vadd.f32 %v360, %v952
    %v957 = vsel %vm233, %v955, 0
    %959 = vmatprep.subr.mxu0 0.0
    %960 = vmatpush1.msra.mxu0 %v229
    %961 = vmatprep.subr.mxu0 0.0
    %962 = vmatpush1.msra.mxu0 %v230
    %963 = vmatprep.subr.mxu0 0.0
    %964 = vmatpush1.msra.mxu0 %v231
    %965 = vmatprep.subr.mxu0 0.0
    %966 = vmatpush1.msra.mxu0 %v232
    %967 = vmatprep.subr.mxu0 0.0
    %968 = vmatpush1.msra.mxu0 0.0
    %969 = vmatprep.subr.mxu0 0.0
    %970 = vmatpush1.msra.mxu0 0.0
    %971 = vmatprep.subr.mxu0 0.0
    %972 = vmatpush1.msra.mxu0 0.0
    %973 = vmatprep.subr.mxu0 0.0
    %974 = vmatpush1.msra.mxu0 0.0
    %975 = vmatprep.subr.mxu0 0.0
    %976 = vmatpush1.msra.mxu0 0.0
    %977 = vmatprep.subr.mxu0 0.0
    %978 = vmatpush1.msra.mxu0 0.0
    %979 = vmatprep.subr.mxu0 0.0
    %980 = vmatpush1.msra.mxu0 0.0
    %981 = vmatprep.subr.mxu0 0.0
    %982 = vmatpush1.msra.mxu0 0.0
    %983 = vmatprep.subr.mxu0 0.0
    %984 = vmatpush1.msra.mxu0 0.0
    %985 = vmatprep.subr.mxu0 0.0
    %986 = vmatpush1.msra.mxu0 0.0
    %987 = vmatprep.subr.mxu0 0.0
    %988 = vmatpush1.msra.mxu0 0.0
    %989 = vmatprep.subr.mxu0 0.0
    %990 = vmatpush1.msra.mxu0 0.0
    %991 = vmatprep.subr.mxu0 0.0
    %992 = vmatpush1.msra.mxu0 0.0
    %993 = vmatprep.subr.mxu0 0.0
    %994 = vmatpush1.msra.mxu0 0.0
    %995 = vmatprep.subr.mxu0 0.0
    %996 = vmatpush1.msra.mxu0 0.0
    %997 = vmatprep.subr.mxu0 0.0
    %998 = vmatpush1.msra.mxu0 0.0
    %999 = vmatprep.subr.mxu0 0.0
    %1000 = vmatpush1.msra.mxu0 0.0
    %1001 = vmatprep.subr.mxu0 0.0
    %1002 = vmatpush1.msra.mxu0 0.0
    %1003 = vmatprep.subr.mxu0 0.0
    %1004 = vmatpush1.msra.mxu0 0.0
    %1005 = vmatprep.subr.mxu0 0.0
    %1006 = vmatpush1.msra.mxu0 0.0
    %1007 = vmatprep.subr.mxu0 0.0
    %1008 = vmatpush1.msra.mxu0 0.0
    %1009 = vmatprep.subr.mxu0 0.0
    %1010 = vmatpush1.msra.mxu0 0.0
    %1011 = vmatprep.subr.mxu0 0.0
    %1012 = vmatpush1.msra.mxu0 0.0
    %1013 = vmatprep.subr.mxu0 0.0
    %1014 = vmatpush1.msra.mxu0 0.0
    %1015 = vmatprep.subr.mxu0 0.0
    %1016 = vmatpush1.msra.mxu0 0.0
    %1017 = vmatprep.subr.mxu0 0.0
    %1018 = vmatpush1.msra.mxu0 0.0
    %1019 = vmatprep.subr.mxu0 0.0
    %1020 = vmatpush1.msra.mxu0 0.0
    %1021 = vmatprep.subr.mxu0 0.0
    %1022 = vmatpush1.msra.mxu0 0.0
    %1023 = vmatprep.mubr.f32.mxu0 0.0
    %1024 = vmatmul.mubr.f32.gmra.mrb[0].mxu0 %v439
    %v1025 = vpop.f32.mrb[0].mxu0
    %v1026 = vadd.f32 0.0, %v1025
    %v1027 = vpop.f32.mrb[0].mxu0
    %1028 = vmatprep.mubr.f32.mxu0 0.0
    %1029 = vmatmul.mubr.f32.gmra.mrb[0].mxu0 %v513
    %v1030 = vpop.f32.mrb[0].mxu0
    %v1031 = vadd.f32 0.0, %v1030
    %v1032 = vpop.f32.mrb[0].mxu0
    %1033 = vmatprep.mubr.f32.mxu0 0.0
    %1034 = vmatmul.mubr.f32.gmra.mrb[0].mxu0 %v587
    %v1035 = vpop.f32.mrb[0].mxu0
    %v1036 = vadd.f32 0.0, %v1035
    %v1037 = vpop.f32.mrb[0].mxu0
    %1038 = vmatprep.mubr.f32.mxu0 0.0
    %1039 = vmatmul.mubr.f32.gmra.mrb[0].mxu0 %v661
    %v1040 = vpop.f32.mrb[0].mxu0
    %v1041 = vadd.f32 0.0, %v1040
    %v1042 = vpop.f32.mrb[0].mxu0
    %1043 = vmatprep.mubr.f32.mxu0 0.0
    %1044 = vmatmul.mubr.f32.gmra.mrb[0].mxu0 %v735
    %v1045 = vpop.f32.mrb[0].mxu0
    %v1046 = vadd.f32 0.0, %v1045
    %v1047 = vpop.f32.mrb[0].mxu0
    %1048 = vmatprep.mubr.f32.mxu0 0.0
    %1049 = vmatmul.mubr.f32.gmra.mrb[0].mxu0 %v809
    %v1050 = vpop.f32.mrb[0].mxu0
    %v1051 = vadd.f32 0.0, %v1050
    %v1052 = vpop.f32.mrb[0].mxu0
    %1053 = vmatprep.mubr.f32.mxu0 0.0
    %1054 = vmatmul.mubr.f32.gmra.mrb[0].mxu0 %v883
    %v1055 = vpop.f32.mrb[0].mxu0
    %v1056 = vadd.f32 0.0, %v1055
    %v1057 = vpop.f32.mrb[0].mxu0
    %1058 = vmatprep.mubr.f32.mxu0 0.0
    %1059 = vmatmul.mubr.f32.gmra.mrb[0].mxu0 %v957
    %v1060 = vpop.f32.mrb[0].mxu0
    %v1061 = vadd.f32 0.0, %v1060
    %v1062 = vpop.f32.mrb[0].mxu0
    %1063 = vdwg.mxu0
    %s1064 = scalar_lea.vmem %s2, 32
    %v1065 = vld [vmem:[%s1064] sm:$0xff]
    %v1066 = vld [vmem:[%s1064 + $0x8] sm:$0xff]
    %v1067 = vld [vmem:[%s1064 + $0x10] sm:$0xff]
    %v1068 = vld [vmem:[%s1064 + $0x18] sm:$0xff]
    %s1069 = scalar_lea.vmem [#allocation4], 32
    %v1070 = vld [vmem:[%s1069] sm:$0xff]
    %v1071 = vld [vmem:[%s1069 + $0x8] sm:$0xff]
    %v1072 = vld [vmem:[%s1069 + $0x10] sm:$0xff]
    %v1073 = vld [vmem:[%s1069 + $0x18] sm:$0xff]
    %s1074 = scalar_lea.vmem [#allocation6], 32
    %v1075 = vld [vmem:[%s1074] sm:$0xff]
    %v1076 = vld [vmem:[%s1074 + $0x8] sm:$0xff]
    %v1077 = vld [vmem:[%s1074 + $0x10] sm:$0xff]
    %v1078 = vld [vmem:[%s1074 + $0x18] sm:$0xff]
    %v1080 = vsel %vm233, %v1026, 0
    %v1083 = vsel %vm233, %v1031, 0
    %v1086 = vsel %vm233, %v1036, 0
    %v1089 = vsel %vm233, %v1041, 0
    %v1092 = vsel %vm233, %v1046, 0
    %v1095 = vsel %vm233, %v1051, 0
    %v1098 = vsel %vm233, %v1056, 0
    %v1101 = vsel %vm233, %v1061, 0
    %1103 = vmatprep.subr.mxu0 0.0
    %1104 = vmatpush1.msra.mxu0 %v1065
    %1105 = vmatprep.subr.mxu0 0.0
    %1106 = vmatpush1.msra.mxu0 %v1066
    %1107 = vmatprep.subr.mxu0 0.0
    %1108 = vmatpush1.msra.mxu0 %v1067
    %1109 = vmatprep.subr.mxu0 0.0
    %1110 = vmatpush1.msra.mxu0 %v1068
    %1111 = vmatprep.subr.mxu0 0.0
    %1112 = vmatpush1.msra.mxu0 0.0
    %1113 = vmatprep.subr.mxu0 0.0
    %1114 = vmatpush1.msra.mxu0 0.0
    %1115 = vmatprep.subr.mxu0 0.0
    %1116 = vmatpush1.msra.mxu0 0.0
    %1117 = vmatprep.subr.mxu0 0.0
    %1118 = vmatpush1.msra.mxu0 0.0
    %1119 = vmatprep.subr.mxu0 0.0
    %1120 = vmatpush1.msra.mxu0 0.0
    %1121 = vmatprep.subr.mxu0 0.0
    %1122 = vmatpush1.msra.mxu0 0.0
    %1123 = vmatprep.subr.mxu0 0.0
    %1124 = vmatpush1.msra.mxu0 0.0
    %1125 = vmatprep.subr.mxu0 0.0
    %1126 = vmatpush1.msra.mxu0 0.0
    %1127 = vmatprep.subr.mxu0 0.0
    %1128 = vmatpush1.msra.mxu0 0.0
    %1129 = vmatprep.subr.mxu0 0.0
    %1130 = vmatpush1.msra.mxu0 0.0
    %1131 = vmatprep.subr.mxu0 0.0
    %1132 = vmatpush1.msra.mxu0 0.0
    %1133 = vmatprep.subr.mxu0 0.0
    %1134 = vmatpush1.msra.mxu0 0.0
    %1135 = vmatprep.subr.mxu0 0.0
    %1136 = vmatpush1.msra.mxu0 0.0
    %1137 = vmatprep.subr.mxu0 0.0
    %1138 = vmatpush1.msra.mxu0 0.0
    %1139 = vmatprep.subr.mxu0 0.0
    %1140 = vmatpush1.msra.mxu0 0.0
    %1141 = vmatprep.subr.mxu0 0.0
    %1142 = vmatpush1.msra.mxu0 0.0
    %1143 = vmatprep.subr.mxu0 0.0
    %1144 = vmatpush1.msra.mxu0 0.0
    %1145 = vmatprep.subr.mxu0 0.0
    %1146 = vmatpush1.msra.mxu0 0.0
    %1147 = vmatprep.subr.mxu0 0.0
    %1148 = vmatpush1.msra.mxu0 0.0
    %1149 = vmatprep.subr.mxu0 0.0
    %1150 = vmatpush1.msra.mxu0 0.0
    %1151 = vmatprep.subr.mxu0 0.0
    %1152 = vmatpush1.msra.mxu0 0.0
    %1153 = vmatprep.subr.mxu0 0.0
    %1154 = vmatpush1.msra.mxu0 0.0
    %1155 = vmatprep.subr.mxu0 0.0
    %1156 = vmatpush1.msra.mxu0 0.0
    %1157 = vmatprep.subr.mxu0 0.0
    %1158 = vmatpush1.msra.mxu0 0.0
    %1159 = vmatprep.subr.mxu0 0.0
    %1160 = vmatpush1.msra.mxu0 0.0
    %1161 = vmatprep.subr.mxu0 0.0
    %1162 = vmatpush1.msra.mxu0 0.0
    %1163 = vmatprep.subr.mxu0 0.0
    %1164 = vmatpush1.msra.mxu0 0.0
    %1165 = vmatprep.subr.mxu0 0.0
    %1166 = vmatpush1.msra.mxu0 0.0
    %1167 = vmatprep.mubr.f32.mxu0 0.0
    %1168 = vmatmul.mubr.f32.gmra.mrb[0].mxu0 %v1080
    %v1169 = vpop.f32.mrb[0].mxu0
    %v1170 = vadd.f32 0.0, %v1169
    %v1171 = vpop.f32.mrb[0].mxu0
    %1172 = vmatprep.mubr.f32.mxu0 0.0
    %1173 = vmatmul.mubr.f32.gmra.mrb[0].mxu0 %v1083
    %v1174 = vpop.f32.mrb[0].mxu0
    %v1175 = vadd.f32 0.0, %v1174
    %v1176 = vpop.f32.mrb[0].mxu0
    %1177 = vmatprep.mubr.f32.mxu0 0.0
    %1178 = vmatmul.mubr.f32.gmra.mrb[0].mxu0 %v1086
    %v1179 = vpop.f32.mrb[0].mxu0
    %v1180 = vadd.f32 0.0, %v1179
    %v1181 = vpop.f32.mrb[0].mxu0
    %1182 = vmatprep.mubr.f32.mxu0 0.0
    %1183 = vmatmul.mubr.f32.gmra.mrb[0].mxu0 %v1089
    %v1184 = vpop.f32.mrb[0].mxu0
    %v1185 = vadd.f32 0.0, %v1184
    %v1186 = vpop.f32.mrb[0].mxu0
    %1187 = vmatprep.mubr.f32.mxu0 0.0
    %1188 = vmatmul.mubr.f32.gmra.mrb[0].mxu0 %v1092
    %v1189 = vpop.f32.mrb[0].mxu0
    %v1190 = vadd.f32 0.0, %v1189
    %v1191 = vpop.f32.mrb[0].mxu0
    %1192 = vmatprep.mubr.f32.mxu0 0.0
    %1193 = vmatmul.mubr.f32.gmra.mrb[0].mxu0 %v1095
    %v1194 = vpop.f32.mrb[0].mxu0
    %v1195 = vadd.f32 0.0, %v1194
    %v1196 = vpop.f32.mrb[0].mxu0
    %1197 = vmatprep.mubr.f32.mxu0 0.0
    %1198 = vmatmul.mubr.f32.gmra.mrb[0].mxu0 %v1098
    %v1199 = vpop.f32.mrb[0].mxu0
    %v1200 = vadd.f32 0.0, %v1199
    %v1201 = vpop.f32.mrb[0].mxu0
    %1202 = vmatprep.mubr.f32.mxu0 0.0
    %1203 = vmatmul.mubr.f32.gmra.mrb[0].mxu0 %v1101
    %v1204 = vpop.f32.mrb[0].mxu0
    %v1205 = vadd.f32 0.0, %v1204
    %v1206 = vpop.f32.mrb[0].mxu0
    %1207 = vdwg.mxu0
    %s1208 = scalar_lea.vmem [#allocation7], 8
    %v1209 = vld [vmem:[%s1208] sm:$0xff]
    %v1211 = vsel %vm233, %v1209, 0
    %1213 = vmatprep.subr.mxu0 0.0
    %1214 = vmatpush1.msra.mxu0 %v1070
    %1215 = vmatprep.subr.mxu0 0.0
    %1216 = vmatpush1.msra.mxu0 %v1071
    %1217 = vmatprep.subr.mxu0 0.0
    %1218 = vmatpush1.msra.mxu0 %v1072
    %1219 = vmatprep.subr.mxu0 0.0
    %1220 = vmatpush1.msra.mxu0 %v1073
    %1221 = vmatprep.subr.mxu0 0.0
    %1222 = vmatpush1.msra.mxu0 0.0
    %1223 = vmatprep.subr.mxu0 0.0
    %1224 = vmatpush1.msra.mxu0 0.0
    %1225 = vmatprep.subr.mxu0 0.0
    %1226 = vmatpush1.msra.mxu0 0.0
    %1227 = vmatprep.subr.mxu0 0.0
    %1228 = vmatpush1.msra.mxu0 0.0
    %1229 = vmatprep.subr.mxu0 0.0
    %1230 = vmatpush1.msra.mxu0 0.0
    %1231 = vmatprep.subr.mxu0 0.0
    %1232 = vmatpush1.msra.mxu0 0.0
    %1233 = vmatprep.subr.mxu0 0.0
    %1234 = vmatpush1.msra.mxu0 0.0
    %1235 = vmatprep.subr.mxu0 0.0
    %1236 = vmatpush1.msra.mxu0 0.0
    %1237 = vmatprep.subr.mxu0 0.0
    %1238 = vmatpush1.msra.mxu0 0.0
    %1239 = vmatprep.subr.mxu0 0.0
    %1240 = vmatpush1.msra.mxu0 0.0
    %1241 = vmatprep.subr.mxu0 0.0
    %1242 = vmatpush1.msra.mxu0 0.0
    %1243 = vmatprep.subr.mxu0 0.0
    %1244 = vmatpush1.msra.mxu0 0.0
    %1245 = vmatprep.subr.mxu0 0.0
    %1246 = vmatpush1.msra.mxu0 0.0
    %1247 = vmatprep.subr.mxu0 0.0
    %1248 = vmatpush1.msra.mxu0 0.0
    %1249 = vmatprep.subr.mxu0 0.0
    %1250 = vmatpush1.msra.mxu0 0.0
    %1251 = vmatprep.subr.mxu0 0.0
    %1252 = vmatpush1.msra.mxu0 0.0
    %1253 = vmatprep.subr.mxu0 0.0
    %1254 = vmatpush1.msra.mxu0 0.0
    %1255 = vmatprep.subr.mxu0 0.0
    %1256 = vmatpush1.msra.mxu0 0.0
    %1257 = vmatprep.subr.mxu0 0.0
    %1258 = vmatpush1.msra.mxu0 0.0
    %1259 = vmatprep.subr.mxu0 0.0
    %1260 = vmatpush1.msra.mxu0 0.0
    %1261 = vmatprep.subr.mxu0 0.0
    %1262 = vmatpush1.msra.mxu0 0.0
    %1263 = vmatprep.subr.mxu0 0.0
    %1264 = vmatpush1.msra.mxu0 0.0
    %1265 = vmatprep.subr.mxu0 0.0
    %1266 = vmatpush1.msra.mxu0 0.0
    %1267 = vmatprep.subr.mxu0 0.0
    %1268 = vmatpush1.msra.mxu0 0.0
    %1269 = vmatprep.subr.mxu0 0.0
    %1270 = vmatpush1.msra.mxu0 0.0
    %1271 = vmatprep.subr.mxu0 0.0
    %1272 = vmatpush1.msra.mxu0 0.0
    %1273 = vmatprep.subr.mxu0 0.0
    %1274 = vmatpush1.msra.mxu0 0.0
    %1275 = vmatprep.subr.mxu0 0.0
    %1276 = vmatpush1.msra.mxu0 0.0
    %1277 = vmatprep.mubr.f32.mxu0 0.0
    %1278 = vmatmul.mubr.f32.gmra.mrb[0].mxu0 %v1211
    %v1279 = vpop.f32.mrb[0].mxu0
    %v1280 = vadd.f32 0.0, %v1279
    %v1281 = vpop.f32.mrb[0].mxu0
    %1282 = vdwg.mxu0
    %v1283 = vadd.f32 %v1170, %v1280
    %v1285 = vsel %vm233, %v1283, 0
    %1287 = vmatprep.subr.mxu0 0.0
    %1288 = vmatpush1.msra.mxu0 %v1070
    %1289 = vmatprep.subr.mxu0 0.0
    %1290 = vmatpush1.msra.mxu0 %v1071
    %1291 = vmatprep.subr.mxu0 0.0
    %1292 = vmatpush1.msra.mxu0 %v1072
    %1293 = vmatprep.subr.mxu0 0.0
    %1294 = vmatpush1.msra.mxu0 %v1073
    %1295 = vmatprep.subr.mxu0 0.0
    %1296 = vmatpush1.msra.mxu0 0.0
    %1297 = vmatprep.subr.mxu0 0.0
    %1298 = vmatpush1.msra.mxu0 0.0
    %1299 = vmatprep.subr.mxu0 0.0
    %1300 = vmatpush1.msra.mxu0 0.0
    %1301 = vmatprep.subr.mxu0 0.0
    %1302 = vmatpush1.msra.mxu0 0.0
    %1303 = vmatprep.subr.mxu0 0.0
    %1304 = vmatpush1.msra.mxu0 0.0
    %1305 = vmatprep.subr.mxu0 0.0
    %1306 = vmatpush1.msra.mxu0 0.0
    %1307 = vmatprep.subr.mxu0 0.0
    %1308 = vmatpush1.msra.mxu0 0.0
    %1309 = vmatprep.subr.mxu0 0.0
    %1310 = vmatpush1.msra.mxu0 0.0
    %1311 = vmatprep.subr.mxu0 0.0
    %1312 = vmatpush1.msra.mxu0 0.0
    %1313 = vmatprep.subr.mxu0 0.0
    %1314 = vmatpush1.msra.mxu0 0.0
    %1315 = vmatprep.subr.mxu0 0.0
    %1316 = vmatpush1.msra.mxu0 0.0
    %1317 = vmatprep.subr.mxu0 0.0
    %1318 = vmatpush1.msra.mxu0 0.0
    %1319 = vmatprep.subr.mxu0 0.0
    %1320 = vmatpush1.msra.mxu0 0.0
    %1321 = vmatprep.subr.mxu0 0.0
    %1322 = vmatpush1.msra.mxu0 0.0
    %1323 = vmatprep.subr.mxu0 0.0
    %1324 = vmatpush1.msra.mxu0 0.0
    %1325 = vmatprep.subr.mxu0 0.0
    %1326 = vmatpush1.msra.mxu0 0.0
    %1327 = vmatprep.subr.mxu0 0.0
    %1328 = vmatpush1.msra.mxu0 0.0
    %1329 = vmatprep.subr.mxu0 0.0
    %1330 = vmatpush1.msra.mxu0 0.0
    %1331 = vmatprep.subr.mxu0 0.0
    %1332 = vmatpush1.msra.mxu0 0.0
    %1333 = vmatprep.subr.mxu0 0.0
    %1334 = vmatpush1.msra.mxu0 0.0
    %1335 = vmatprep.subr.mxu0 0.0
    %1336 = vmatpush1.msra.mxu0 0.0
    %1337 = vmatprep.subr.mxu0 0.0
    %1338 = vmatpush1.msra.mxu0 0.0
    %1339 = vmatprep.subr.mxu0 0.0
    %1340 = vmatpush1.msra.mxu0 0.0
    %1341 = vmatprep.subr.mxu0 0.0
    %1342 = vmatpush1.msra.mxu0 0.0
    %1343 = vmatprep.subr.mxu0 0.0
    %1344 = vmatpush1.msra.mxu0 0.0
    %1345 = vmatprep.subr.mxu0 0.0
    %1346 = vmatpush1.msra.mxu0 0.0
    %1347 = vmatprep.subr.mxu0 0.0
    %1348 = vmatpush1.msra.mxu0 0.0
    %1349 = vmatprep.subr.mxu0 0.0
    %1350 = vmatpush1.msra.mxu0 0.0
    %1351 = vmatprep.mubr.f32.mxu0 0.0
    %1352 = vmatmul.mubr.f32.gmra.mrb[0].mxu0 %v1285
    %v1353 = vpop.f32.mrb[0].mxu0
    %v1354 = vadd.f32 0.0, %v1353
    %v1355 = vpop.f32.mrb[0].mxu0
    %1356 = vdwg.mxu0
    %v1357 = vadd.f32 %v1175, %v1354
    %v1359 = vsel %vm233, %v1357, 0
    %1361 = vmatprep.subr.mxu0 0.0
    %1362 = vmatpush1.msra.mxu0 %v1070
    %1363 = vmatprep.subr.mxu0 0.0
    %1364 = vmatpush1.msra.mxu0 %v1071
    %1365 = vmatprep.subr.mxu0 0.0
    %1366 = vmatpush1.msra.mxu0 %v1072
    %1367 = vmatprep.subr.mxu0 0.0
    %1368 = vmatpush1.msra.mxu0 %v1073
    %1369 = vmatprep.subr.mxu0 0.0
    %1370 = vmatpush1.msra.mxu0 0.0
    %1371 = vmatprep.subr.mxu0 0.0
    %1372 = vmatpush1.msra.mxu0 0.0
    %1373 = vmatprep.subr.mxu0 0.0
    %1374 = vmatpush1.msra.mxu0 0.0
    %1375 = vmatprep.subr.mxu0 0.0
    %1376 = vmatpush1.msra.mxu0 0.0
    %1377 = vmatprep.subr.mxu0 0.0
    %1378 = vmatpush1.msra.mxu0 0.0
    %1379 = vmatprep.subr.mxu0 0.0
    %1380 = vmatpush1.msra.mxu0 0.0
    %1381 = vmatprep.subr.mxu0 0.0
    %1382 = vmatpush1.msra.mxu0 0.0
    %1383 = vmatprep.subr.mxu0 0.0
    %1384 = vmatpush1.msra.mxu0 0.0
    %1385 = vmatprep.subr.mxu0 0.0
    %1386 = vmatpush1.msra.mxu0 0.0
    %1387 = vmatprep.subr.mxu0 0.0
    %1388 = vmatpush1.msra.mxu0 0.0
    %1389 = vmatprep.subr.mxu0 0.0
    %1390 = vmatpush1.msra.mxu0 0.0
    %1391 = vmatprep.subr.mxu0 0.0
    %1392 = vmatpush1.msra.mxu0 0.0
    %1393 = vmatprep.subr.mxu0 0.0
    %1394 = vmatpush1.msra.mxu0 0.0
    %1395 = vmatprep.subr.mxu0 0.0
    %1396 = vmatpush1.msra.mxu0 0.0
    %1397 = vmatprep.subr.mxu0 0.0
    %1398 = vmatpush1.msra.mxu0 0.0
    %1399 = vmatprep.subr.mxu0 0.0
    %1400 = vmatpush1.msra.mxu0 0.0
    %1401 = vmatprep.subr.mxu0 0.0
    %1402 = vmatpush1.msra.mxu0 0.0
    %1403 = vmatprep.subr.mxu0 0.0
    %1404 = vmatpush1.msra.mxu0 0.0
    %1405 = vmatprep.subr.mxu0 0.0
    %1406 = vmatpush1.msra.mxu0 0.0
    %1407 = vmatprep.subr.mxu0 0.0
    %1408 = vmatpush1.msra.mxu0 0.0
    %1409 = vmatprep.subr.mxu0 0.0
    %1410 = vmatpush1.msra.mxu0 0.0
    %1411 = vmatprep.subr.mxu0 0.0
    %1412 = vmatpush1.msra.mxu0 0.0
    %1413 = vmatprep.subr.mxu0 0.0
    %1414 = vmatpush1.msra.mxu0 0.0
    %1415 = vmatprep.subr.mxu0 0.0
    %1416 = vmatpush1.msra.mxu0 0.0
    %1417 = vmatprep.subr.mxu0 0.0
    %1418 = vmatpush1.msra.mxu0 0.0
    %1419 = vmatprep.subr.mxu0 0.0
    %1420 = vmatpush1.msra.mxu0 0.0
    %1421 = vmatprep.subr.mxu0 0.0
    %1422 = vmatpush1.msra.mxu0 0.0
    %1423 = vmatprep.subr.mxu0 0.0
    %1424 = vmatpush1.msra.mxu0 0.0
    %1425 = vmatprep.mubr.f32.mxu0 0.0
    %1426 = vmatmul.mubr.f32.gmra.mrb[0].mxu0 %v1359
    %v1427 = vpop.f32.mrb[0].mxu0
    %v1428 = vadd.f32 0.0, %v1427
    %v1429 = vpop.f32.mrb[0].mxu0
    %1430 = vdwg.mxu0
    %v1431 = vadd.f32 %v1180, %v1428
    %v1433 = vsel %vm233, %v1431, 0
    %1435 = vmatprep.subr.mxu0 0.0
    %1436 = vmatpush1.msra.mxu0 %v1070
    %1437 = vmatprep.subr.mxu0 0.0
    %1438 = vmatpush1.msra.mxu0 %v1071
    %1439 = vmatprep.subr.mxu0 0.0
    %1440 = vmatpush1.msra.mxu0 %v1072
    %1441 = vmatprep.subr.mxu0 0.0
    %1442 = vmatpush1.msra.mxu0 %v1073
    %1443 = vmatprep.subr.mxu0 0.0
    %1444 = vmatpush1.msra.mxu0 0.0
    %1445 = vmatprep.subr.mxu0 0.0
    %1446 = vmatpush1.msra.mxu0 0.0
    %1447 = vmatprep.subr.mxu0 0.0
    %1448 = vmatpush1.msra.mxu0 0.0
    %1449 = vmatprep.subr.mxu0 0.0
    %1450 = vmatpush1.msra.mxu0 0.0
    %1451 = vmatprep.subr.mxu0 0.0
    %1452 = vmatpush1.msra.mxu0 0.0
    %1453 = vmatprep.subr.mxu0 0.0
    %1454 = vmatpush1.msra.mxu0 0.0
    %1455 = vmatprep.subr.mxu0 0.0
    %1456 = vmatpush1.msra.mxu0 0.0
    %1457 = vmatprep.subr.mxu0 0.0
    %1458 = vmatpush1.msra.mxu0 0.0
    %1459 = vmatprep.subr.mxu0 0.0
    %1460 = vmatpush1.msra.mxu0 0.0
    %1461 = vmatprep.subr.mxu0 0.0
    %1462 = vmatpush1.msra.mxu0 0.0
    %1463 = vmatprep.subr.mxu0 0.0
    %1464 = vmatpush1.msra.mxu0 0.0
    %1465 = vmatprep.subr.mxu0 0.0
    %1466 = vmatpush1.msra.mxu0 0.0
    %1467 = vmatprep.subr.mxu0 0.0
    %1468 = vmatpush1.msra.mxu0 0.0
    %1469 = vmatprep.subr.mxu0 0.0
    %1470 = vmatpush1.msra.mxu0 0.0
    %1471 = vmatprep.subr.mxu0 0.0
    %1472 = vmatpush1.msra.mxu0 0.0
    %1473 = vmatprep.subr.mxu0 0.0
    %1474 = vmatpush1.msra.mxu0 0.0
    %1475 = vmatprep.subr.mxu0 0.0
    %1476 = vmatpush1.msra.mxu0 0.0
    %1477 = vmatprep.subr.mxu0 0.0
    %1478 = vmatpush1.msra.mxu0 0.0
    %1479 = vmatprep.subr.mxu0 0.0
    %1480 = vmatpush1.msra.mxu0 0.0
    %1481 = vmatprep.subr.mxu0 0.0
    %1482 = vmatpush1.msra.mxu0 0.0
    %1483 = vmatprep.subr.mxu0 0.0
    %1484 = vmatpush1.msra.mxu0 0.0
    %1485 = vmatprep.subr.mxu0 0.0
    %1486 = vmatpush1.msra.mxu0 0.0
    %1487 = vmatprep.subr.mxu0 0.0
    %1488 = vmatpush1.msra.mxu0 0.0
    %1489 = vmatprep.subr.mxu0 0.0
    %1490 = vmatpush1.msra.mxu0 0.0
    %1491 = vmatprep.subr.mxu0 0.0
    %1492 = vmatpush1.msra.mxu0 0.0
    %1493 = vmatprep.subr.mxu0 0.0
    %1494 = vmatpush1.msra.mxu0 0.0
    %1495 = vmatprep.subr.mxu0 0.0
    %1496 = vmatpush1.msra.mxu0 0.0
    %1497 = vmatprep.subr.mxu0 0.0
    %1498 = vmatpush1.msra.mxu0 0.0
    %1499 = vmatprep.mubr.f32.mxu0 0.0
    %1500 = vmatmul.mubr.f32.gmra.mrb[0].mxu0 %v1433
    %v1501 = vpop.f32.mrb[0].mxu0
    %v1502 = vadd.f32 0.0, %v1501
    %v1503 = vpop.f32.mrb[0].mxu0
    %1504 = vdwg.mxu0
    %v1505 = vadd.f32 %v1185, %v1502
    %v1507 = vsel %vm233, %v1505, 0
    %1509 = vmatprep.subr.mxu0 0.0
    %1510 = vmatpush1.msra.mxu0 %v1070
    %1511 = vmatprep.subr.mxu0 0.0
    %1512 = vmatpush1.msra.mxu0 %v1071
    %1513 = vmatprep.subr.mxu0 0.0
    %1514 = vmatpush1.msra.mxu0 %v1072
    %1515 = vmatprep.subr.mxu0 0.0
    %1516 = vmatpush1.msra.mxu0 %v1073
    %1517 = vmatprep.subr.mxu0 0.0
    %1518 = vmatpush1.msra.mxu0 0.0
    %1519 = vmatprep.subr.mxu0 0.0
    %1520 = vmatpush1.msra.mxu0 0.0
    %1521 = vmatprep.subr.mxu0 0.0
    %1522 = vmatpush1.msra.mxu0 0.0
    %1523 = vmatprep.subr.mxu0 0.0
    %1524 = vmatpush1.msra.mxu0 0.0
    %1525 = vmatprep.subr.mxu0 0.0
    %1526 = vmatpush1.msra.mxu0 0.0
    %1527 = vmatprep.subr.mxu0 0.0
    %1528 = vmatpush1.msra.mxu0 0.0
    %1529 = vmatprep.subr.mxu0 0.0
    %1530 = vmatpush1.msra.mxu0 0.0
    %1531 = vmatprep.subr.mxu0 0.0
    %1532 = vmatpush1.msra.mxu0 0.0
    %1533 = vmatprep.subr.mxu0 0.0
    %1534 = vmatpush1.msra.mxu0 0.0
    %1535 = vmatprep.subr.mxu0 0.0
    %1536 = vmatpush1.msra.mxu0 0.0
    %1537 = vmatprep.subr.mxu0 0.0
    %1538 = vmatpush1.msra.mxu0 0.0
    %1539 = vmatprep.subr.mxu0 0.0
    %1540 = vmatpush1.msra.mxu0 0.0
    %1541 = vmatprep.subr.mxu0 0.0
    %1542 = vmatpush1.msra.mxu0 0.0
    %1543 = vmatprep.subr.mxu0 0.0
    %1544 = vmatpush1.msra.mxu0 0.0
    %1545 = vmatprep.subr.mxu0 0.0
    %1546 = vmatpush1.msra.mxu0 0.0
    %1547 = vmatprep.subr.mxu0 0.0
    %1548 = vmatpush1.msra.mxu0 0.0
    %1549 = vmatprep.subr.mxu0 0.0
    %1550 = vmatpush1.msra.mxu0 0.0
    %1551 = vmatprep.subr.mxu0 0.0
    %1552 = vmatpush1.msra.mxu0 0.0
    %1553 = vmatprep.subr.mxu0 0.0
    %1554 = vmatpush1.msra.mxu0 0.0
    %1555 = vmatprep.subr.mxu0 0.0
    %1556 = vmatpush1.msra.mxu0 0.0
    %1557 = vmatprep.subr.mxu0 0.0
    %1558 = vmatpush1.msra.mxu0 0.0
    %1559 = vmatprep.subr.mxu0 0.0
    %1560 = vmatpush1.msra.mxu0 0.0
    %1561 = vmatprep.subr.mxu0 0.0
    %1562 = vmatpush1.msra.mxu0 0.0
    %1563 = vmatprep.subr.mxu0 0.0
    %1564 = vmatpush1.msra.mxu0 0.0
    %1565 = vmatprep.subr.mxu0 0.0
    %1566 = vmatpush1.msra.mxu0 0.0
    %1567 = vmatprep.subr.mxu0 0.0
    %1568 = vmatpush1.msra.mxu0 0.0
    %1569 = vmatprep.subr.mxu0 0.0
    %1570 = vmatpush1.msra.mxu0 0.0
    %1571 = vmatprep.subr.mxu0 0.0
    %1572 = vmatpush1.msra.mxu0 0.0
    %1573 = vmatprep.mubr.f32.mxu0 0.0
    %1574 = vmatmul.mubr.f32.gmra.mrb[0].mxu0 %v1507
    %v1575 = vpop.f32.mrb[0].mxu0
    %v1576 = vadd.f32 0.0, %v1575
    %v1577 = vpop.f32.mrb[0].mxu0
    %1578 = vdwg.mxu0
    %v1579 = vadd.f32 %v1190, %v1576
    %v1581 = vsel %vm233, %v1579, 0
    %1583 = vmatprep.subr.mxu0 0.0
    %1584 = vmatpush1.msra.mxu0 %v1070
    %1585 = vmatprep.subr.mxu0 0.0
    %1586 = vmatpush1.msra.mxu0 %v1071
    %1587 = vmatprep.subr.mxu0 0.0
    %1588 = vmatpush1.msra.mxu0 %v1072
    %1589 = vmatprep.subr.mxu0 0.0
    %1590 = vmatpush1.msra.mxu0 %v1073
    %1591 = vmatprep.subr.mxu0 0.0
    %1592 = vmatpush1.msra.mxu0 0.0
    %1593 = vmatprep.subr.mxu0 0.0
    %1594 = vmatpush1.msra.mxu0 0.0
    %1595 = vmatprep.subr.mxu0 0.0
    %1596 = vmatpush1.msra.mxu0 0.0
    %1597 = vmatprep.subr.mxu0 0.0
    %1598 = vmatpush1.msra.mxu0 0.0
    %1599 = vmatprep.subr.mxu0 0.0
    %1600 = vmatpush1.msra.mxu0 0.0
    %1601 = vmatprep.subr.mxu0 0.0
    %1602 = vmatpush1.msra.mxu0 0.0
    %1603 = vmatprep.subr.mxu0 0.0
    %1604 = vmatpush1.msra.mxu0 0.0
    %1605 = vmatprep.subr.mxu0 0.0
    %1606 = vmatpush1.msra.mxu0 0.0
    %1607 = vmatprep.subr.mxu0 0.0
    %1608 = vmatpush1.msra.mxu0 0.0
    %1609 = vmatprep.subr.mxu0 0.0
    %1610 = vmatpush1.msra.mxu0 0.0
    %1611 = vmatprep.subr.mxu0 0.0
    %1612 = vmatpush1.msra.mxu0 0.0
    %1613 = vmatprep.subr.mxu0 0.0
    %1614 = vmatpush1.msra.mxu0 0.0
    %1615 = vmatprep.subr.mxu0 0.0
    %1616 = vmatpush1.msra.mxu0 0.0
    %1617 = vmatprep.subr.mxu0 0.0
    %1618 = vmatpush1.msra.mxu0 0.0
    %1619 = vmatprep.subr.mxu0 0.0
    %1620 = vmatpush1.msra.mxu0 0.0
    %1621 = vmatprep.subr.mxu0 0.0
    %1622 = vmatpush1.msra.mxu0 0.0
    %1623 = vmatprep.subr.mxu0 0.0
    %1624 = vmatpush1.msra.mxu0 0.0
    %1625 = vmatprep.subr.mxu0 0.0
    %1626 = vmatpush1.msra.mxu0 0.0
    %1627 = vmatprep.subr.mxu0 0.0
    %1628 = vmatpush1.msra.mxu0 0.0
    %1629 = vmatprep.subr.mxu0 0.0
    %1630 = vmatpush1.msra.mxu0 0.0
    %1631 = vmatprep.subr.mxu0 0.0
    %1632 = vmatpush1.msra.mxu0 0.0
    %1633 = vmatprep.subr.mxu0 0.0
    %1634 = vmatpush1.msra.mxu0 0.0
    %1635 = vmatprep.subr.mxu0 0.0
    %1636 = vmatpush1.msra.mxu0 0.0
    %1637 = vmatprep.subr.mxu0 0.0
    %1638 = vmatpush1.msra.mxu0 0.0
    %1639 = vmatprep.subr.mxu0 0.0
    %1640 = vmatpush1.msra.mxu0 0.0
    %1641 = vmatprep.subr.mxu0 0.0
    %1642 = vmatpush1.msra.mxu0 0.0
    %1643 = vmatprep.subr.mxu0 0.0
    %1644 = vmatpush1.msra.mxu0 0.0
    %1645 = vmatprep.subr.mxu0 0.0
    %1646 = vmatpush1.msra.mxu0 0.0
    %1647 = vmatprep.mubr.f32.mxu0 0.0
    %1648 = vmatmul.mubr.f32.gmra.mrb[0].mxu0 %v1581
    %v1649 = vpop.f32.mrb[0].mxu0
    %v1650 = vadd.f32 0.0, %v1649
    %v1651 = vpop.f32.mrb[0].mxu0
    %1652 = vdwg.mxu0
    %v1653 = vadd.f32 %v1195, %v1650
    %v1655 = vsel %vm233, %v1653, 0
    %1657 = vmatprep.subr.mxu0 0.0
    %1658 = vmatpush1.msra.mxu0 %v1070
    %1659 = vmatprep.subr.mxu0 0.0
    %1660 = vmatpush1.msra.mxu0 %v1071
    %1661 = vmatprep.subr.mxu0 0.0
    %1662 = vmatpush1.msra.mxu0 %v1072
    %1663 = vmatprep.subr.mxu0 0.0
    %1664 = vmatpush1.msra.mxu0 %v1073
    %1665 = vmatprep.subr.mxu0 0.0
    %1666 = vmatpush1.msra.mxu0 0.0
    %1667 = vmatprep.subr.mxu0 0.0
    %1668 = vmatpush1.msra.mxu0 0.0
    %1669 = vmatprep.subr.mxu0 0.0
    %1670 = vmatpush1.msra.mxu0 0.0
    %1671 = vmatprep.subr.mxu0 0.0
    %1672 = vmatpush1.msra.mxu0 0.0
    %1673 = vmatprep.subr.mxu0 0.0
    %1674 = vmatpush1.msra.mxu0 0.0
    %1675 = vmatprep.subr.mxu0 0.0
    %1676 = vmatpush1.msra.mxu0 0.0
    %1677 = vmatprep.subr.mxu0 0.0
    %1678 = vmatpush1.msra.mxu0 0.0
    %1679 = vmatprep.subr.mxu0 0.0
    %1680 = vmatpush1.msra.mxu0 0.0
    %1681 = vmatprep.subr.mxu0 0.0
    %1682 = vmatpush1.msra.mxu0 0.0
    %1683 = vmatprep.subr.mxu0 0.0
    %1684 = vmatpush1.msra.mxu0 0.0
    %1685 = vmatprep.subr.mxu0 0.0
    %1686 = vmatpush1.msra.mxu0 0.0
    %1687 = vmatprep.subr.mxu0 0.0
    %1688 = vmatpush1.msra.mxu0 0.0
    %1689 = vmatprep.subr.mxu0 0.0
    %1690 = vmatpush1.msra.mxu0 0.0
    %1691 = vmatprep.subr.mxu0 0.0
    %1692 = vmatpush1.msra.mxu0 0.0
    %1693 = vmatprep.subr.mxu0 0.0
    %1694 = vmatpush1.msra.mxu0 0.0
    %1695 = vmatprep.subr.mxu0 0.0
    %1696 = vmatpush1.msra.mxu0 0.0
    %1697 = vmatprep.subr.mxu0 0.0
    %1698 = vmatpush1.msra.mxu0 0.0
    %1699 = vmatprep.subr.mxu0 0.0
    %1700 = vmatpush1.msra.mxu0 0.0
    %1701 = vmatprep.subr.mxu0 0.0
    %1702 = vmatpush1.msra.mxu0 0.0
    %1703 = vmatprep.subr.mxu0 0.0
    %1704 = vmatpush1.msra.mxu0 0.0
    %1705 = vmatprep.subr.mxu0 0.0
    %1706 = vmatpush1.msra.mxu0 0.0
    %1707 = vmatprep.subr.mxu0 0.0
    %1708 = vmatpush1.msra.mxu0 0.0
    %1709 = vmatprep.subr.mxu0 0.0
    %1710 = vmatpush1.msra.mxu0 0.0
    %1711 = vmatprep.subr.mxu0 0.0
    %1712 = vmatpush1.msra.mxu0 0.0
    %1713 = vmatprep.subr.mxu0 0.0
    %1714 = vmatpush1.msra.mxu0 0.0
    %1715 = vmatprep.subr.mxu0 0.0
    %1716 = vmatpush1.msra.mxu0 0.0
    %1717 = vmatprep.subr.mxu0 0.0
    %1718 = vmatpush1.msra.mxu0 0.0
    %1719 = vmatprep.subr.mxu0 0.0
    %1720 = vmatpush1.msra.mxu0 0.0
    %1721 = vmatprep.mubr.f32.mxu0 0.0
    %1722 = vmatmul.mubr.f32.gmra.mrb[0].mxu0 %v1655
    %v1723 = vpop.f32.mrb[0].mxu0
    %v1724 = vadd.f32 0.0, %v1723
    %v1725 = vpop.f32.mrb[0].mxu0
    %1726 = vdwg.mxu0
    %v1727 = vadd.f32 %v1200, %v1724
    %v1729 = vsel %vm233, %v1727, 0
    %1731 = vmatprep.subr.mxu0 0.0
    %1732 = vmatpush1.msra.mxu0 %v1070
    %1733 = vmatprep.subr.mxu0 0.0
    %1734 = vmatpush1.msra.mxu0 %v1071
    %1735 = vmatprep.subr.mxu0 0.0
    %1736 = vmatpush1.msra.mxu0 %v1072
    %1737 = vmatprep.subr.mxu0 0.0
    %1738 = vmatpush1.msra.mxu0 %v1073
    %1739 = vmatprep.subr.mxu0 0.0
    %1740 = vmatpush1.msra.mxu0 0.0
    %1741 = vmatprep.subr.mxu0 0.0
    %1742 = vmatpush1.msra.mxu0 0.0
    %1743 = vmatprep.subr.mxu0 0.0
    %1744 = vmatpush1.msra.mxu0 0.0
    %1745 = vmatprep.subr.mxu0 0.0
    %1746 = vmatpush1.msra.mxu0 0.0
    %1747 = vmatprep.subr.mxu0 0.0
    %1748 = vmatpush1.msra.mxu0 0.0
    %1749 = vmatprep.subr.mxu0 0.0
    %1750 = vmatpush1.msra.mxu0 0.0
    %1751 = vmatprep.subr.mxu0 0.0
    %1752 = vmatpush1.msra.mxu0 0.0
    %1753 = vmatprep.subr.mxu0 0.0
    %1754 = vmatpush1.msra.mxu0 0.0
    %1755 = vmatprep.subr.mxu0 0.0
    %1756 = vmatpush1.msra.mxu0 0.0
    %1757 = vmatprep.subr.mxu0 0.0
    %1758 = vmatpush1.msra.mxu0 0.0
    %1759 = vmatprep.subr.mxu0 0.0
    %1760 = vmatpush1.msra.mxu0 0.0
    %1761 = vmatprep.subr.mxu0 0.0
    %1762 = vmatpush1.msra.mxu0 0.0
    %1763 = vmatprep.subr.mxu0 0.0
    %1764 = vmatpush1.msra.mxu0 0.0
    %1765 = vmatprep.subr.mxu0 0.0
    %1766 = vmatpush1.msra.mxu0 0.0
    %1767 = vmatprep.subr.mxu0 0.0
    %1768 = vmatpush1.msra.mxu0 0.0
    %1769 = vmatprep.subr.mxu0 0.0
    %1770 = vmatpush1.msra.mxu0 0.0
    %1771 = vmatprep.subr.mxu0 0.0
    %1772 = vmatpush1.msra.mxu0 0.0
    %1773 = vmatprep.subr.mxu0 0.0
    %1774 = vmatpush1.msra.mxu0 0.0
    %1775 = vmatprep.subr.mxu0 0.0
    %1776 = vmatpush1.msra.mxu0 0.0
    %1777 = vmatprep.subr.mxu0 0.0
    %1778 = vmatpush1.msra.mxu0 0.0
    %1779 = vmatprep.subr.mxu0 0.0
    %1780 = vmatpush1.msra.mxu0 0.0
    %1781 = vmatprep.subr.mxu0 0.0
    %1782 = vmatpush1.msra.mxu0 0.0
    %1783 = vmatprep.subr.mxu0 0.0
    %1784 = vmatpush1.msra.mxu0 0.0
    %1785 = vmatprep.subr.mxu0 0.0
    %1786 = vmatpush1.msra.mxu0 0.0
    %1787 = vmatprep.subr.mxu0 0.0
    %1788 = vmatpush1.msra.mxu0 0.0
    %1789 = vmatprep.subr.mxu0 0.0
    %1790 = vmatpush1.msra.mxu0 0.0
    %1791 = vmatprep.subr.mxu0 0.0
    %1792 = vmatpush1.msra.mxu0 0.0
    %1793 = vmatprep.subr.mxu0 0.0
    %1794 = vmatpush1.msra.mxu0 0.0
    %1795 = vmatprep.mubr.f32.mxu0 0.0
    %1796 = vmatmul.mubr.f32.gmra.mrb[0].mxu0 %v1729
    %v1797 = vpop.f32.mrb[0].mxu0
    %v1798 = vadd.f32 0.0, %v1797
    %v1799 = vpop.f32.mrb[0].mxu0
    %1800 = vdwg.mxu0
    %v1801 = vadd.f32 %v1205, %v1798
    %v1803 = vsel %vm233, %v1801, 0
    %1805 = vmatprep.subr.mxu0 0.0
    %1806 = vmatpush1.msra.mxu0 %v1075
    %1807 = vmatprep.subr.mxu0 0.0
    %1808 = vmatpush1.msra.mxu0 %v1076
    %1809 = vmatprep.subr.mxu0 0.0
    %1810 = vmatpush1.msra.mxu0 %v1077
    %1811 = vmatprep.subr.mxu0 0.0
    %1812 = vmatpush1.msra.mxu0 %v1078
    %1813 = vmatprep.subr.mxu0 0.0
    %1814 = vmatpush1.msra.mxu0 0.0
    %1815 = vmatprep.subr.mxu0 0.0
    %1816 = vmatpush1.msra.mxu0 0.0
    %1817 = vmatprep.subr.mxu0 0.0
    %1818 = vmatpush1.msra.mxu0 0.0
    %1819 = vmatprep.subr.mxu0 0.0
    %1820 = vmatpush1.msra.mxu0 0.0
    %1821 = vmatprep.subr.mxu0 0.0
    %1822 = vmatpush1.msra.mxu0 0.0
    %1823 = vmatprep.subr.mxu0 0.0
    %1824 = vmatpush1.msra.mxu0 0.0
    %1825 = vmatprep.subr.mxu0 0.0
    %1826 = vmatpush1.msra.mxu0 0.0
    %1827 = vmatprep.subr.mxu0 0.0
    %1828 = vmatpush1.msra.mxu0 0.0
    %1829 = vmatprep.subr.mxu0 0.0
    %1830 = vmatpush1.msra.mxu0 0.0
    %1831 = vmatprep.subr.mxu0 0.0
    %1832 = vmatpush1.msra.mxu0 0.0
    %1833 = vmatprep.subr.mxu0 0.0
    %1834 = vmatpush1.msra.mxu0 0.0
    %1835 = vmatprep.subr.mxu0 0.0
    %1836 = vmatpush1.msra.mxu0 0.0
    %1837 = vmatprep.subr.mxu0 0.0
    %1838 = vmatpush1.msra.mxu0 0.0
    %1839 = vmatprep.subr.mxu0 0.0
    %1840 = vmatpush1.msra.mxu0 0.0
    %1841 = vmatprep.subr.mxu0 0.0
    %1842 = vmatpush1.msra.mxu0 0.0
    %1843 = vmatprep.subr.mxu0 0.0
    %1844 = vmatpush1.msra.mxu0 0.0
    %1845 = vmatprep.subr.mxu0 0.0
    %1846 = vmatpush1.msra.mxu0 0.0
    %1847 = vmatprep.subr.mxu0 0.0
    %1848 = vmatpush1.msra.mxu0 0.0
    %1849 = vmatprep.subr.mxu0 0.0
    %1850 = vmatpush1.msra.mxu0 0.0
    %1851 = vmatprep.subr.mxu0 0.0
    %1852 = vmatpush1.msra.mxu0 0.0
    %1853 = vmatprep.subr.mxu0 0.0
    %1854 = vmatpush1.msra.mxu0 0.0
    %1855 = vmatprep.subr.mxu0 0.0
    %1856 = vmatpush1.msra.mxu0 0.0
    %1857 = vmatprep.subr.mxu0 0.0
    %1858 = vmatpush1.msra.mxu0 0.0
    %1859 = vmatprep.subr.mxu0 0.0
    %1860 = vmatpush1.msra.mxu0 0.0
    %1861 = vmatprep.subr.mxu0 0.0
    %1862 = vmatpush1.msra.mxu0 0.0
    %1863 = vmatprep.subr.mxu0 0.0
    %1864 = vmatpush1.msra.mxu0 0.0
    %1865 = vmatprep.subr.mxu0 0.0
    %1866 = vmatpush1.msra.mxu0 0.0
    %1867 = vmatprep.subr.mxu0 0.0
    %1868 = vmatpush1.msra.mxu0 0.0
    %1869 = vmatprep.mubr.f32.mxu0 0.0
    %1870 = vmatmul.mubr.f32.gmra.mrb[0].mxu0 %v1285
    %v1871 = vpop.f32.mrb[0].mxu0
    %v1872 = vadd.f32 0.0, %v1871
    %v1873 = vpop.f32.mrb[0].mxu0
    %1874 = vmatprep.mubr.f32.mxu0 0.0
    %1875 = vmatmul.mubr.f32.gmra.mrb[0].mxu0 %v1359
    %v1876 = vpop.f32.mrb[0].mxu0
    %v1877 = vadd.f32 0.0, %v1876
    %v1878 = vpop.f32.mrb[0].mxu0
    %1879 = vmatprep.mubr.f32.mxu0 0.0
    %1880 = vmatmul.mubr.f32.gmra.mrb[0].mxu0 %v1433
    %v1881 = vpop.f32.mrb[0].mxu0
    %v1882 = vadd.f32 0.0, %v1881
    %v1883 = vpop.f32.mrb[0].mxu0
    %1884 = vmatprep.mubr.f32.mxu0 0.0
    %1885 = vmatmul.mubr.f32.gmra.mrb[0].mxu0 %v1507
    %v1886 = vpop.f32.mrb[0].mxu0
    %v1887 = vadd.f32 0.0, %v1886
    %v1888 = vpop.f32.mrb[0].mxu0
    %1889 = vmatprep.mubr.f32.mxu0 0.0
    %1890 = vmatmul.mubr.f32.gmra.mrb[0].mxu0 %v1581
    %v1891 = vpop.f32.mrb[0].mxu0
    %v1892 = vadd.f32 0.0, %v1891
    %v1893 = vpop.f32.mrb[0].mxu0
    %1894 = vmatprep.mubr.f32.mxu0 0.0
    %1895 = vmatmul.mubr.f32.gmra.mrb[0].mxu0 %v1655
    %v1896 = vpop.f32.mrb[0].mxu0
    %v1897 = vadd.f32 0.0, %v1896
    %v1898 = vpop.f32.mrb[0].mxu0
    %1899 = vmatprep.mubr.f32.mxu0 0.0
    %1900 = vmatmul.mubr.f32.gmra.mrb[0].mxu0 %v1729
    %v1901 = vpop.f32.mrb[0].mxu0
    %v1902 = vadd.f32 0.0, %v1901
    %v1903 = vpop.f32.mrb[0].mxu0
    %1904 = vmatprep.mubr.f32.mxu0 0.0
    %1905 = vmatmul.mubr.f32.gmra.mrb[0].mxu0 %v1803
    %v1906 = vpop.f32.mrb[0].mxu0
    %v1907 = vadd.f32 0.0, %v1906
    %v1908 = vpop.f32.mrb[0].mxu0
    %1909 = vdwg.mxu0
    %s1910 = scalar_lea.vmem %s2, 64
    %v1911 = vld [vmem:[%s1910] sm:$0xff]
    %v1912 = vld [vmem:[%s1910 + $0x8] sm:$0xff]
    %v1913 = vld [vmem:[%s1910 + $0x10] sm:$0xff]
    %v1914 = vld [vmem:[%s1910 + $0x18] sm:$0xff]
    %s1915 = scalar_lea.vmem [#allocation4], 64
    %v1916 = vld [vmem:[%s1915] sm:$0xff]
    %v1917 = vld [vmem:[%s1915 + $0x8] sm:$0xff]
    %v1918 = vld [vmem:[%s1915 + $0x10] sm:$0xff]
    %v1919 = vld [vmem:[%s1915 + $0x18] sm:$0xff]
    %s1920 = scalar_lea.vmem [#allocation6], 64
    %v1921 = vld [vmem:[%s1920] sm:$0xff]
    %v1922 = vld [vmem:[%s1920 + $0x8] sm:$0xff]
    %v1923 = vld [vmem:[%s1920 + $0x10] sm:$0xff]
    %v1924 = vld [vmem:[%s1920 + $0x18] sm:$0xff]
    %v1926 = vsel %vm233, %v1872, 0
    %v1929 = vsel %vm233, %v1877, 0
    %v1932 = vsel %vm233, %v1882, 0
    %v1935 = vsel %vm233, %v1887, 0
    %v1938 = vsel %vm233, %v1892, 0
    %v1941 = vsel %vm233, %v1897, 0
    %v1944 = vsel %vm233, %v1902, 0
    %v1947 = vsel %vm233, %v1907, 0
    %1949 = vmatprep.subr.mxu0 0.0
    %1950 = vmatpush1.msra.mxu0 %v1911
    %1951 = vmatprep.subr.mxu0 0.0
    %1952 = vmatpush1.msra.mxu0 %v1912
    %1953 = vmatprep.subr.mxu0 0.0
    %1954 = vmatpush1.msra.mxu0 %v1913
    %1955 = vmatprep.subr.mxu0 0.0
    %1956 = vmatpush1.msra.mxu0 %v1914
    %1957 = vmatprep.subr.mxu0 0.0
    %1958 = vmatpush1.msra.mxu0 0.0
    %1959 = vmatprep.subr.mxu0 0.0
    %1960 = vmatpush1.msra.mxu0 0.0
    %1961 = vmatprep.subr.mxu0 0.0
    %1962 = vmatpush1.msra.mxu0 0.0
    %1963 = vmatprep.subr.mxu0 0.0
    %1964 = vmatpush1.msra.mxu0 0.0
    %1965 = vmatprep.subr.mxu0 0.0
    %1966 = vmatpush1.msra.mxu0 0.0
    %1967 = vmatprep.subr.mxu0 0.0
    %1968 = vmatpush1.msra.mxu0 0.0
    %1969 = vmatprep.subr.mxu0 0.0
    %1970 = vmatpush1.msra.mxu0 0.0
    %1971 = vmatprep.subr.mxu0 0.0
    %1972 = vmatpush1.msra.mxu0 0.0
    %1973 = vmatprep.subr.mxu0 0.0
    %1974 = vmatpush1.msra.mxu0 0.0
    %1975 = vmatprep.subr.mxu0 0.0
    %1976 = vmatpush1.msra.mxu0 0.0
    %1977 = vmatprep.subr.mxu0 0.0
    %1978 = vmatpush1.msra.mxu0 0.0
    %1979 = vmatprep.subr.mxu0 0.0
    %1980 = vmatpush1.msra.mxu0 0.0
    %1981 = vmatprep.subr.mxu0 0.0
    %1982 = vmatpush1.msra.mxu0 0.0
    %1983 = vmatprep.subr.mxu0 0.0
    %1984 = vmatpush1.msra.mxu0 0.0
    %1985 = vmatprep.subr.mxu0 0.0
    %1986 = vmatpush1.msra.mxu0 0.0
    %1987 = vmatprep.subr.mxu0 0.0
    %1988 = vmatpush1.msra.mxu0 0.0
    %1989 = vmatprep.subr.mxu0 0.0
    %1990 = vmatpush1.msra.mxu0 0.0
    %1991 = vmatprep.subr.mxu0 0.0
    %1992 = vmatpush1.msra.mxu0 0.0
    %1993 = vmatprep.subr.mxu0 0.0
    %1994 = vmatpush1.msra.mxu0 0.0
    %1995 = vmatprep.subr.mxu0 0.0
    %1996 = vmatpush1.msra.mxu0 0.0
    %1997 = vmatprep.subr.mxu0 0.0
    %1998 = vmatpush1.msra.mxu0 0.0
    %1999 = vmatprep.subr.mxu0 0.0
    %2000 = vmatpush1.msra.mxu0 0.0
    %2001 = vmatprep.subr.mxu0 0.0
    %2002 = vmatpush1.msra.mxu0 0.0
    %2003 = vmatprep.subr.mxu0 0.0
    %2004 = vmatpush1.msra.mxu0 0.0
    %2005 = vmatprep.subr.mxu0 0.0
    %2006 = vmatpush1.msra.mxu0 0.0
    %2007 = vmatprep.subr.mxu0 0.0
    %2008 = vmatpush1.msra.mxu0 0.0
    %2009 = vmatprep.subr.mxu0 0.0
    %2010 = vmatpush1.msra.mxu0 0.0
    %2011 = vmatprep.subr.mxu0 0.0
    %2012 = vmatpush1.msra.mxu0 0.0
    %2013 = vmatprep.mubr.f32.mxu0 0.0
    %2014 = vmatmul.mubr.f32.gmra.mrb[0].mxu0 %v1926
    %v2015 = vpop.f32.mrb[0].mxu0
    %v2016 = vadd.f32 0.0, %v2015
    %v2017 = vpop.f32.mrb[0].mxu0
    %2018 = vmatprep.mubr.f32.mxu0 0.0
    %2019 = vmatmul.mubr.f32.gmra.mrb[0].mxu0 %v1929
    %v2020 = vpop.f32.mrb[0].mxu0
    %v2021 = vadd.f32 0.0, %v2020
    %v2022 = vpop.f32.mrb[0].mxu0
    %2023 = vmatprep.mubr.f32.mxu0 0.0
    %2024 = vmatmul.mubr.f32.gmra.mrb[0].mxu0 %v1932
    %v2025 = vpop.f32.mrb[0].mxu0
    %v2026 = vadd.f32 0.0, %v2025
    %v2027 = vpop.f32.mrb[0].mxu0
    %2028 = vmatprep.mubr.f32.mxu0 0.0
    %2029 = vmatmul.mubr.f32.gmra.mrb[0].mxu0 %v1935
    %v2030 = vpop.f32.mrb[0].mxu0
    %v2031 = vadd.f32 0.0, %v2030
    %v2032 = vpop.f32.mrb[0].mxu0
    %2033 = vmatprep.mubr.f32.mxu0 0.0
    %2034 = vmatmul.mubr.f32.gmra.mrb[0].mxu0 %v1938
    %v2035 = vpop.f32.mrb[0].mxu0
    %v2036 = vadd.f32 0.0, %v2035
    %v2037 = vpop.f32.mrb[0].mxu0
    %2038 = vmatprep.mubr.f32.mxu0 0.0
    %2039 = vmatmul.mubr.f32.gmra.mrb[0].mxu0 %v1941
    %v2040 = vpop.f32.mrb[0].mxu0
    %v2041 = vadd.f32 0.0, %v2040
    %v2042 = vpop.f32.mrb[0].mxu0
    %2043 = vmatprep.mubr.f32.mxu0 0.0
    %2044 = vmatmul.mubr.f32.gmra.mrb[0].mxu0 %v1944
    %v2045 = vpop.f32.mrb[0].mxu0
    %v2046 = vadd.f32 0.0, %v2045
    %v2047 = vpop.f32.mrb[0].mxu0
    %2048 = vmatprep.mubr.f32.mxu0 0.0
    %2049 = vmatmul.mubr.f32.gmra.mrb[0].mxu0 %v1947
    %v2050 = vpop.f32.mrb[0].mxu0
    %v2051 = vadd.f32 0.0, %v2050
    %v2052 = vpop.f32.mrb[0].mxu0
    %2053 = vdwg.mxu0
    %s2054 = scalar_lea.vmem [#allocation7], 16
    %v2055 = vld [vmem:[%s2054] sm:$0xff]
    %v2057 = vsel %vm233, %v2055, 0
    %2059 = vmatprep.subr.mxu0 0.0
    %2060 = vmatpush1.msra.mxu0 %v1916
    %2061 = vmatprep.subr.mxu0 0.0
    %2062 = vmatpush1.msra.mxu0 %v1917
    %2063 = vmatprep.subr.mxu0 0.0
    %2064 = vmatpush1.msra.mxu0 %v1918
    %2065 = vmatprep.subr.mxu0 0.0
    %2066 = vmatpush1.msra.mxu0 %v1919
    %2067 = vmatprep.subr.mxu0 0.0
    %2068 = vmatpush1.msra.mxu0 0.0
    %2069 = vmatprep.subr.mxu0 0.0
    %2070 = vmatpush1.msra.mxu0 0.0
    %2071 = vmatprep.subr.mxu0 0.0
    %2072 = vmatpush1.msra.mxu0 0.0
    %2073 = vmatprep.subr.mxu0 0.0
    %2074 = vmatpush1.msra.mxu0 0.0
    %2075 = vmatprep.subr.mxu0 0.0
    %2076 = vmatpush1.msra.mxu0 0.0
    %2077 = vmatprep.subr.mxu0 0.0
    %2078 = vmatpush1.msra.mxu0 0.0
    %2079 = vmatprep.subr.mxu0 0.0
    %2080 = vmatpush1.msra.mxu0 0.0
    %2081 = vmatprep.subr.mxu0 0.0
    %2082 = vmatpush1.msra.mxu0 0.0
    %2083 = vmatprep.subr.mxu0 0.0
    %2084 = vmatpush1.msra.mxu0 0.0
    %2085 = vmatprep.subr.mxu0 0.0
    %2086 = vmatpush1.msra.mxu0 0.0
    %2087 = vmatprep.subr.mxu0 0.0
    %2088 = vmatpush1.msra.mxu0 0.0
    %2089 = vmatprep.subr.mxu0 0.0
    %2090 = vmatpush1.msra.mxu0 0.0
    %2091 = vmatprep.subr.mxu0 0.0
    %2092 = vmatpush1.msra.mxu0 0.0
    %2093 = vmatprep.subr.mxu0 0.0
    %2094 = vmatpush1.msra.mxu0 0.0
    %2095 = vmatprep.subr.mxu0 0.0
    %2096 = vmatpush1.msra.mxu0 0.0
    %2097 = vmatprep.subr.mxu0 0.0
    %2098 = vmatpush1.msra.mxu0 0.0
    %2099 = vmatprep.subr.mxu0 0.0
    %2100 = vmatpush1.msra.mxu0 0.0
    %2101 = vmatprep.subr.mxu0 0.0
    %2102 = vmatpush1.msra.mxu0 0.0
    %2103 = vmatprep.subr.mxu0 0.0
    %2104 = vmatpush1.msra.mxu0 0.0
    %2105 = vmatprep.subr.mxu0 0.0
    %2106 = vmatpush1.msra.mxu0 0.0
    %2107 = vmatprep.subr.mxu0 0.0
    %2108 = vmatpush1.msra.mxu0 0.0
    %2109 = vmatprep.subr.mxu0 0.0
    %2110 = vmatpush1.msra.mxu0 0.0
    %2111 = vmatprep.subr.mxu0 0.0
    %2112 = vmatpush1.msra.mxu0 0.0
    %2113 = vmatprep.subr.mxu0 0.0
    %2114 = vmatpush1.msra.mxu0 0.0
    %2115 = vmatprep.subr.mxu0 0.0
    %2116 = vmatpush1.msra.mxu0 0.0
    %2117 = vmatprep.subr.mxu0 0.0
    %2118 = vmatpush1.msra.mxu0 0.0
    %2119 = vmatprep.subr.mxu0 0.0
    %2120 = vmatpush1.msra.mxu0 0.0
    %2121 = vmatprep.subr.mxu0 0.0
    %2122 = vmatpush1.msra.mxu0 0.0
    %2123 = vmatprep.mubr.f32.mxu0 0.0
    %2124 = vmatmul.mubr.f32.gmra.mrb[0].mxu0 %v2057
    %v2125 = vpop.f32.mrb[0].mxu0
    %v2126 = vadd.f32 0.0, %v2125
    %v2127 = vpop.f32.mrb[0].mxu0
    %2128 = vdwg.mxu0
    %v2129 = vadd.f32 %v2016, %v2126
    %v2131 = vsel %vm233, %v2129, 0
    %2133 = vmatprep.subr.mxu0 0.0
    %2134 = vmatpush1.msra.mxu0 %v1916
    %2135 = vmatprep.subr.mxu0 0.0
    %2136 = vmatpush1.msra.mxu0 %v1917
    %2137 = vmatprep.subr.mxu0 0.0
    %2138 = vmatpush1.msra.mxu0 %v1918
    %2139 = vmatprep.subr.mxu0 0.0
    %2140 = vmatpush1.msra.mxu0 %v1919
    %2141 = vmatprep.subr.mxu0 0.0
    %2142 = vmatpush1.msra.mxu0 0.0
    %2143 = vmatprep.subr.mxu0 0.0
    %2144 = vmatpush1.msra.mxu0 0.0
    %2145 = vmatprep.subr.mxu0 0.0
    %2146 = vmatpush1.msra.mxu0 0.0
    %2147 = vmatprep.subr.mxu0 0.0
    %2148 = vmatpush1.msra.mxu0 0.0
    %2149 = vmatprep.subr.mxu0 0.0
    %2150 = vmatpush1.msra.mxu0 0.0
    %2151 = vmatprep.subr.mxu0 0.0
    %2152 = vmatpush1.msra.mxu0 0.0
    %2153 = vmatprep.subr.mxu0 0.0
    %2154 = vmatpush1.msra.mxu0 0.0
    %2155 = vmatprep.subr.mxu0 0.0
    %2156 = vmatpush1.msra.mxu0 0.0
    %2157 = vmatprep.subr.mxu0 0.0
    %2158 = vmatpush1.msra.mxu0 0.0
    %2159 = vmatprep.subr.mxu0 0.0
    %2160 = vmatpush1.msra.mxu0 0.0
    %2161 = vmatprep.subr.mxu0 0.0
    %2162 = vmatpush1.msra.mxu0 0.0
    %2163 = vmatprep.subr.mxu0 0.0
    %2164 = vmatpush1.msra.mxu0 0.0
    %2165 = vmatprep.subr.mxu0 0.0
    %2166 = vmatpush1.msra.mxu0 0.0
    %2167 = vmatprep.subr.mxu0 0.0
    %2168 = vmatpush1.msra.mxu0 0.0
    %2169 = vmatprep.subr.mxu0 0.0
    %2170 = vmatpush1.msra.mxu0 0.0
    %2171 = vmatprep.subr.mxu0 0.0
    %2172 = vmatpush1.msra.mxu0 0.0
    %2173 = vmatprep.subr.mxu0 0.0
    %2174 = vmatpush1.msra.mxu0 0.0
    %2175 = vmatprep.subr.mxu0 0.0
    %2176 = vmatpush1.msra.mxu0 0.0
    %2177 = vmatprep.subr.mxu0 0.0
    %2178 = vmatpush1.msra.mxu0 0.0
    %2179 = vmatprep.subr.mxu0 0.0
    %2180 = vmatpush1.msra.mxu0 0.0
    %2181 = vmatprep.subr.mxu0 0.0
    %2182 = vmatpush1.msra.mxu0 0.0
    %2183 = vmatprep.subr.mxu0 0.0
    %2184 = vmatpush1.msra.mxu0 0.0
    %2185 = vmatprep.subr.mxu0 0.0
    %2186 = vmatpush1.msra.mxu0 0.0
    %2187 = vmatprep.subr.mxu0 0.0
    %2188 = vmatpush1.msra.mxu0 0.0
    %2189 = vmatprep.subr.mxu0 0.0
    %2190 = vmatpush1.msra.mxu0 0.0
    %2191 = vmatprep.subr.mxu0 0.0
    %2192 = vmatpush1.msra.mxu0 0.0
    %2193 = vmatprep.subr.mxu0 0.0
    %2194 = vmatpush1.msra.mxu0 0.0
    %2195 = vmatprep.subr.mxu0 0.0
    %2196 = vmatpush1.msra.mxu0 0.0
    %2197 = vmatprep.mubr.f32.mxu0 0.0
    %2198 = vmatmul.mubr.f32.gmra.mrb[0].mxu0 %v2131
    %v2199 = vpop.f32.mrb[0].mxu0
    %v2200 = vadd.f32 0.0, %v2199
    %v2201 = vpop.f32.mrb[0].mxu0
    %2202 = vdwg.mxu0
    %v2203 = vadd.f32 %v2021, %v2200
    %v2205 = vsel %vm233, %v2203, 0
    %2207 = vmatprep.subr.mxu0 0.0
    %2208 = vmatpush1.msra.mxu0 %v1916
    %2209 = vmatprep.subr.mxu0 0.0
    %2210 = vmatpush1.msra.mxu0 %v1917
    %2211 = vmatprep.subr.mxu0 0.0
    %2212 = vmatpush1.msra.mxu0 %v1918
    %2213 = vmatprep.subr.mxu0 0.0
    %2214 = vmatpush1.msra.mxu0 %v1919
    %2215 = vmatprep.subr.mxu0 0.0
    %2216 = vmatpush1.msra.mxu0 0.0
    %2217 = vmatprep.subr.mxu0 0.0
    %2218 = vmatpush1.msra.mxu0 0.0
    %2219 = vmatprep.subr.mxu0 0.0
    %2220 = vmatpush1.msra.mxu0 0.0
    %2221 = vmatprep.subr.mxu0 0.0
    %2222 = vmatpush1.msra.mxu0 0.0
    %2223 = vmatprep.subr.mxu0 0.0
    %2224 = vmatpush1.msra.mxu0 0.0
    %2225 = vmatprep.subr.mxu0 0.0
    %2226 = vmatpush1.msra.mxu0 0.0
    %2227 = vmatprep.subr.mxu0 0.0
    %2228 = vmatpush1.msra.mxu0 0.0
    %2229 = vmatprep.subr.mxu0 0.0
    %2230 = vmatpush1.msra.mxu0 0.0
    %2231 = vmatprep.subr.mxu0 0.0
    %2232 = vmatpush1.msra.mxu0 0.0
    %2233 = vmatprep.subr.mxu0 0.0
    %2234 = vmatpush1.msra.mxu0 0.0
    %2235 = vmatprep.subr.mxu0 0.0
    %2236 = vmatpush1.msra.mxu0 0.0
    %2237 = vmatprep.subr.mxu0 0.0
    %2238 = vmatpush1.msra.mxu0 0.0
    %2239 = vmatprep.subr.mxu0 0.0
    %2240 = vmatpush1.msra.mxu0 0.0
    %2241 = vmatprep.subr.mxu0 0.0
    %2242 = vmatpush1.msra.mxu0 0.0
    %2243 = vmatprep.subr.mxu0 0.0
    %2244 = vmatpush1.msra.mxu0 0.0
    %2245 = vmatprep.subr.mxu0 0.0
    %2246 = vmatpush1.msra.mxu0 0.0
    %2247 = vmatprep.subr.mxu0 0.0
    %2248 = vmatpush1.msra.mxu0 0.0
    %2249 = vmatprep.subr.mxu0 0.0
    %2250 = vmatpush1.msra.mxu0 0.0
    %2251 = vmatprep.subr.mxu0 0.0
    %2252 = vmatpush1.msra.mxu0 0.0
    %2253 = vmatprep.subr.mxu0 0.0
    %2254 = vmatpush1.msra.mxu0 0.0
    %2255 = vmatprep.subr.mxu0 0.0
    %2256 = vmatpush1.msra.mxu0 0.0
    %2257 = vmatprep.subr.mxu0 0.0
    %2258 = vmatpush1.msra.mxu0 0.0
    %2259 = vmatprep.subr.mxu0 0.0
    %2260 = vmatpush1.msra.mxu0 0.0
    %2261 = vmatprep.subr.mxu0 0.0
    %2262 = vmatpush1.msra.mxu0 0.0
    %2263 = vmatprep.subr.mxu0 0.0
    %2264 = vmatpush1.msra.mxu0 0.0
    %2265 = vmatprep.subr.mxu0 0.0
    %2266 = vmatpush1.msra.mxu0 0.0
    %2267 = vmatprep.subr.mxu0 0.0
    %2268 = vmatpush1.msra.mxu0 0.0
    %2269 = vmatprep.subr.mxu0 0.0
    %2270 = vmatpush1.msra.mxu0 0.0
    %2271 = vmatprep.mubr.f32.mxu0 0.0
    %2272 = vmatmul.mubr.f32.gmra.mrb[0].mxu0 %v2205
    %v2273 = vpop.f32.mrb[0].mxu0
    %v2274 = vadd.f32 0.0, %v2273
    %v2275 = vpop.f32.mrb[0].mxu0
    %2276 = vdwg.mxu0
    %v2277 = vadd.f32 %v2026, %v2274
    %v2279 = vsel %vm233, %v2277, 0
    %2281 = vmatprep.subr.mxu0 0.0
    %2282 = vmatpush1.msra.mxu0 %v1916
    %2283 = vmatprep.subr.mxu0 0.0
    %2284 = vmatpush1.msra.mxu0 %v1917
    %2285 = vmatprep.subr.mxu0 0.0
    %2286 = vmatpush1.msra.mxu0 %v1918
    %2287 = vmatprep.subr.mxu0 0.0
    %2288 = vmatpush1.msra.mxu0 %v1919
    %2289 = vmatprep.subr.mxu0 0.0
    %2290 = vmatpush1.msra.mxu0 0.0
    %2291 = vmatprep.subr.mxu0 0.0
    %2292 = vmatpush1.msra.mxu0 0.0
    %2293 = vmatprep.subr.mxu0 0.0
    %2294 = vmatpush1.msra.mxu0 0.0
    %2295 = vmatprep.subr.mxu0 0.0
    %2296 = vmatpush1.msra.mxu0 0.0
    %2297 = vmatprep.subr.mxu0 0.0
    %2298 = vmatpush1.msra.mxu0 0.0
    %2299 = vmatprep.subr.mxu0 0.0
    %2300 = vmatpush1.msra.mxu0 0.0
    %2301 = vmatprep.subr.mxu0 0.0
    %2302 = vmatpush1.msra.mxu0 0.0
    %2303 = vmatprep.subr.mxu0 0.0
    %2304 = vmatpush1.msra.mxu0 0.0
    %2305 = vmatprep.subr.mxu0 0.0
    %2306 = vmatpush1.msra.mxu0 0.0
    %2307 = vmatprep.subr.mxu0 0.0
    %2308 = vmatpush1.msra.mxu0 0.0
    %2309 = vmatprep.subr.mxu0 0.0
    %2310 = vmatpush1.msra.mxu0 0.0
    %2311 = vmatprep.subr.mxu0 0.0
    %2312 = vmatpush1.msra.mxu0 0.0
    %2313 = vmatprep.subr.mxu0 0.0
    %2314 = vmatpush1.msra.mxu0 0.0
    %2315 = vmatprep.subr.mxu0 0.0
    %2316 = vmatpush1.msra.mxu0 0.0
    %2317 = vmatprep.subr.mxu0 0.0
    %2318 = vmatpush1.msra.mxu0 0.0
    %2319 = vmatprep.subr.mxu0 0.0
    %2320 = vmatpush1.msra.mxu0 0.0
    %2321 = vmatprep.subr.mxu0 0.0
    %2322 = vmatpush1.msra.mxu0 0.0
    %2323 = vmatprep.subr.mxu0 0.0
    %2324 = vmatpush1.msra.mxu0 0.0
    %2325 = vmatprep.subr.mxu0 0.0
    %2326 = vmatpush1.msra.mxu0 0.0
    %2327 = vmatprep.subr.mxu0 0.0
    %2328 = vmatpush1.msra.mxu0 0.0
    %2329 = vmatprep.subr.mxu0 0.0
    %2330 = vmatpush1.msra.mxu0 0.0
    %2331 = vmatprep.subr.mxu0 0.0
    %2332 = vmatpush1.msra.mxu0 0.0
    %2333 = vmatprep.subr.mxu0 0.0
    %2334 = vmatpush1.msra.mxu0 0.0
    %2335 = vmatprep.subr.mxu0 0.0
    %2336 = vmatpush1.msra.mxu0 0.0
    %2337 = vmatprep.subr.mxu0 0.0
    %2338 = vmatpush1.msra.mxu0 0.0
    %2339 = vmatprep.subr.mxu0 0.0
    %2340 = vmatpush1.msra.mxu0 0.0
    %2341 = vmatprep.subr.mxu0 0.0
    %2342 = vmatpush1.msra.mxu0 0.0
    %2343 = vmatprep.subr.mxu0 0.0
    %2344 = vmatpush1.msra.mxu0 0.0
    %2345 = vmatprep.mubr.f32.mxu0 0.0
    %2346 = vmatmul.mubr.f32.gmra.mrb[0].mxu0 %v2279
    %v2347 = vpop.f32.mrb[0].mxu0
    %v2348 = vadd.f32 0.0, %v2347
    %v2349 = vpop.f32.mrb[0].mxu0
    %2350 = vdwg.mxu0
    %v2351 = vadd.f32 %v2031, %v2348
    %v2353 = vsel %vm233, %v2351, 0
    %2355 = vmatprep.subr.mxu0 0.0
    %2356 = vmatpush1.msra.mxu0 %v1916
    %2357 = vmatprep.subr.mxu0 0.0
    %2358 = vmatpush1.msra.mxu0 %v1917
    %2359 = vmatprep.subr.mxu0 0.0
    %2360 = vmatpush1.msra.mxu0 %v1918
    %2361 = vmatprep.subr.mxu0 0.0
    %2362 = vmatpush1.msra.mxu0 %v1919
    %2363 = vmatprep.subr.mxu0 0.0
    %2364 = vmatpush1.msra.mxu0 0.0
    %2365 = vmatprep.subr.mxu0 0.0
    %2366 = vmatpush1.msra.mxu0 0.0
    %2367 = vmatprep.subr.mxu0 0.0
    %2368 = vmatpush1.msra.mxu0 0.0
    %2369 = vmatprep.subr.mxu0 0.0
    %2370 = vmatpush1.msra.mxu0 0.0
    %2371 = vmatprep.subr.mxu0 0.0
    %2372 = vmatpush1.msra.mxu0 0.0
    %2373 = vmatprep.subr.mxu0 0.0
    %2374 = vmatpush1.msra.mxu0 0.0
    %2375 = vmatprep.subr.mxu0 0.0
    %2376 = vmatpush1.msra.mxu0 0.0
    %2377 = vmatprep.subr.mxu0 0.0
    %2378 = vmatpush1.msra.mxu0 0.0
    %2379 = vmatprep.subr.mxu0 0.0
    %2380 = vmatpush1.msra.mxu0 0.0
    %2381 = vmatprep.subr.mxu0 0.0
    %2382 = vmatpush1.msra.mxu0 0.0
    %2383 = vmatprep.subr.mxu0 0.0
    %2384 = vmatpush1.msra.mxu0 0.0
    %2385 = vmatprep.subr.mxu0 0.0
    %2386 = vmatpush1.msra.mxu0 0.0
    %2387 = vmatprep.subr.mxu0 0.0
    %2388 = vmatpush1.msra.mxu0 0.0
    %2389 = vmatprep.subr.mxu0 0.0
    %2390 = vmatpush1.msra.mxu0 0.0
    %2391 = vmatprep.subr.mxu0 0.0
    %2392 = vmatpush1.msra.mxu0 0.0
    %2393 = vmatprep.subr.mxu0 0.0
    %2394 = vmatpush1.msra.mxu0 0.0
    %2395 = vmatprep.subr.mxu0 0.0
    %2396 = vmatpush1.msra.mxu0 0.0
    %2397 = vmatprep.subr.mxu0 0.0
    %2398 = vmatpush1.msra.mxu0 0.0
    %2399 = vmatprep.subr.mxu0 0.0
    %2400 = vmatpush1.msra.mxu0 0.0
    %2401 = vmatprep.subr.mxu0 0.0
    %2402 = vmatpush1.msra.mxu0 0.0
    %2403 = vmatprep.subr.mxu0 0.0
    %2404 = vmatpush1.msra.mxu0 0.0
    %2405 = vmatprep.subr.mxu0 0.0
    %2406 = vmatpush1.msra.mxu0 0.0
    %2407 = vmatprep.subr.mxu0 0.0
    %2408 = vmatpush1.msra.mxu0 0.0
    %2409 = vmatprep.subr.mxu0 0.0
    %2410 = vmatpush1.msra.mxu0 0.0
    %2411 = vmatprep.subr.mxu0 0.0
    %2412 = vmatpush1.msra.mxu0 0.0
    %2413 = vmatprep.subr.mxu0 0.0
    %2414 = vmatpush1.msra.mxu0 0.0
    %2415 = vmatprep.subr.mxu0 0.0
    %2416 = vmatpush1.msra.mxu0 0.0
    %2417 = vmatprep.subr.mxu0 0.0
    %2418 = vmatpush1.msra.mxu0 0.0
    %2419 = vmatprep.mubr.f32.mxu0 0.0
    %2420 = vmatmul.mubr.f32.gmra.mrb[0].mxu0 %v2353
    %v2421 = vpop.f32.mrb[0].mxu0
    %v2422 = vadd.f32 0.0, %v2421
    %v2423 = vpop.f32.mrb[0].mxu0
    %2424 = vdwg.mxu0
    %v2425 = vadd.f32 %v2036, %v2422
    %v2427 = vsel %vm233, %v2425, 0
    %2429 = vmatprep.subr.mxu0 0.0
    %2430 = vmatpush1.msra.mxu0 %v1916
    %2431 = vmatprep.subr.mxu0 0.0
    %2432 = vmatpush1.msra.mxu0 %v1917
    %2433 = vmatprep.subr.mxu0 0.0
    %2434 = vmatpush1.msra.mxu0 %v1918
    %2435 = vmatprep.subr.mxu0 0.0
    %2436 = vmatpush1.msra.mxu0 %v1919
    %2437 = vmatprep.subr.mxu0 0.0
    %2438 = vmatpush1.msra.mxu0 0.0
    %2439 = vmatprep.subr.mxu0 0.0
    %2440 = vmatpush1.msra.mxu0 0.0
    %2441 = vmatprep.subr.mxu0 0.0
    %2442 = vmatpush1.msra.mxu0 0.0
    %2443 = vmatprep.subr.mxu0 0.0
    %2444 = vmatpush1.msra.mxu0 0.0
    %2445 = vmatprep.subr.mxu0 0.0
    %2446 = vmatpush1.msra.mxu0 0.0
    %2447 = vmatprep.subr.mxu0 0.0
    %2448 = vmatpush1.msra.mxu0 0.0
    %2449 = vmatprep.subr.mxu0 0.0
    %2450 = vmatpush1.msra.mxu0 0.0
    %2451 = vmatprep.subr.mxu0 0.0
    %2452 = vmatpush1.msra.mxu0 0.0
    %2453 = vmatprep.subr.mxu0 0.0
    %2454 = vmatpush1.msra.mxu0 0.0
    %2455 = vmatprep.subr.mxu0 0.0
    %2456 = vmatpush1.msra.mxu0 0.0
    %2457 = vmatprep.subr.mxu0 0.0
    %2458 = vmatpush1.msra.mxu0 0.0
    %2459 = vmatprep.subr.mxu0 0.0
    %2460 = vmatpush1.msra.mxu0 0.0
    %2461 = vmatprep.subr.mxu0 0.0
    %2462 = vmatpush1.msra.mxu0 0.0
    %2463 = vmatprep.subr.mxu0 0.0
    %2464 = vmatpush1.msra.mxu0 0.0
    %2465 = vmatprep.subr.mxu0 0.0
    %2466 = vmatpush1.msra.mxu0 0.0
    %2467 = vmatprep.subr.mxu0 0.0
    %2468 = vmatpush1.msra.mxu0 0.0
    %2469 = vmatprep.subr.mxu0 0.0
    %2470 = vmatpush1.msra.mxu0 0.0
    %2471 = vmatprep.subr.mxu0 0.0
    %2472 = vmatpush1.msra.mxu0 0.0
    %2473 = vmatprep.subr.mxu0 0.0
    %2474 = vmatpush1.msra.mxu0 0.0
    %2475 = vmatprep.subr.mxu0 0.0
    %2476 = vmatpush1.msra.mxu0 0.0
    %2477 = vmatprep.subr.mxu0 0.0
    %2478 = vmatpush1.msra.mxu0 0.0
    %2479 = vmatprep.subr.mxu0 0.0
    %2480 = vmatpush1.msra.mxu0 0.0
    %2481 = vmatprep.subr.mxu0 0.0
    %2482 = vmatpush1.msra.mxu0 0.0
    %2483 = vmatprep.subr.mxu0 0.0
    %2484 = vmatpush1.msra.mxu0 0.0
    %2485 = vmatprep.subr.mxu0 0.0
    %2486 = vmatpush1.msra.mxu0 0.0
    %2487 = vmatprep.subr.mxu0 0.0
    %2488 = vmatpush1.msra.mxu0 0.0
    %2489 = vmatprep.subr.mxu0 0.0
    %2490 = vmatpush1.msra.mxu0 0.0
    %2491 = vmatprep.subr.mxu0 0.0
    %2492 = vmatpush1.msra.mxu0 0.0
    %2493 = vmatprep.mubr.f32.mxu0 0.0
    %2494 = vmatmul.mubr.f32.gmra.mrb[0].mxu0 %v2427
    %v2495 = vpop.f32.mrb[0].mxu0
    %v2496 = vadd.f32 0.0, %v2495
    %v2497 = vpop.f32.mrb[0].mxu0
    %2498 = vdwg.mxu0
    %v2499 = vadd.f32 %v2041, %v2496
    %v2501 = vsel %vm233, %v2499, 0
    %2503 = vmatprep.subr.mxu0 0.0
    %2504 = vmatpush1.msra.mxu0 %v1916
    %2505 = vmatprep.subr.mxu0 0.0
    %2506 = vmatpush1.msra.mxu0 %v1917
    %2507 = vmatprep.subr.mxu0 0.0
    %2508 = vmatpush1.msra.mxu0 %v1918
    %2509 = vmatprep.subr.mxu0 0.0
    %2510 = vmatpush1.msra.mxu0 %v1919
    %2511 = vmatprep.subr.mxu0 0.0
    %2512 = vmatpush1.msra.mxu0 0.0
    %2513 = vmatprep.subr.mxu0 0.0
    %2514 = vmatpush1.msra.mxu0 0.0
    %2515 = vmatprep.subr.mxu0 0.0
    %2516 = vmatpush1.msra.mxu0 0.0
    %2517 = vmatprep.subr.mxu0 0.0
    %2518 = vmatpush1.msra.mxu0 0.0
    %2519 = vmatprep.subr.mxu0 0.0
    %2520 = vmatpush1.msra.mxu0 0.0
    %2521 = vmatprep.subr.mxu0 0.0
    %2522 = vmatpush1.msra.mxu0 0.0
    %2523 = vmatprep.subr.mxu0 0.0
    %2524 = vmatpush1.msra.mxu0 0.0
    %2525 = vmatprep.subr.mxu0 0.0
    %2526 = vmatpush1.msra.mxu0 0.0
    %2527 = vmatprep.subr.mxu0 0.0
    %2528 = vmatpush1.msra.mxu0 0.0
    %2529 = vmatprep.subr.mxu0 0.0
    %2530 = vmatpush1.msra.mxu0 0.0
    %2531 = vmatprep.subr.mxu0 0.0
    %2532 = vmatpush1.msra.mxu0 0.0
    %2533 = vmatprep.subr.mxu0 0.0
    %2534 = vmatpush1.msra.mxu0 0.0
    %2535 = vmatprep.subr.mxu0 0.0
    %2536 = vmatpush1.msra.mxu0 0.0
    %2537 = vmatprep.subr.mxu0 0.0
    %2538 = vmatpush1.msra.mxu0 0.0
    %2539 = vmatprep.subr.mxu0 0.0
    %2540 = vmatpush1.msra.mxu0 0.0
    %2541 = vmatprep.subr.mxu0 0.0
    %2542 = vmatpush1.msra.mxu0 0.0
    %2543 = vmatprep.subr.mxu0 0.0
    %2544 = vmatpush1.msra.mxu0 0.0
    %2545 = vmatprep.subr.mxu0 0.0
    %2546 = vmatpush1.msra.mxu0 0.0
    %2547 = vmatprep.subr.mxu0 0.0
    %2548 = vmatpush1.msra.mxu0 0.0
    %2549 = vmatprep.subr.mxu0 0.0
    %2550 = vmatpush1.msra.mxu0 0.0
    %2551 = vmatprep.subr.mxu0 0.0
    %2552 = vmatpush1.msra.mxu0 0.0
    %2553 = vmatprep.subr.mxu0 0.0
    %2554 = vmatpush1.msra.mxu0 0.0
    %2555 = vmatprep.subr.mxu0 0.0
    %2556 = vmatpush1.msra.mxu0 0.0
    %2557 = vmatprep.subr.mxu0 0.0
    %2558 = vmatpush1.msra.mxu0 0.0
    %2559 = vmatprep.subr.mxu0 0.0
    %2560 = vmatpush1.msra.mxu0 0.0
    %2561 = vmatprep.subr.mxu0 0.0
    %2562 = vmatpush1.msra.mxu0 0.0
    %2563 = vmatprep.subr.mxu0 0.0
    %2564 = vmatpush1.msra.mxu0 0.0
    %2565 = vmatprep.subr.mxu0 0.0
    %2566 = vmatpush1.msra.mxu0 0.0
    %2567 = vmatprep.mubr.f32.mxu0 0.0
    %2568 = vmatmul.mubr.f32.gmra.mrb[0].mxu0 %v2501
    %v2569 = vpop.f32.mrb[0].mxu0
    %v2570 = vadd.f32 0.0, %v2569
    %v2571 = vpop.f32.mrb[0].mxu0
    %2572 = vdwg.mxu0
    %v2573 = vadd.f32 %v2046, %v2570
    %v2575 = vsel %vm233, %v2573, 0
    %2577 = vmatprep.subr.mxu0 0.0
    %2578 = vmatpush1.msra.mxu0 %v1916
    %2579 = vmatprep.subr.mxu0 0.0
    %2580 = vmatpush1.msra.mxu0 %v1917
    %2581 = vmatprep.subr.mxu0 0.0
    %2582 = vmatpush1.msra.mxu0 %v1918
    %2583 = vmatprep.subr.mxu0 0.0
    %2584 = vmatpush1.msra.mxu0 %v1919
    %2585 = vmatprep.subr.mxu0 0.0
    %2586 = vmatpush1.msra.mxu0 0.0
    %2587 = vmatprep.subr.mxu0 0.0
    %2588 = vmatpush1.msra.mxu0 0.0
    %2589 = vmatprep.subr.mxu0 0.0
    %2590 = vmatpush1.msra.mxu0 0.0
    %2591 = vmatprep.subr.mxu0 0.0
    %2592 = vmatpush1.msra.mxu0 0.0
    %2593 = vmatprep.subr.mxu0 0.0
    %2594 = vmatpush1.msra.mxu0 0.0
    %2595 = vmatprep.subr.mxu0 0.0
    %2596 = vmatpush1.msra.mxu0 0.0
    %2597 = vmatprep.subr.mxu0 0.0
    %2598 = vmatpush1.msra.mxu0 0.0
    %2599 = vmatprep.subr.mxu0 0.0
    %2600 = vmatpush1.msra.mxu0 0.0
    %2601 = vmatprep.subr.mxu0 0.0
    %2602 = vmatpush1.msra.mxu0 0.0
    %2603 = vmatprep.subr.mxu0 0.0
    %2604 = vmatpush1.msra.mxu0 0.0
    %2605 = vmatprep.subr.mxu0 0.0
    %2606 = vmatpush1.msra.mxu0 0.0
    %2607 = vmatprep.subr.mxu0 0.0
    %2608 = vmatpush1.msra.mxu0 0.0
    %2609 = vmatprep.subr.mxu0 0.0
    %2610 = vmatpush1.msra.mxu0 0.0
    %2611 = vmatprep.subr.mxu0 0.0
    %2612 = vmatpush1.msra.mxu0 0.0
    %2613 = vmatprep.subr.mxu0 0.0
    %2614 = vmatpush1.msra.mxu0 0.0
    %2615 = vmatprep.subr.mxu0 0.0
    %2616 = vmatpush1.msra.mxu0 0.0
    %2617 = vmatprep.subr.mxu0 0.0
    %2618 = vmatpush1.msra.mxu0 0.0
    %2619 = vmatprep.subr.mxu0 0.0
    %2620 = vmatpush1.msra.mxu0 0.0
    %2621 = vmatprep.subr.mxu0 0.0
    %2622 = vmatpush1.msra.mxu0 0.0
    %2623 = vmatprep.subr.mxu0 0.0
    %2624 = vmatpush1.msra.mxu0 0.0
    %2625 = vmatprep.subr.mxu0 0.0
    %2626 = vmatpush1.msra.mxu0 0.0
    %2627 = vmatprep.subr.mxu0 0.0
    %2628 = vmatpush1.msra.mxu0 0.0
    %2629 = vmatprep.subr.mxu0 0.0
    %2630 = vmatpush1.msra.mxu0 0.0
    %2631 = vmatprep.subr.mxu0 0.0
    %2632 = vmatpush1.msra.mxu0 0.0
    %2633 = vmatprep.subr.mxu0 0.0
    %2634 = vmatpush1.msra.mxu0 0.0
    %2635 = vmatprep.subr.mxu0 0.0
    %2636 = vmatpush1.msra.mxu0 0.0
    %2637 = vmatprep.subr.mxu0 0.0
    %2638 = vmatpush1.msra.mxu0 0.0
    %2639 = vmatprep.subr.mxu0 0.0
    %2640 = vmatpush1.msra.mxu0 0.0
    %2641 = vmatprep.mubr.f32.mxu0 0.0
    %2642 = vmatmul.mubr.f32.gmra.mrb[0].mxu0 %v2575
    %v2643 = vpop.f32.mrb[0].mxu0
    %v2644 = vadd.f32 0.0, %v2643
    %v2645 = vpop.f32.mrb[0].mxu0
    %2646 = vdwg.mxu0
    %v2647 = vadd.f32 %v2051, %v2644
    %v2649 = vsel %vm233, %v2647, 0
    %2651 = vmatprep.subr.mxu0 0.0
    %2652 = vmatpush1.msra.mxu0 %v1921
    %2653 = vmatprep.subr.mxu0 0.0
    %2654 = vmatpush1.msra.mxu0 %v1922
    %2655 = vmatprep.subr.mxu0 0.0
    %2656 = vmatpush1.msra.mxu0 %v1923
    %2657 = vmatprep.subr.mxu0 0.0
    %2658 = vmatpush1.msra.mxu0 %v1924
    %2659 = vmatprep.subr.mxu0 0.0
    %2660 = vmatpush1.msra.mxu0 0.0
    %2661 = vmatprep.subr.mxu0 0.0
    %2662 = vmatpush1.msra.mxu0 0.0
    %2663 = vmatprep.subr.mxu0 0.0
    %2664 = vmatpush1.msra.mxu0 0.0
    %2665 = vmatprep.subr.mxu0 0.0
    %2666 = vmatpush1.msra.mxu0 0.0
    %2667 = vmatprep.subr.mxu0 0.0
    %2668 = vmatpush1.msra.mxu0 0.0
    %2669 = vmatprep.subr.mxu0 0.0
    %2670 = vmatpush1.msra.mxu0 0.0
    %2671 = vmatprep.subr.mxu0 0.0
    %2672 = vmatpush1.msra.mxu0 0.0
    %2673 = vmatprep.subr.mxu0 0.0
    %2674 = vmatpush1.msra.mxu0 0.0
    %2675 = vmatprep.subr.mxu0 0.0
    %2676 = vmatpush1.msra.mxu0 0.0
    %2677 = vmatprep.subr.mxu0 0.0
    %2678 = vmatpush1.msra.mxu0 0.0
    %2679 = vmatprep.subr.mxu0 0.0
    %2680 = vmatpush1.msra.mxu0 0.0
    %2681 = vmatprep.subr.mxu0 0.0
    %2682 = vmatpush1.msra.mxu0 0.0
    %2683 = vmatprep.subr.mxu0 0.0
    %2684 = vmatpush1.msra.mxu0 0.0
    %2685 = vmatprep.subr.mxu0 0.0
    %2686 = vmatpush1.msra.mxu0 0.0
    %2687 = vmatprep.subr.mxu0 0.0
    %2688 = vmatpush1.msra.mxu0 0.0
    %2689 = vmatprep.subr.mxu0 0.0
    %2690 = vmatpush1.msra.mxu0 0.0
    %2691 = vmatprep.subr.mxu0 0.0
    %2692 = vmatpush1.msra.mxu0 0.0
    %2693 = vmatprep.subr.mxu0 0.0
    %2694 = vmatpush1.msra.mxu0 0.0
    %2695 = vmatprep.subr.mxu0 0.0
    %2696 = vmatpush1.msra.mxu0 0.0
    %2697 = vmatprep.subr.mxu0 0.0
    %2698 = vmatpush1.msra.mxu0 0.0
    %2699 = vmatprep.subr.mxu0 0.0
    %2700 = vmatpush1.msra.mxu0 0.0
    %2701 = vmatprep.subr.mxu0 0.0
    %2702 = vmatpush1.msra.mxu0 0.0
    %2703 = vmatprep.subr.mxu0 0.0
    %2704 = vmatpush1.msra.mxu0 0.0
    %2705 = vmatprep.subr.mxu0 0.0
    %2706 = vmatpush1.msra.mxu0 0.0
    %2707 = vmatprep.subr.mxu0 0.0
    %2708 = vmatpush1.msra.mxu0 0.0
    %2709 = vmatprep.subr.mxu0 0.0
    %2710 = vmatpush1.msra.mxu0 0.0
    %2711 = vmatprep.subr.mxu0 0.0
    %2712 = vmatpush1.msra.mxu0 0.0
    %2713 = vmatprep.subr.mxu0 0.0
    %2714 = vmatpush1.msra.mxu0 0.0
    %2715 = vmatprep.mubr.f32.mxu0 0.0
    %2716 = vmatmul.mubr.f32.gmra.mrb[0].mxu0 %v2131
    %v2717 = vpop.f32.mrb[0].mxu0
    %v2718 = vadd.f32 0.0, %v2717
    %v2719 = vpop.f32.mrb[0].mxu0
    %2720 = vmatprep.mubr.f32.mxu0 0.0
    %2721 = vmatmul.mubr.f32.gmra.mrb[0].mxu0 %v2205
    %v2722 = vpop.f32.mrb[0].mxu0
    %v2723 = vadd.f32 0.0, %v2722
    %v2724 = vpop.f32.mrb[0].mxu0
    %2725 = vmatprep.mubr.f32.mxu0 0.0
    %2726 = vmatmul.mubr.f32.gmra.mrb[0].mxu0 %v2279
    %v2727 = vpop.f32.mrb[0].mxu0
    %v2728 = vadd.f32 0.0, %v2727
    %v2729 = vpop.f32.mrb[0].mxu0
    %2730 = vmatprep.mubr.f32.mxu0 0.0
    %2731 = vmatmul.mubr.f32.gmra.mrb[0].mxu0 %v2353
    %v2732 = vpop.f32.mrb[0].mxu0
    %v2733 = vadd.f32 0.0, %v2732
    %v2734 = vpop.f32.mrb[0].mxu0
    %2735 = vmatprep.mubr.f32.mxu0 0.0
    %2736 = vmatmul.mubr.f32.gmra.mrb[0].mxu0 %v2427
    %v2737 = vpop.f32.mrb[0].mxu0
    %v2738 = vadd.f32 0.0, %v2737
    %v2739 = vpop.f32.mrb[0].mxu0
    %2740 = vmatprep.mubr.f32.mxu0 0.0
    %2741 = vmatmul.mubr.f32.gmra.mrb[0].mxu0 %v2501
    %v2742 = vpop.f32.mrb[0].mxu0
    %v2743 = vadd.f32 0.0, %v2742
    %v2744 = vpop.f32.mrb[0].mxu0
    %2745 = vmatprep.mubr.f32.mxu0 0.0
    %2746 = vmatmul.mubr.f32.gmra.mrb[0].mxu0 %v2575
    %v2747 = vpop.f32.mrb[0].mxu0
    %v2748 = vadd.f32 0.0, %v2747
    %v2749 = vpop.f32.mrb[0].mxu0
    %2750 = vmatprep.mubr.f32.mxu0 0.0
    %2751 = vmatmul.mubr.f32.gmra.mrb[0].mxu0 %v2649
    %v2752 = vpop.f32.mrb[0].mxu0
    %v2753 = vadd.f32 0.0, %v2752
    %v2754 = vpop.f32.mrb[0].mxu0
    %2755 = vdwg.mxu0
    %s2756 = scalar_lea.vmem %s2, 96
    %v2757 = vld [vmem:[%s2756] sm:$0xff]
    %v2758 = vld [vmem:[%s2756 + $0x8] sm:$0xff]
    %v2759 = vld [vmem:[%s2756 + $0x10] sm:$0xff]
    %v2760 = vld [vmem:[%s2756 + $0x18] sm:$0xff]
    %s2761 = scalar_lea.vmem [#allocation4], 96
    %v2762 = vld [vmem:[%s2761] sm:$0xff]
    %v2763 = vld [vmem:[%s2761 + $0x8] sm:$0xff]
    %v2764 = vld [vmem:[%s2761 + $0x10] sm:$0xff]
    %v2765 = vld [vmem:[%s2761 + $0x18] sm:$0xff]
    %s2766 = scalar_lea.vmem [#allocation6], 96
    %v2767 = vld [vmem:[%s2766] sm:$0xff]
    %v2768 = vld [vmem:[%s2766 + $0x8] sm:$0xff]
    %v2769 = vld [vmem:[%s2766 + $0x10] sm:$0xff]
    %v2770 = vld [vmem:[%s2766 + $0x18] sm:$0xff]
    %v2772 = vsel %vm233, %v2718, 0
    %v2775 = vsel %vm233, %v2723, 0
    %v2778 = vsel %vm233, %v2728, 0
    %v2781 = vsel %vm233, %v2733, 0
    %v2784 = vsel %vm233, %v2738, 0
    %v2787 = vsel %vm233, %v2743, 0
    %v2790 = vsel %vm233, %v2748, 0
    %v2793 = vsel %vm233, %v2753, 0
    %2795 = vmatprep.subr.mxu0 0.0
    %2796 = vmatpush1.msra.mxu0 %v2757
    %2797 = vmatprep.subr.mxu0 0.0
    %2798 = vmatpush1.msra.mxu0 %v2758
    %2799 = vmatprep.subr.mxu0 0.0
    %2800 = vmatpush1.msra.mxu0 %v2759
    %2801 = vmatprep.subr.mxu0 0.0
    %2802 = vmatpush1.msra.mxu0 %v2760
    %2803 = vmatprep.subr.mxu0 0.0
    %2804 = vmatpush1.msra.mxu0 0.0
    %2805 = vmatprep.subr.mxu0 0.0
    %2806 = vmatpush1.msra.mxu0 0.0
    %2807 = vmatprep.subr.mxu0 0.0
    %2808 = vmatpush1.msra.mxu0 0.0
    %2809 = vmatprep.subr.mxu0 0.0
    %2810 = vmatpush1.msra.mxu0 0.0
    %2811 = vmatprep.subr.mxu0 0.0
    %2812 = vmatpush1.msra.mxu0 0.0
    %2813 = vmatprep.subr.mxu0 0.0
    %2814 = vmatpush1.msra.mxu0 0.0
    %2815 = vmatprep.subr.mxu0 0.0
    %2816 = vmatpush1.msra.mxu0 0.0
    %2817 = vmatprep.subr.mxu0 0.0
    %2818 = vmatpush1.msra.mxu0 0.0
    %2819 = vmatprep.subr.mxu0 0.0
    %2820 = vmatpush1.msra.mxu0 0.0
    %2821 = vmatprep.subr.mxu0 0.0
    %2822 = vmatpush1.msra.mxu0 0.0
    %2823 = vmatprep.subr.mxu0 0.0
    %2824 = vmatpush1.msra.mxu0 0.0
    %2825 = vmatprep.subr.mxu0 0.0
    %2826 = vmatpush1.msra.mxu0 0.0
    %2827 = vmatprep.subr.mxu0 0.0
    %2828 = vmatpush1.msra.mxu0 0.0
    %2829 = vmatprep.subr.mxu0 0.0
    %2830 = vmatpush1.msra.mxu0 0.0
    %2831 = vmatprep.subr.mxu0 0.0
    %2832 = vmatpush1.msra.mxu0 0.0
    %2833 = vmatprep.subr.mxu0 0.0
    %2834 = vmatpush1.msra.mxu0 0.0
    %2835 = vmatprep.subr.mxu0 0.0
    %2836 = vmatpush1.msra.mxu0 0.0
    %2837 = vmatprep.subr.mxu0 0.0
    %2838 = vmatpush1.msra.mxu0 0.0
    %2839 = vmatprep.subr.mxu0 0.0
    %2840 = vmatpush1.msra.mxu0 0.0
    %2841 = vmatprep.subr.mxu0 0.0
    %2842 = vmatpush1.msra.mxu0 0.0
    %2843 = vmatprep.subr.mxu0 0.0
    %2844 = vmatpush1.msra.mxu0 0.0
    %2845 = vmatprep.subr.mxu0 0.0
    %2846 = vmatpush1.msra.mxu0 0.0
    %2847 = vmatprep.subr.mxu0 0.0
    %2848 = vmatpush1.msra.mxu0 0.0
    %2849 = vmatprep.subr.mxu0 0.0
    %2850 = vmatpush1.msra.mxu0 0.0
    %2851 = vmatprep.subr.mxu0 0.0
    %2852 = vmatpush1.msra.mxu0 0.0
    %2853 = vmatprep.subr.mxu0 0.0
    %2854 = vmatpush1.msra.mxu0 0.0
    %2855 = vmatprep.subr.mxu0 0.0
    %2856 = vmatpush1.msra.mxu0 0.0
    %2857 = vmatprep.subr.mxu0 0.0
    %2858 = vmatpush1.msra.mxu0 0.0
    %2859 = vmatprep.mubr.f32.mxu0 0.0
    %2860 = vmatmul.mubr.f32.gmra.mrb[0].mxu0 %v2772
    %v2861 = vpop.f32.mrb[0].mxu0
    %v2862 = vadd.f32 0.0, %v2861
    %v2863 = vpop.f32.mrb[0].mxu0
    %2864 = vmatprep.mubr.f32.mxu0 0.0
    %2865 = vmatmul.mubr.f32.gmra.mrb[0].mxu0 %v2775
    %v2866 = vpop.f32.mrb[0].mxu0
    %v2867 = vadd.f32 0.0, %v2866
    %v2868 = vpop.f32.mrb[0].mxu0
    %2869 = vmatprep.mubr.f32.mxu0 0.0
    %2870 = vmatmul.mubr.f32.gmra.mrb[0].mxu0 %v2778
    %v2871 = vpop.f32.mrb[0].mxu0
    %v2872 = vadd.f32 0.0, %v2871
    %v2873 = vpop.f32.mrb[0].mxu0
    %2874 = vmatprep.mubr.f32.mxu0 0.0
    %2875 = vmatmul.mubr.f32.gmra.mrb[0].mxu0 %v2781
    %v2876 = vpop.f32.mrb[0].mxu0
    %v2877 = vadd.f32 0.0, %v2876
    %v2878 = vpop.f32.mrb[0].mxu0
    %2879 = vmatprep.mubr.f32.mxu0 0.0
    %2880 = vmatmul.mubr.f32.gmra.mrb[0].mxu0 %v2784
    %v2881 = vpop.f32.mrb[0].mxu0
    %v2882 = vadd.f32 0.0, %v2881
    %v2883 = vpop.f32.mrb[0].mxu0
    %2884 = vmatprep.mubr.f32.mxu0 0.0
    %2885 = vmatmul.mubr.f32.gmra.mrb[0].mxu0 %v2787
    %v2886 = vpop.f32.mrb[0].mxu0
    %v2887 = vadd.f32 0.0, %v2886
    %v2888 = vpop.f32.mrb[0].mxu0
    %2889 = vmatprep.mubr.f32.mxu0 0.0
    %2890 = vmatmul.mubr.f32.gmra.mrb[0].mxu0 %v2790
    %v2891 = vpop.f32.mrb[0].mxu0
    %v2892 = vadd.f32 0.0, %v2891
    %v2893 = vpop.f32.mrb[0].mxu0
    %2894 = vmatprep.mubr.f32.mxu0 0.0
    %2895 = vmatmul.mubr.f32.gmra.mrb[0].mxu0 %v2793
    %v2896 = vpop.f32.mrb[0].mxu0
    %v2897 = vadd.f32 0.0, %v2896
    %v2898 = vpop.f32.mrb[0].mxu0
    %2899 = vdwg.mxu0
    %s2900 = scalar_lea.vmem [#allocation7], 24
    %v2901 = vld [vmem:[%s2900] sm:$0xff]
    %v2903 = vsel %vm233, %v2901, 0
    %2905 = vmatprep.subr.mxu0 0.0
    %2906 = vmatpush1.msra.mxu0 %v2762
    %2907 = vmatprep.subr.mxu0 0.0
    %2908 = vmatpush1.msra.mxu0 %v2763
    %2909 = vmatprep.subr.mxu0 0.0
    %2910 = vmatpush1.msra.mxu0 %v2764
    %2911 = vmatprep.subr.mxu0 0.0
    %2912 = vmatpush1.msra.mxu0 %v2765
    %2913 = vmatprep.subr.mxu0 0.0
    %2914 = vmatpush1.msra.mxu0 0.0
    %2915 = vmatprep.subr.mxu0 0.0
    %2916 = vmatpush1.msra.mxu0 0.0
    %2917 = vmatprep.subr.mxu0 0.0
    %2918 = vmatpush1.msra.mxu0 0.0
    %2919 = vmatprep.subr.mxu0 0.0
    %2920 = vmatpush1.msra.mxu0 0.0
    %2921 = vmatprep.subr.mxu0 0.0
    %2922 = vmatpush1.msra.mxu0 0.0
    %2923 = vmatprep.subr.mxu0 0.0
    %2924 = vmatpush1.msra.mxu0 0.0
    %2925 = vmatprep.subr.mxu0 0.0
    %2926 = vmatpush1.msra.mxu0 0.0
    %2927 = vmatprep.subr.mxu0 0.0
    %2928 = vmatpush1.msra.mxu0 0.0
    %2929 = vmatprep.subr.mxu0 0.0
    %2930 = vmatpush1.msra.mxu0 0.0
    %2931 = vmatprep.subr.mxu0 0.0
    %2932 = vmatpush1.msra.mxu0 0.0
    %2933 = vmatprep.subr.mxu0 0.0
    %2934 = vmatpush1.msra.mxu0 0.0
    %2935 = vmatprep.subr.mxu0 0.0
    %2936 = vmatpush1.msra.mxu0 0.0
    %2937 = vmatprep.subr.mxu0 0.0
    %2938 = vmatpush1.msra.mxu0 0.0
    %2939 = vmatprep.subr.mxu0 0.0
    %2940 = vmatpush1.msra.mxu0 0.0
    %2941 = vmatprep.subr.mxu0 0.0
    %2942 = vmatpush1.msra.mxu0 0.0
    %2943 = vmatprep.subr.mxu0 0.0
    %2944 = vmatpush1.msra.mxu0 0.0
    %2945 = vmatprep.subr.mxu0 0.0
    %2946 = vmatpush1.msra.mxu0 0.0
    %2947 = vmatprep.subr.mxu0 0.0
    %2948 = vmatpush1.msra.mxu0 0.0
    %2949 = vmatprep.subr.mxu0 0.0
    %2950 = vmatpush1.msra.mxu0 0.0
    %2951 = vmatprep.subr.mxu0 0.0
    %2952 = vmatpush1.msra.mxu0 0.0
    %2953 = vmatprep.subr.mxu0 0.0
    %2954 = vmatpush1.msra.mxu0 0.0
    %2955 = vmatprep.subr.mxu0 0.0
    %2956 = vmatpush1.msra.mxu0 0.0
    %2957 = vmatprep.subr.mxu0 0.0
    %2958 = vmatpush1.msra.mxu0 0.0
    %2959 = vmatprep.subr.mxu0 0.0
    %2960 = vmatpush1.msra.mxu0 0.0
    %2961 = vmatprep.subr.mxu0 0.0
    %2962 = vmatpush1.msra.mxu0 0.0
    %2963 = vmatprep.subr.mxu0 0.0
    %2964 = vmatpush1.msra.mxu0 0.0
    %2965 = vmatprep.subr.mxu0 0.0
    %2966 = vmatpush1.msra.mxu0 0.0
    %2967 = vmatprep.subr.mxu0 0.0
    %2968 = vmatpush1.msra.mxu0 0.0
    %2969 = vmatprep.mubr.f32.mxu0 0.0
    %2970 = vmatmul.mubr.f32.gmra.mrb[0].mxu0 %v2903
    %v2971 = vpop.f32.mrb[0].mxu0
    %v2972 = vadd.f32 0.0, %v2971
    %v2973 = vpop.f32.mrb[0].mxu0
    %2974 = vdwg.mxu0
    %v2975 = vadd.f32 %v2862, %v2972
    %v2977 = vsel %vm233, %v2975, 0
    %2979 = vmatprep.subr.mxu0 0.0
    %2980 = vmatpush1.msra.mxu0 %v2762
    %2981 = vmatprep.subr.mxu0 0.0
    %2982 = vmatpush1.msra.mxu0 %v2763
    %2983 = vmatprep.subr.mxu0 0.0
    %2984 = vmatpush1.msra.mxu0 %v2764
    %2985 = vmatprep.subr.mxu0 0.0
    %2986 = vmatpush1.msra.mxu0 %v2765
    %2987 = vmatprep.subr.mxu0 0.0
    %2988 = vmatpush1.msra.mxu0 0.0
    %2989 = vmatprep.subr.mxu0 0.0
    %2990 = vmatpush1.msra.mxu0 0.0
    %2991 = vmatprep.subr.mxu0 0.0
    %2992 = vmatpush1.msra.mxu0 0.0
    %2993 = vmatprep.subr.mxu0 0.0
    %2994 = vmatpush1.msra.mxu0 0.0
    %2995 = vmatprep.subr.mxu0 0.0
    %2996 = vmatpush1.msra.mxu0 0.0
    %2997 = vmatprep.subr.mxu0 0.0
    %2998 = vmatpush1.msra.mxu0 0.0
    %2999 = vmatprep.subr.mxu0 0.0
    %3000 = vmatpush1.msra.mxu0 0.0
    %3001 = vmatprep.subr.mxu0 0.0
    %3002 = vmatpush1.msra.mxu0 0.0
    %3003 = vmatprep.subr.mxu0 0.0
    %3004 = vmatpush1.msra.mxu0 0.0
    %3005 = vmatprep.subr.mxu0 0.0
    %3006 = vmatpush1.msra.mxu0 0.0
    %3007 = vmatprep.subr.mxu0 0.0
    %3008 = vmatpush1.msra.mxu0 0.0
    %3009 = vmatprep.subr.mxu0 0.0
    %3010 = vmatpush1.msra.mxu0 0.0
    %3011 = vmatprep.subr.mxu0 0.0
    %3012 = vmatpush1.msra.mxu0 0.0
    %3013 = vmatprep.subr.mxu0 0.0
    %3014 = vmatpush1.msra.mxu0 0.0
    %3015 = vmatprep.subr.mxu0 0.0
    %3016 = vmatpush1.msra.mxu0 0.0
    %3017 = vmatprep.subr.mxu0 0.0
    %3018 = vmatpush1.msra.mxu0 0.0
    %3019 = vmatprep.subr.mxu0 0.0
    %3020 = vmatpush1.msra.mxu0 0.0
    %3021 = vmatprep.subr.mxu0 0.0
    %3022 = vmatpush1.msra.mxu0 0.0
    %3023 = vmatprep.subr.mxu0 0.0
    %3024 = vmatpush1.msra.mxu0 0.0
    %3025 = vmatprep.subr.mxu0 0.0
    %3026 = vmatpush1.msra.mxu0 0.0
    %3027 = vmatprep.subr.mxu0 0.0
    %3028 = vmatpush1.msra.mxu0 0.0
    %3029 = vmatprep.subr.mxu0 0.0
    %3030 = vmatpush1.msra.mxu0 0.0
    %3031 = vmatprep.subr.mxu0 0.0
    %3032 = vmatpush1.msra.mxu0 0.0
    %3033 = vmatprep.subr.mxu0 0.0
    %3034 = vmatpush1.msra.mxu0 0.0
    %3035 = vmatprep.subr.mxu0 0.0
    %3036 = vmatpush1.msra.mxu0 0.0
    %3037 = vmatprep.subr.mxu0 0.0
    %3038 = vmatpush1.msra.mxu0 0.0
    %3039 = vmatprep.subr.mxu0 0.0
    %3040 = vmatpush1.msra.mxu0 0.0
    %3041 = vmatprep.subr.mxu0 0.0
    %3042 = vmatpush1.msra.mxu0 0.0
    %3043 = vmatprep.mubr.f32.mxu0 0.0
    %3044 = vmatmul.mubr.f32.gmra.mrb[0].mxu0 %v2977
    %v3045 = vpop.f32.mrb[0].mxu0
    %v3046 = vadd.f32 0.0, %v3045
    %v3047 = vpop.f32.mrb[0].mxu0
    %3048 = vdwg.mxu0
    %v3049 = vadd.f32 %v2867, %v3046
    %v3051 = vsel %vm233, %v3049, 0
    %3053 = vmatprep.subr.mxu0 0.0
    %3054 = vmatpush1.msra.mxu0 %v2762
    %3055 = vmatprep.subr.mxu0 0.0
    %3056 = vmatpush1.msra.mxu0 %v2763
    %3057 = vmatprep.subr.mxu0 0.0
    %3058 = vmatpush1.msra.mxu0 %v2764
    %3059 = vmatprep.subr.mxu0 0.0
    %3060 = vmatpush1.msra.mxu0 %v2765
    %3061 = vmatprep.subr.mxu0 0.0
    %3062 = vmatpush1.msra.mxu0 0.0
    %3063 = vmatprep.subr.mxu0 0.0
    %3064 = vmatpush1.msra.mxu0 0.0
    %3065 = vmatprep.subr.mxu0 0.0
    %3066 = vmatpush1.msra.mxu0 0.0
    %3067 = vmatprep.subr.mxu0 0.0
    %3068 = vmatpush1.msra.mxu0 0.0
    %3069 = vmatprep.subr.mxu0 0.0
    %3070 = vmatpush1.msra.mxu0 0.0
    %3071 = vmatprep.subr.mxu0 0.0
    %3072 = vmatpush1.msra.mxu0 0.0
    %3073 = vmatprep.subr.mxu0 0.0
    %3074 = vmatpush1.msra.mxu0 0.0
    %3075 = vmatprep.subr.mxu0 0.0
    %3076 = vmatpush1.msra.mxu0 0.0
    %3077 = vmatprep.subr.mxu0 0.0
    %3078 = vmatpush1.msra.mxu0 0.0
    %3079 = vmatprep.subr.mxu0 0.0
    %3080 = vmatpush1.msra.mxu0 0.0
    %3081 = vmatprep.subr.mxu0 0.0
    %3082 = vmatpush1.msra.mxu0 0.0
    %3083 = vmatprep.subr.mxu0 0.0
    %3084 = vmatpush1.msra.mxu0 0.0
    %3085 = vmatprep.subr.mxu0 0.0
    %3086 = vmatpush1.msra.mxu0 0.0
    %3087 = vmatprep.subr.mxu0 0.0
    %3088 = vmatpush1.msra.mxu0 0.0
    %3089 = vmatprep.subr.mxu0 0.0
    %3090 = vmatpush1.msra.mxu0 0.0
    %3091 = vmatprep.subr.mxu0 0.0
    %3092 = vmatpush1.msra.mxu0 0.0
    %3093 = vmatprep.subr.mxu0 0.0
    %3094 = vmatpush1.msra.mxu0 0.0
    %3095 = vmatprep.subr.mxu0 0.0
    %3096 = vmatpush1.msra.mxu0 0.0
    %3097 = vmatprep.subr.mxu0 0.0
    %3098 = vmatpush1.msra.mxu0 0.0
    %3099 = vmatprep.subr.mxu0 0.0
    %3100 = vmatpush1.msra.mxu0 0.0
    %3101 = vmatprep.subr.mxu0 0.0
    %3102 = vmatpush1.msra.mxu0 0.0
    %3103 = vmatprep.subr.mxu0 0.0
    %3104 = vmatpush1.msra.mxu0 0.0
    %3105 = vmatprep.subr.mxu0 0.0
    %3106 = vmatpush1.msra.mxu0 0.0
    %3107 = vmatprep.subr.mxu0 0.0
    %3108 = vmatpush1.msra.mxu0 0.0
    %3109 = vmatprep.subr.mxu0 0.0
    %3110 = vmatpush1.msra.mxu0 0.0
    %3111 = vmatprep.subr.mxu0 0.0
    %3112 = vmatpush1.msra.mxu0 0.0
    %3113 = vmatprep.subr.mxu0 0.0
    %3114 = vmatpush1.msra.mxu0 0.0
    %3115 = vmatprep.subr.mxu0 0.0
    %3116 = vmatpush1.msra.mxu0 0.0
    %3117 = vmatprep.mubr.f32.mxu0 0.0
    %3118 = vmatmul.mubr.f32.gmra.mrb[0].mxu0 %v3051
    %v3119 = vpop.f32.mrb[0].mxu0
    %v3120 = vadd.f32 0.0, %v3119
    %v3121 = vpop.f32.mrb[0].mxu0
    %3122 = vdwg.mxu0
    %v3123 = vadd.f32 %v2872, %v3120
    %v3125 = vsel %vm233, %v3123, 0
    %3127 = vmatprep.subr.mxu0 0.0
    %3128 = vmatpush1.msra.mxu0 %v2762
    %3129 = vmatprep.subr.mxu0 0.0
    %3130 = vmatpush1.msra.mxu0 %v2763
    %3131 = vmatprep.subr.mxu0 0.0
    %3132 = vmatpush1.msra.mxu0 %v2764
    %3133 = vmatprep.subr.mxu0 0.0
    %3134 = vmatpush1.msra.mxu0 %v2765
    %3135 = vmatprep.subr.mxu0 0.0
    %3136 = vmatpush1.msra.mxu0 0.0
    %3137 = vmatprep.subr.mxu0 0.0
    %3138 = vmatpush1.msra.mxu0 0.0
    %3139 = vmatprep.subr.mxu0 0.0
    %3140 = vmatpush1.msra.mxu0 0.0
    %3141 = vmatprep.subr.mxu0 0.0
    %3142 = vmatpush1.msra.mxu0 0.0
    %3143 = vmatprep.subr.mxu0 0.0
    %3144 = vmatpush1.msra.mxu0 0.0
    %3145 = vmatprep.subr.mxu0 0.0
    %3146 = vmatpush1.msra.mxu0 0.0
    %3147 = vmatprep.subr.mxu0 0.0
    %3148 = vmatpush1.msra.mxu0 0.0
    %3149 = vmatprep.subr.mxu0 0.0
    %3150 = vmatpush1.msra.mxu0 0.0
    %3151 = vmatprep.subr.mxu0 0.0
    %3152 = vmatpush1.msra.mxu0 0.0
    %3153 = vmatprep.subr.mxu0 0.0
    %3154 = vmatpush1.msra.mxu0 0.0
    %3155 = vmatprep.subr.mxu0 0.0
    %3156 = vmatpush1.msra.mxu0 0.0
    %3157 = vmatprep.subr.mxu0 0.0
    %3158 = vmatpush1.msra.mxu0 0.0
    %3159 = vmatprep.subr.mxu0 0.0
    %3160 = vmatpush1.msra.mxu0 0.0
    %3161 = vmatprep.subr.mxu0 0.0
    %3162 = vmatpush1.msra.mxu0 0.0
    %3163 = vmatprep.subr.mxu0 0.0
    %3164 = vmatpush1.msra.mxu0 0.0
    %3165 = vmatprep.subr.mxu0 0.0
    %3166 = vmatpush1.msra.mxu0 0.0
    %3167 = vmatprep.subr.mxu0 0.0
    %3168 = vmatpush1.msra.mxu0 0.0
    %3169 = vmatprep.subr.mxu0 0.0
    %3170 = vmatpush1.msra.mxu0 0.0
    %3171 = vmatprep.subr.mxu0 0.0
    %3172 = vmatpush1.msra.mxu0 0.0
    %3173 = vmatprep.subr.mxu0 0.0
    %3174 = vmatpush1.msra.mxu0 0.0
    %3175 = vmatprep.subr.mxu0 0.0
    %3176 = vmatpush1.msra.mxu0 0.0
    %3177 = vmatprep.subr.mxu0 0.0
    %3178 = vmatpush1.msra.mxu0 0.0
    %3179 = vmatprep.subr.mxu0 0.0
    %3180 = vmatpush1.msra.mxu0 0.0
    %3181 = vmatprep.subr.mxu0 0.0
    %3182 = vmatpush1.msra.mxu0 0.0
    %3183 = vmatprep.subr.mxu0 0.0
    %3184 = vmatpush1.msra.mxu0 0.0
    %3185 = vmatprep.subr.mxu0 0.0
    %3186 = vmatpush1.msra.mxu0 0.0
    %3187 = vmatprep.subr.mxu0 0.0
    %3188 = vmatpush1.msra.mxu0 0.0
    %3189 = vmatprep.subr.mxu0 0.0
    %3190 = vmatpush1.msra.mxu0 0.0
    %3191 = vmatprep.mubr.f32.mxu0 0.0
    %3192 = vmatmul.mubr.f32.gmra.mrb[0].mxu0 %v3125
    %v3193 = vpop.f32.mrb[0].mxu0
    %v3194 = vadd.f32 0.0, %v3193
    %v3195 = vpop.f32.mrb[0].mxu0
    %3196 = vdwg.mxu0
    %v3197 = vadd.f32 %v2877, %v3194
    %v3199 = vsel %vm233, %v3197, 0
    %3201 = vmatprep.subr.mxu0 0.0
    %3202 = vmatpush1.msra.mxu0 %v2762
    %3203 = vmatprep.subr.mxu0 0.0
    %3204 = vmatpush1.msra.mxu0 %v2763
    %3205 = vmatprep.subr.mxu0 0.0
    %3206 = vmatpush1.msra.mxu0 %v2764
    %3207 = vmatprep.subr.mxu0 0.0
    %3208 = vmatpush1.msra.mxu0 %v2765
    %3209 = vmatprep.subr.mxu0 0.0
    %3210 = vmatpush1.msra.mxu0 0.0
    %3211 = vmatprep.subr.mxu0 0.0
    %3212 = vmatpush1.msra.mxu0 0.0
    %3213 = vmatprep.subr.mxu0 0.0
    %3214 = vmatpush1.msra.mxu0 0.0
    %3215 = vmatprep.subr.mxu0 0.0
    %3216 = vmatpush1.msra.mxu0 0.0
    %3217 = vmatprep.subr.mxu0 0.0
    %3218 = vmatpush1.msra.mxu0 0.0
    %3219 = vmatprep.subr.mxu0 0.0
    %3220 = vmatpush1.msra.mxu0 0.0
    %3221 = vmatprep.subr.mxu0 0.0
    %3222 = vmatpush1.msra.mxu0 0.0
    %3223 = vmatprep.subr.mxu0 0.0
    %3224 = vmatpush1.msra.mxu0 0.0
    %3225 = vmatprep.subr.mxu0 0.0
    %3226 = vmatpush1.msra.mxu0 0.0
    %3227 = vmatprep.subr.mxu0 0.0
    %3228 = vmatpush1.msra.mxu0 0.0
    %3229 = vmatprep.subr.mxu0 0.0
    %3230 = vmatpush1.msra.mxu0 0.0
    %3231 = vmatprep.subr.mxu0 0.0
    %3232 = vmatpush1.msra.mxu0 0.0
    %3233 = vmatprep.subr.mxu0 0.0
    %3234 = vmatpush1.msra.mxu0 0.0
    %3235 = vmatprep.subr.mxu0 0.0
    %3236 = vmatpush1.msra.mxu0 0.0
    %3237 = vmatprep.subr.mxu0 0.0
    %3238 = vmatpush1.msra.mxu0 0.0
    %3239 = vmatprep.subr.mxu0 0.0
    %3240 = vmatpush1.msra.mxu0 0.0
    %3241 = vmatprep.subr.mxu0 0.0
    %3242 = vmatpush1.msra.mxu0 0.0
    %3243 = vmatprep.subr.mxu0 0.0
    %3244 = vmatpush1.msra.mxu0 0.0
    %3245 = vmatprep.subr.mxu0 0.0
    %3246 = vmatpush1.msra.mxu0 0.0
    %3247 = vmatprep.subr.mxu0 0.0
    %3248 = vmatpush1.msra.mxu0 0.0
    %3249 = vmatprep.subr.mxu0 0.0
    %3250 = vmatpush1.msra.mxu0 0.0
    %3251 = vmatprep.subr.mxu0 0.0
    %3252 = vmatpush1.msra.mxu0 0.0
    %3253 = vmatprep.subr.mxu0 0.0
    %3254 = vmatpush1.msra.mxu0 0.0
    %3255 = vmatprep.subr.mxu0 0.0
    %3256 = vmatpush1.msra.mxu0 0.0
    %3257 = vmatprep.subr.mxu0 0.0
    %3258 = vmatpush1.msra.mxu0 0.0
    %3259 = vmatprep.subr.mxu0 0.0
    %3260 = vmatpush1.msra.mxu0 0.0
    %3261 = vmatprep.subr.mxu0 0.0
    %3262 = vmatpush1.msra.mxu0 0.0
    %3263 = vmatprep.subr.mxu0 0.0
    %3264 = vmatpush1.msra.mxu0 0.0
    %3265 = vmatprep.mubr.f32.mxu0 0.0
    %3266 = vmatmul.mubr.f32.gmra.mrb[0].mxu0 %v3199
    %v3267 = vpop.f32.mrb[0].mxu0
    %v3268 = vadd.f32 0.0, %v3267
    %v3269 = vpop.f32.mrb[0].mxu0
    %3270 = vdwg.mxu0
    %v3271 = vadd.f32 %v2882, %v3268
    %v3273 = vsel %vm233, %v3271, 0
    %3275 = vmatprep.subr.mxu0 0.0
    %3276 = vmatpush1.msra.mxu0 %v2762
    %3277 = vmatprep.subr.mxu0 0.0
    %3278 = vmatpush1.msra.mxu0 %v2763
    %3279 = vmatprep.subr.mxu0 0.0
    %3280 = vmatpush1.msra.mxu0 %v2764
    %3281 = vmatprep.subr.mxu0 0.0
    %3282 = vmatpush1.msra.mxu0 %v2765
    %3283 = vmatprep.subr.mxu0 0.0
    %3284 = vmatpush1.msra.mxu0 0.0
    %3285 = vmatprep.subr.mxu0 0.0
    %3286 = vmatpush1.msra.mxu0 0.0
    %3287 = vmatprep.subr.mxu0 0.0
    %3288 = vmatpush1.msra.mxu0 0.0
    %3289 = vmatprep.subr.mxu0 0.0
    %3290 = vmatpush1.msra.mxu0 0.0
    %3291 = vmatprep.subr.mxu0 0.0
    %3292 = vmatpush1.msra.mxu0 0.0
    %3293 = vmatprep.subr.mxu0 0.0
    %3294 = vmatpush1.msra.mxu0 0.0
    %3295 = vmatprep.subr.mxu0 0.0
    %3296 = vmatpush1.msra.mxu0 0.0
    %3297 = vmatprep.subr.mxu0 0.0
    %3298 = vmatpush1.msra.mxu0 0.0
    %3299 = vmatprep.subr.mxu0 0.0
    %3300 = vmatpush1.msra.mxu0 0.0
    %3301 = vmatprep.subr.mxu0 0.0
    %3302 = vmatpush1.msra.mxu0 0.0
    %3303 = vmatprep.subr.mxu0 0.0
    %3304 = vmatpush1.msra.mxu0 0.0
    %3305 = vmatprep.subr.mxu0 0.0
    %3306 = vmatpush1.msra.mxu0 0.0
    %3307 = vmatprep.subr.mxu0 0.0
    %3308 = vmatpush1.msra.mxu0 0.0
    %3309 = vmatprep.subr.mxu0 0.0
    %3310 = vmatpush1.msra.mxu0 0.0
    %3311 = vmatprep.subr.mxu0 0.0
    %3312 = vmatpush1.msra.mxu0 0.0
    %3313 = vmatprep.subr.mxu0 0.0
    %3314 = vmatpush1.msra.mxu0 0.0
    %3315 = vmatprep.subr.mxu0 0.0
    %3316 = vmatpush1.msra.mxu0 0.0
    %3317 = vmatprep.subr.mxu0 0.0
    %3318 = vmatpush1.msra.mxu0 0.0
    %3319 = vmatprep.subr.mxu0 0.0
    %3320 = vmatpush1.msra.mxu0 0.0
    %3321 = vmatprep.subr.mxu0 0.0
    %3322 = vmatpush1.msra.mxu0 0.0
    %3323 = vmatprep.subr.mxu0 0.0
    %3324 = vmatpush1.msra.mxu0 0.0
    %3325 = vmatprep.subr.mxu0 0.0
    %3326 = vmatpush1.msra.mxu0 0.0
    %3327 = vmatprep.subr.mxu0 0.0
    %3328 = vmatpush1.msra.mxu0 0.0
    %3329 = vmatprep.subr.mxu0 0.0
    %3330 = vmatpush1.msra.mxu0 0.0
    %3331 = vmatprep.subr.mxu0 0.0
    %3332 = vmatpush1.msra.mxu0 0.0
    %3333 = vmatprep.subr.mxu0 0.0
    %3334 = vmatpush1.msra.mxu0 0.0
    %3335 = vmatprep.subr.mxu0 0.0
    %3336 = vmatpush1.msra.mxu0 0.0
    %3337 = vmatprep.subr.mxu0 0.0
    %3338 = vmatpush1.msra.mxu0 0.0
    %3339 = vmatprep.mubr.f32.mxu0 0.0
    %3340 = vmatmul.mubr.f32.gmra.mrb[0].mxu0 %v3273
    %v3341 = vpop.f32.mrb[0].mxu0
    %v3342 = vadd.f32 0.0, %v3341
    %v3343 = vpop.f32.mrb[0].mxu0
    %3344 = vdwg.mxu0
    %v3345 = vadd.f32 %v2887, %v3342
    %v3347 = vsel %vm233, %v3345, 0
    %3349 = vmatprep.subr.mxu0 0.0
    %3350 = vmatpush1.msra.mxu0 %v2762
    %3351 = vmatprep.subr.mxu0 0.0
    %3352 = vmatpush1.msra.mxu0 %v2763
    %3353 = vmatprep.subr.mxu0 0.0
    %3354 = vmatpush1.msra.mxu0 %v2764
    %3355 = vmatprep.subr.mxu0 0.0
    %3356 = vmatpush1.msra.mxu0 %v2765
    %3357 = vmatprep.subr.mxu0 0.0
    %3358 = vmatpush1.msra.mxu0 0.0
    %3359 = vmatprep.subr.mxu0 0.0
    %3360 = vmatpush1.msra.mxu0 0.0
    %3361 = vmatprep.subr.mxu0 0.0
    %3362 = vmatpush1.msra.mxu0 0.0
    %3363 = vmatprep.subr.mxu0 0.0
    %3364 = vmatpush1.msra.mxu0 0.0
    %3365 = vmatprep.subr.mxu0 0.0
    %3366 = vmatpush1.msra.mxu0 0.0
    %3367 = vmatprep.subr.mxu0 0.0
    %3368 = vmatpush1.msra.mxu0 0.0
    %3369 = vmatprep.subr.mxu0 0.0
    %3370 = vmatpush1.msra.mxu0 0.0
    %3371 = vmatprep.subr.mxu0 0.0
    %3372 = vmatpush1.msra.mxu0 0.0
    %3373 = vmatprep.subr.mxu0 0.0
    %3374 = vmatpush1.msra.mxu0 0.0
    %3375 = vmatprep.subr.mxu0 0.0
    %3376 = vmatpush1.msra.mxu0 0.0
    %3377 = vmatprep.subr.mxu0 0.0
    %3378 = vmatpush1.msra.mxu0 0.0
    %3379 = vmatprep.subr.mxu0 0.0
    %3380 = vmatpush1.msra.mxu0 0.0
    %3381 = vmatprep.subr.mxu0 0.0
    %3382 = vmatpush1.msra.mxu0 0.0
    %3383 = vmatprep.subr.mxu0 0.0
    %3384 = vmatpush1.msra.mxu0 0.0
    %3385 = vmatprep.subr.mxu0 0.0
    %3386 = vmatpush1.msra.mxu0 0.0
    %3387 = vmatprep.subr.mxu0 0.0
    %3388 = vmatpush1.msra.mxu0 0.0
    %3389 = vmatprep.subr.mxu0 0.0
    %3390 = vmatpush1.msra.mxu0 0.0
    %3391 = vmatprep.subr.mxu0 0.0
    %3392 = vmatpush1.msra.mxu0 0.0
    %3393 = vmatprep.subr.mxu0 0.0
    %3394 = vmatpush1.msra.mxu0 0.0
    %3395 = vmatprep.subr.mxu0 0.0
    %3396 = vmatpush1.msra.mxu0 0.0
    %3397 = vmatprep.subr.mxu0 0.0
    %3398 = vmatpush1.msra.mxu0 0.0
    %3399 = vmatprep.subr.mxu0 0.0
    %3400 = vmatpush1.msra.mxu0 0.0
    %3401 = vmatprep.subr.mxu0 0.0
    %3402 = vmatpush1.msra.mxu0 0.0
    %3403 = vmatprep.subr.mxu0 0.0
    %3404 = vmatpush1.msra.mxu0 0.0
    %3405 = vmatprep.subr.mxu0 0.0
    %3406 = vmatpush1.msra.mxu0 0.0
    %3407 = vmatprep.subr.mxu0 0.0
    %3408 = vmatpush1.msra.mxu0 0.0
    %3409 = vmatprep.subr.mxu0 0.0
    %3410 = vmatpush1.msra.mxu0 0.0
    %3411 = vmatprep.subr.mxu0 0.0
    %3412 = vmatpush1.msra.mxu0 0.0
    %3413 = vmatprep.mubr.f32.mxu0 0.0
    %3414 = vmatmul.mubr.f32.gmra.mrb[0].mxu0 %v3347
    %v3415 = vpop.f32.mrb[0].mxu0
    %v3416 = vadd.f32 0.0, %v3415
    %v3417 = vpop.f32.mrb[0].mxu0
    %3418 = vdwg.mxu0
    %v3419 = vadd.f32 %v2892, %v3416
    %v3421 = vsel %vm233, %v3419, 0
    %3423 = vmatprep.subr.mxu0 0.0
    %3424 = vmatpush1.msra.mxu0 %v2762
    %3425 = vmatprep.subr.mxu0 0.0
    %3426 = vmatpush1.msra.mxu0 %v2763
    %3427 = vmatprep.subr.mxu0 0.0
    %3428 = vmatpush1.msra.mxu0 %v2764
    %3429 = vmatprep.subr.mxu0 0.0
    %3430 = vmatpush1.msra.mxu0 %v2765
    %3431 = vmatprep.subr.mxu0 0.0
    %3432 = vmatpush1.msra.mxu0 0.0
    %3433 = vmatprep.subr.mxu0 0.0
    %3434 = vmatpush1.msra.mxu0 0.0
    %3435 = vmatprep.subr.mxu0 0.0
    %3436 = vmatpush1.msra.mxu0 0.0
    %3437 = vmatprep.subr.mxu0 0.0
    %3438 = vmatpush1.msra.mxu0 0.0
    %3439 = vmatprep.subr.mxu0 0.0
    %3440 = vmatpush1.msra.mxu0 0.0
    %3441 = vmatprep.subr.mxu0 0.0
    %3442 = vmatpush1.msra.mxu0 0.0
    %3443 = vmatprep.subr.mxu0 0.0
    %3444 = vmatpush1.msra.mxu0 0.0
    %3445 = vmatprep.subr.mxu0 0.0
    %3446 = vmatpush1.msra.mxu0 0.0
    %3447 = vmatprep.subr.mxu0 0.0
    %3448 = vmatpush1.msra.mxu0 0.0
    %3449 = vmatprep.subr.mxu0 0.0
    %3450 = vmatpush1.msra.mxu0 0.0
    %3451 = vmatprep.subr.mxu0 0.0
    %3452 = vmatpush1.msra.mxu0 0.0
    %3453 = vmatprep.subr.mxu0 0.0
    %3454 = vmatpush1.msra.mxu0 0.0
    %3455 = vmatprep.subr.mxu0 0.0
    %3456 = vmatpush1.msra.mxu0 0.0
    %3457 = vmatprep.subr.mxu0 0.0
    %3458 = vmatpush1.msra.mxu0 0.0
    %3459 = vmatprep.subr.mxu0 0.0
    %3460 = vmatpush1.msra.mxu0 0.0
    %3461 = vmatprep.subr.mxu0 0.0
    %3462 = vmatpush1.msra.mxu0 0.0
    %3463 = vmatprep.subr.mxu0 0.0
    %3464 = vmatpush1.msra.mxu0 0.0
    %3465 = vmatprep.subr.mxu0 0.0
    %3466 = vmatpush1.msra.mxu0 0.0
    %3467 = vmatprep.subr.mxu0 0.0
    %3468 = vmatpush1.msra.mxu0 0.0
    %3469 = vmatprep.subr.mxu0 0.0
    %3470 = vmatpush1.msra.mxu0 0.0
    %3471 = vmatprep.subr.mxu0 0.0
    %3472 = vmatpush1.msra.mxu0 0.0
    %3473 = vmatprep.subr.mxu0 0.0
    %3474 = vmatpush1.msra.mxu0 0.0
    %3475 = vmatprep.subr.mxu0 0.0
    %3476 = vmatpush1.msra.mxu0 0.0
    %3477 = vmatprep.subr.mxu0 0.0
    %3478 = vmatpush1.msra.mxu0 0.0
    %3479 = vmatprep.subr.mxu0 0.0
    %3480 = vmatpush1.msra.mxu0 0.0
    %3481 = vmatprep.subr.mxu0 0.0
    %3482 = vmatpush1.msra.mxu0 0.0
    %3483 = vmatprep.subr.mxu0 0.0
    %3484 = vmatpush1.msra.mxu0 0.0
    %3485 = vmatprep.subr.mxu0 0.0
    %3486 = vmatpush1.msra.mxu0 0.0
    %3487 = vmatprep.mubr.f32.mxu0 0.0
    %3488 = vmatmul.mubr.f32.gmra.mrb[0].mxu0 %v3421
    %v3489 = vpop.f32.mrb[0].mxu0
    %v3490 = vadd.f32 0.0, %v3489
    %v3491 = vpop.f32.mrb[0].mxu0
    %3492 = vdwg.mxu0
    %v3493 = vadd.f32 %v2897, %v3490
    %v3495 = vsel %vm233, %v3493, 0
    %3497 = vmatprep.subr.mxu0 0.0
    %3498 = vmatpush1.msra.mxu0 %v2767
    %3499 = vmatprep.subr.mxu0 0.0
    %3500 = vmatpush1.msra.mxu0 %v2768
    %3501 = vmatprep.subr.mxu0 0.0
    %3502 = vmatpush1.msra.mxu0 %v2769
    %3503 = vmatprep.subr.mxu0 0.0
    %3504 = vmatpush1.msra.mxu0 %v2770
    %3505 = vmatprep.subr.mxu0 0.0
    %3506 = vmatpush1.msra.mxu0 0.0
    %3507 = vmatprep.subr.mxu0 0.0
    %3508 = vmatpush1.msra.mxu0 0.0
    %3509 = vmatprep.subr.mxu0 0.0
    %3510 = vmatpush1.msra.mxu0 0.0
    %3511 = vmatprep.subr.mxu0 0.0
    %3512 = vmatpush1.msra.mxu0 0.0
    %3513 = vmatprep.subr.mxu0 0.0
    %3514 = vmatpush1.msra.mxu0 0.0
    %3515 = vmatprep.subr.mxu0 0.0
    %3516 = vmatpush1.msra.mxu0 0.0
    %3517 = vmatprep.subr.mxu0 0.0
    %3518 = vmatpush1.msra.mxu0 0.0
    %3519 = vmatprep.subr.mxu0 0.0
    %3520 = vmatpush1.msra.mxu0 0.0
    %3521 = vmatprep.subr.mxu0 0.0
    %3522 = vmatpush1.msra.mxu0 0.0
    %3523 = vmatprep.subr.mxu0 0.0
    %3524 = vmatpush1.msra.mxu0 0.0
    %3525 = vmatprep.subr.mxu0 0.0
    %3526 = vmatpush1.msra.mxu0 0.0
    %3527 = vmatprep.subr.mxu0 0.0
    %3528 = vmatpush1.msra.mxu0 0.0
    %3529 = vmatprep.subr.mxu0 0.0
    %3530 = vmatpush1.msra.mxu0 0.0
    %3531 = vmatprep.subr.mxu0 0.0
    %3532 = vmatpush1.msra.mxu0 0.0
    %3533 = vmatprep.subr.mxu0 0.0
    %3534 = vmatpush1.msra.mxu0 0.0
    %3535 = vmatprep.subr.mxu0 0.0
    %3536 = vmatpush1.msra.mxu0 0.0
    %3537 = vmatprep.subr.mxu0 0.0
    %3538 = vmatpush1.msra.mxu0 0.0
    %3539 = vmatprep.subr.mxu0 0.0
    %3540 = vmatpush1.msra.mxu0 0.0
    %3541 = vmatprep.subr.mxu0 0.0
    %3542 = vmatpush1.msra.mxu0 0.0
    %3543 = vmatprep.subr.mxu0 0.0
    %3544 = vmatpush1.msra.mxu0 0.0
    %3545 = vmatprep.subr.mxu0 0.0
    %3546 = vmatpush1.msra.mxu0 0.0
    %3547 = vmatprep.subr.mxu0 0.0
    %3548 = vmatpush1.msra.mxu0 0.0
    %3549 = vmatprep.subr.mxu0 0.0
    %3550 = vmatpush1.msra.mxu0 0.0
    %3551 = vmatprep.subr.mxu0 0.0
    %3552 = vmatpush1.msra.mxu0 0.0
    %3553 = vmatprep.subr.mxu0 0.0
    %3554 = vmatpush1.msra.mxu0 0.0
    %3555 = vmatprep.subr.mxu0 0.0
    %3556 = vmatpush1.msra.mxu0 0.0
    %3557 = vmatprep.subr.mxu0 0.0
    %3558 = vmatpush1.msra.mxu0 0.0
    %3559 = vmatprep.subr.mxu0 0.0
    %3560 = vmatpush1.msra.mxu0 0.0
    %3561 = vmatprep.mubr.f32.mxu0 0.0
    %3562 = vmatmul.mubr.f32.gmra.mrb[0].mxu0 %v2977
    %v3563 = vpop.f32.mrb[0].mxu0
    %v3564 = vadd.f32 0.0, %v3563
    %v3565 = vpop.f32.mrb[0].mxu0
    %3566 = vmatprep.mubr.f32.mxu0 0.0
    %3567 = vmatmul.mubr.f32.gmra.mrb[0].mxu0 %v3051
    %v3568 = vpop.f32.mrb[0].mxu0
    %v3569 = vadd.f32 0.0, %v3568
    %v3570 = vpop.f32.mrb[0].mxu0
    %3571 = vmatprep.mubr.f32.mxu0 0.0
    %3572 = vmatmul.mubr.f32.gmra.mrb[0].mxu0 %v3125
    %v3573 = vpop.f32.mrb[0].mxu0
    %v3574 = vadd.f32 0.0, %v3573
    %v3575 = vpop.f32.mrb[0].mxu0
    %3576 = vmatprep.mubr.f32.mxu0 0.0
    %3577 = vmatmul.mubr.f32.gmra.mrb[0].mxu0 %v3199
    %v3578 = vpop.f32.mrb[0].mxu0
    %v3579 = vadd.f32 0.0, %v3578
    %v3580 = vpop.f32.mrb[0].mxu0
    %3581 = vmatprep.mubr.f32.mxu0 0.0
    %3582 = vmatmul.mubr.f32.gmra.mrb[0].mxu0 %v3273
    %v3583 = vpop.f32.mrb[0].mxu0
    %v3584 = vadd.f32 0.0, %v3583
    %v3585 = vpop.f32.mrb[0].mxu0
    %3586 = vmatprep.mubr.f32.mxu0 0.0
    %3587 = vmatmul.mubr.f32.gmra.mrb[0].mxu0 %v3347
    %v3588 = vpop.f32.mrb[0].mxu0
    %v3589 = vadd.f32 0.0, %v3588
    %v3590 = vpop.f32.mrb[0].mxu0
    %3591 = vmatprep.mubr.f32.mxu0 0.0
    %3592 = vmatmul.mubr.f32.gmra.mrb[0].mxu0 %v3421
    %v3593 = vpop.f32.mrb[0].mxu0
    %v3594 = vadd.f32 0.0, %v3593
    %v3595 = vpop.f32.mrb[0].mxu0
    %3596 = vmatprep.mubr.f32.mxu0 0.0
    %3597 = vmatmul.mubr.f32.gmra.mrb[0].mxu0 %v3495
    %v3598 = vpop.f32.mrb[0].mxu0
    %v3599 = vadd.f32 0.0, %v3598
    %v3600 = vpop.f32.mrb[0].mxu0
    %3601 = vdwg.mxu0
    %v3602 = vld [vmem:[%s5] sm:$0xff]
    %v3603 = vld [vmem:[%s5 + $0x8] sm:$0xff]
    %v3604 = vld [vmem:[%s5 + $0x10] sm:$0xff]
    %v3605 = vld [vmem:[%s5 + $0x18] sm:$0xff]
    %v3607 = vsel %vm233, %v3564, 0
    %v3610 = vsel %vm233, %v3569, 0
    %v3613 = vsel %vm233, %v3574, 0
    %v3616 = vsel %vm233, %v3579, 0
    %v3619 = vsel %vm233, %v3584, 0
    %v3622 = vsel %vm233, %v3589, 0
    %v3625 = vsel %vm233, %v3594, 0
    %v3628 = vsel %vm233, %v3599, 0
    %3630 = vmatprep.subr.mxu0 0.0
    %3631 = vmatpush1.msra.mxu0 %v3602
    %3632 = vmatprep.subr.mxu0 0.0
    %3633 = vmatpush1.msra.mxu0 %v3603
    %3634 = vmatprep.subr.mxu0 0.0
    %3635 = vmatpush1.msra.mxu0 %v3604
    %3636 = vmatprep.subr.mxu0 0.0
    %3637 = vmatpush1.msra.mxu0 %v3605
    %3638 = vmatprep.subr.mxu0 0.0
    %3639 = vmatpush1.msra.mxu0 0.0
    %3640 = vmatprep.subr.mxu0 0.0
    %3641 = vmatpush1.msra.mxu0 0.0
    %3642 = vmatprep.subr.mxu0 0.0
    %3643 = vmatpush1.msra.mxu0 0.0
    %3644 = vmatprep.subr.mxu0 0.0
    %3645 = vmatpush1.msra.mxu0 0.0
    %3646 = vmatprep.subr.mxu0 0.0
    %3647 = vmatpush1.msra.mxu0 0.0
    %3648 = vmatprep.subr.mxu0 0.0
    %3649 = vmatpush1.msra.mxu0 0.0
    %3650 = vmatprep.subr.mxu0 0.0
    %3651 = vmatpush1.msra.mxu0 0.0
    %3652 = vmatprep.subr.mxu0 0.0
    %3653 = vmatpush1.msra.mxu0 0.0
    %3654 = vmatprep.subr.mxu0 0.0
    %3655 = vmatpush1.msra.mxu0 0.0
    %3656 = vmatprep.subr.mxu0 0.0
    %3657 = vmatpush1.msra.mxu0 0.0
    %3658 = vmatprep.subr.mxu0 0.0
    %3659 = vmatpush1.msra.mxu0 0.0
    %3660 = vmatprep.subr.mxu0 0.0
    %3661 = vmatpush1.msra.mxu0 0.0
    %3662 = vmatprep.subr.mxu0 0.0
    %3663 = vmatpush1.msra.mxu0 0.0
    %3664 = vmatprep.subr.mxu0 0.0
    %3665 = vmatpush1.msra.mxu0 0.0
    %3666 = vmatprep.subr.mxu0 0.0
    %3667 = vmatpush1.msra.mxu0 0.0
    %3668 = vmatprep.subr.mxu0 0.0
    %3669 = vmatpush1.msra.mxu0 0.0
    %3670 = vmatprep.subr.mxu0 0.0
    %3671 = vmatpush1.msra.mxu0 0.0
    %3672 = vmatprep.subr.mxu0 0.0
    %3673 = vmatpush1.msra.mxu0 0.0
    %3674 = vmatprep.subr.mxu0 0.0
    %3675 = vmatpush1.msra.mxu0 0.0
    %3676 = vmatprep.subr.mxu0 0.0
    %3677 = vmatpush1.msra.mxu0 0.0
    %3678 = vmatprep.subr.mxu0 0.0
    %3679 = vmatpush1.msra.mxu0 0.0
    %3680 = vmatprep.subr.mxu0 0.0
    %3681 = vmatpush1.msra.mxu0 0.0
    %3682 = vmatprep.subr.mxu0 0.0
    %3683 = vmatpush1.msra.mxu0 0.0
    %3684 = vmatprep.subr.mxu0 0.0
    %3685 = vmatpush1.msra.mxu0 0.0
    %3686 = vmatprep.subr.mxu0 0.0
    %3687 = vmatpush1.msra.mxu0 0.0
    %3688 = vmatprep.subr.mxu0 0.0
    %3689 = vmatpush1.msra.mxu0 0.0
    %3690 = vmatprep.subr.mxu0 0.0
    %3691 = vmatpush1.msra.mxu0 0.0
    %3692 = vmatprep.subr.mxu0 0.0
    %3693 = vmatpush1.msra.mxu0 0.0
    %3694 = vmatprep.mubr.f32.mxu0 0.0
    %3695 = vmatmul.mubr.f32.gmra.mrb[0].mxu0 %v3607
    %v3696 = vpop.f32.mrb[0].mxu0
    %v3697 = vadd.f32 0.0, %v3696
    %v3698 = vpop.f32.mrb[0].mxu0
    %3699 = vmatprep.mubr.f32.mxu0 0.0
    %3700 = vmatmul.mubr.f32.gmra.mrb[0].mxu0 %v3610
    %v3701 = vpop.f32.mrb[0].mxu0
    %v3702 = vadd.f32 0.0, %v3701
    %v3703 = vpop.f32.mrb[0].mxu0
    %3704 = vmatprep.mubr.f32.mxu0 0.0
    %3705 = vmatmul.mubr.f32.gmra.mrb[0].mxu0 %v3613
    %v3706 = vpop.f32.mrb[0].mxu0
    %v3707 = vadd.f32 0.0, %v3706
    %v3708 = vpop.f32.mrb[0].mxu0
    %3709 = vmatprep.mubr.f32.mxu0 0.0
    %3710 = vmatmul.mubr.f32.gmra.mrb[0].mxu0 %v3616
    %v3711 = vpop.f32.mrb[0].mxu0
    %v3712 = vadd.f32 0.0, %v3711
    %v3713 = vpop.f32.mrb[0].mxu0
    %3714 = vmatprep.mubr.f32.mxu0 0.0
    %3715 = vmatmul.mubr.f32.gmra.mrb[0].mxu0 %v3619
    %v3716 = vpop.f32.mrb[0].mxu0
    %v3717 = vadd.f32 0.0, %v3716
    %v3718 = vpop.f32.mrb[0].mxu0
    %3719 = vmatprep.mubr.f32.mxu0 0.0
    %3720 = vmatmul.mubr.f32.gmra.mrb[0].mxu0 %v3622
    %v3721 = vpop.f32.mrb[0].mxu0
    %v3722 = vadd.f32 0.0, %v3721
    %v3723 = vpop.f32.mrb[0].mxu0
    %3724 = vmatprep.mubr.f32.mxu0 0.0
    %3725 = vmatmul.mubr.f32.gmra.mrb[0].mxu0 %v3625
    %v3726 = vpop.f32.mrb[0].mxu0
    %v3727 = vadd.f32 0.0, %v3726
    %v3728 = vpop.f32.mrb[0].mxu0
    %3729 = vmatprep.mubr.f32.mxu0 0.0
    %3730 = vmatmul.mubr.f32.gmra.mrb[0].mxu0 %v3628
    %v3731 = vpop.f32.mrb[0].mxu0
    %v3732 = vadd.f32 0.0, %v3731
    %v3733 = vpop.f32.mrb[0].mxu0
    %3734 = vdwg.mxu0
    %v3735 = vmax.f32 %v3697, %v3702
    %v3736 = vmax.f32 %v3735, %v3707
    %v3737 = vmax.f32 %v3736, %v3712
    %v3738 = vmax.f32 %v3737, %v3717
    %v3739 = vmax.f32 %v3738, %v3722
    %v3740 = vmax.f32 %v3739, %v3727
    %v3741 = vmax.f32 %v3740, %v3732
    %v3742 = vsub.f32 %v3697, %v3741
    %v3743 = vmul.f32 %v3742, 1.442695
    %v3744 = vpow.pop %v3743
    %v3745 = vsub.f32 %v3702, %v3741
    %v3746 = vmul.f32 %v3745, 1.442695
    %v3747 = vpow.pop %v3746
    %v3748 = vsub.f32 %v3707, %v3741
    %v3749 = vmul.f32 %v3748, 1.442695
    %v3750 = vpow.pop %v3749
    %v3751 = vsub.f32 %v3712, %v3741
    %v3752 = vmul.f32 %v3751, 1.442695
    %v3753 = vpow.pop %v3752
    %v3754 = vsub.f32 %v3717, %v3741
    %v3755 = vmul.f32 %v3754, 1.442695
    %v3756 = vpow.pop %v3755
    %v3757 = vsub.f32 %v3722, %v3741
    %v3758 = vmul.f32 %v3757, 1.442695
    %v3759 = vpow.pop %v3758
    %v3760 = vsub.f32 %v3727, %v3741
    %v3761 = vmul.f32 %v3760, 1.442695
    %v3762 = vpow.pop %v3761
    %v3763 = vsub.f32 %v3732, %v3741
    %v3764 = vmul.f32 %v3763, 1.442695
    %v3765 = vpow.pop %v3764
    %v3766 = vadd.f32 %v3744, %v3747
    %v3767 = vadd.f32 %v3766, %v3750
    %v3768 = vadd.f32 %v3767, %v3753
    %v3769 = vadd.f32 %v3768, %v3756
    %v3770 = vadd.f32 %v3769, %v3759
    %v3771 = vadd.f32 %v3770, %v3762
    %v3772 = vadd.f32 %v3771, %v3765
    %v3773 = vrcp.pop %v3772
    %v3774 = vmul.f32 %v3744, %v3773
    %v3775 = vmul.f32 %v3747, %v3773
    %v3776 = vmul.f32 %v3750, %v3773
    %v3777 = vmul.f32 %v3753, %v3773
    %v3778 = vmul.f32 %v3756, %v3773
    %v3779 = vmul.f32 %v3759, %v3773
    %v3780 = vmul.f32 %v3762, %v3773
    %v3781 = vmul.f32 %v3765, %v3773
    %3782 = vst.msk [vmem:[%s7] sm:$0xff] %vm91, %v3774
    %3783 = vst.msk [vmem:[%s7 + $0x8] sm:$0xff] %vm91, %v3775
    %3784 = vst.msk [vmem:[%s7 + $0x10] sm:$0xff] %vm91, %v3776
    %3785 = vst.msk [vmem:[%s7 + $0x18] sm:$0xff] %vm91, %v3777
    %3786 = vst.msk [vmem:[%s7 + $0x20] sm:$0xff] %vm91, %v3778
    %3787 = vst.msk [vmem:[%s7 + $0x28] sm:$0xff] %vm91, %v3779
    %3788 = vst.msk [vmem:[%s7 + $0x30] sm:$0xff] %vm91, %v3780
    %3789 = vst.msk [vmem:[%s7 + $0x38] sm:$0xff] %vm91, %v3781
    // Predicated region
    $region46: #{tpu_custom_call.1} parent=1 // pred_check
      _
    $region47: #{tpu_custom_call.1} parent=1 // pred_check_branch
      %3791 = sbr.rel (0) target = $region49
    $region48: #{tpu_custom_call.1} parent=1 // pred_region
      _
    $region49: #{tpu_custom_call.1} parent=1 // pred_fallthru
      _
    // Predicated region
    $region50: #{tpu_custom_call.1} parent=1 // pred_check
      _
    $region51: #{tpu_custom_call.1} parent=1 // pred_check_branch
      %3793 = sbr.rel (0) target = $region53
    $region52: #{tpu_custom_call.1} parent=1 // pred_region
      _
    $region53: #{tpu_custom_call.1} parent=1 // pred_fallthru
      _
    %3794 = vsyncpa [#allocation3], 1
    %3795 = vsyncpa [#allocation5], 1
    %3796 = vsyncpa [#allocation8], 1

</llo_original>
